<compile_context>
chip_gen: v7x
topology: tpu7x:2x2x1
jax: 0.10.0
libtpu: 0.0.40
codegen_flags: <defaults>
</compile_context>

<pallas_src>
import jax
import jax.numpy as jnp
from jax.experimental import pallas as pl
from jax.experimental.pallas import tpu as pltpu


# ----------------------------- Pallas kernel -----------------------------

def _stnkd_kernel(x_ref, w1_ref, b1_ref, w2_ref, b2_ref, w3_ref, b3_ref,
                  bf1_ref, bf2_ref, bf3_ref,
                  wf1_hbm, wf2_hbm, wf3_hbm,
                  out_ref,
                  gmax_ref, wf1_v, wf2_v, wf3_v, dma_sems):
    """One grid step = (batch element b, point-chunk c).

    x_ref:   (k, tile_n) f32 chunk of points for batch b (native NCW layout).
    w*_ref:  bf16 conv weights (C_in, C_out) with BN folded; b*_ref f32 biases.
    bf*_ref: f32 fc biases (BN folded; identity folded into bf3).
    wf*_hbm: bf16 fc weights left in HBM; manually DMA'd into wf*_v scratch.
    out_ref: (1, k*k) f32 transform row for batch b.
    """
    c = pl.program_id(1)
    last = pl.num_programs(1) - 1

    @pl.when(c == 0)
    def _():
        # Reset the per-batch running max (post-ReLU values are >= 0).
        gmax_ref[...] = jnp.zeros(gmax_ref.shape, gmax_ref.dtype)
        # Kick off the fc-head weight DMAs so they overlap the conv trunk.
        pltpu.make_async_copy(wf1_hbm, wf1_v, dma_sems.at[0]).start()
        pltpu.make_async_copy(wf2_hbm, wf2_v, dma_sems.at[1]).start()
        pltpu.make_async_copy(wf3_hbm, wf3_v, dma_sems.at[2]).start()

    # --- conv trunk on this chunk: transpose the (k, tile_n) tile in-kernel
    #     (XLU) and run three per-point matmuls on the MXU. ---
    xt = jnp.transpose(x_ref[...], (1, 0)).astype(jnp.bfloat16)        # (tile_n, k)
    h = jnp.dot(xt, w1_ref[...], preferred_element_type=jnp.float32) + b1_ref[...]
    h = jnp.maximum(h, 0.0).astype(jnp.bfloat16)                       # (tile_n, 64)
    h = jnp.dot(h, w2_ref[...], preferred_element_type=jnp.float32) + b2_ref[...]
    h = jnp.maximum(h, 0.0).astype(jnp.bfloat16)                       # (tile_n, 128)
    h = jnp.dot(h, w3_ref[...], preferred_element_type=jnp.float32) + b3_ref[...]
    h = jnp.maximum(h, 0.0)                                            # (tile_n, 1024) f32

    # --- torch.max(x, 2): running max over points, accumulated in VMEM. ---
    gmax_ref[...] = jnp.maximum(gmax_ref[...],
                                jnp.max(h, axis=0, keepdims=True))     # (1, 1024)

    @pl.when(c == last)
    def _():
        # fc weights must have landed (copies were started at chunk 0).
        pltpu.make_async_copy(wf1_hbm, wf1_v, dma_sems.at[0]).wait()
        pltpu.make_async_copy(wf2_hbm, wf2_v, dma_sems.at[1]).wait()
        pltpu.make_async_copy(wf3_hbm, wf3_v, dma_sems.at[2]).wait()

        g = gmax_ref[...].astype(jnp.bfloat16)                         # (1, 1024)
        f = jnp.dot(g, wf1_v[...], preferred_element_type=jnp.float32) + bf1_ref[...]
        f = jnp.maximum(f, 0.0).astype(jnp.bfloat16)                   # (1, 512)
        f = jnp.dot(f, wf2_v[...], preferred_element_type=jnp.float32) + bf2_ref[...]
        f = jnp.maximum(f, 0.0).astype(jnp.bfloat16)                   # (1, 256)
        out_ref[...] = jnp.dot(f, wf3_v[...],
                               preferred_element_type=jnp.float32) + bf3_ref[...]


# ----------------------------- pallas_call wrapper -----------------------------

def stnkd_forward(x_bkn, p):
    """x_bkn: (B, k, N) f32, matching the PyTorch NCW input layout."""
    B, k, N = x_bkn.shape
    # 128-point chunks when possible; otherwise one full-extent chunk.
    tile_n = 128 if N % 128 == 0 else N
    n_chunks = N // tile_n

    (w1, b1), (w2, b2), (w3, b3) = p["c1"], p["c2"], p["c3"]
    (wf1, bf1), (wf2, bf2), (wf3, bf3) = p["f1"], p["f2"], p["f3"]

    const = lambda b, c: (0, 0)
    grid_spec = pltpu.PrefetchScalarGridSpec(
        num_scalar_prefetch=0,
        grid=(B, n_chunks),                      # reduction (points) axis last
        in_specs=[
            pl.BlockSpec((None, k, tile_n), lambda b, c: (b, 0, c)),   # x chunk
            pl.BlockSpec(w1.shape, const),                             # conv1 w
            pl.BlockSpec(b1.shape, const),                             # conv1 b
            pl.BlockSpec(w2.shape, const),                             # conv2 w
            pl.BlockSpec(b2.shape, const),                             # conv2 b
            pl.BlockSpec(w3.shape, const),                             # conv3 w
            pl.BlockSpec(b3.shape, const),                             # conv3 b
            pl.BlockSpec(bf1.shape, const),                            # fc1 b
            pl.BlockSpec(bf2.shape, const),                            # fc2 b
            pl.BlockSpec(bf3.shape, const),                            # fc3 b (+iden)
            pl.BlockSpec(memory_space=pl.ANY),                         # fc1 w (HBM)
            pl.BlockSpec(memory_space=pl.ANY),                         # fc2 w (HBM)
            pl.BlockSpec(memory_space=pl.ANY),                         # fc3 w (HBM)
        ],
        out_specs=pl.BlockSpec((None, 1, k * k), lambda b, c: (b, 0, 0)),
        scratch_shapes=[
            pltpu.VMEM((1, 1024), jnp.float32),          # running max (global feature)
            pltpu.VMEM(wf1.shape, jnp.bfloat16),         # fc1 weight landing buffer
            pltpu.VMEM(wf2.shape, jnp.bfloat16),         # fc2 weight landing buffer
            pltpu.VMEM(wf3.shape, jnp.bfloat16),         # fc3 weight landing buffer
            pltpu.SemaphoreType.DMA((3,)),
        ],
    )

    flops = (2 * B * N * (k * 64 + 64 * 128 + 128 * 1024)
             + 2 * B * (1024 * 512 + 512 * 256 + 256 * k * k))
    bytes_weights = sum(int(a.size) * a.dtype.itemsize for a in
                        (w1, b1, w2, b2, w3, b3, wf1, bf1, wf2, bf2, wf3, bf3))
    bytes_accessed = int(x_bkn.size) * 4 + bytes_weights + B * k * k * 4

    out = pl.pallas_call(
        _stnkd_kernel,
        out_shape=jax.ShapeDtypeStruct((B, 1, k * k), jnp.float32),
        grid_spec=grid_spec,
        compiler_params=pltpu.CompilerParams(
            dimension_semantics=("parallel", "arbitrary")),
        cost_estimate=pl.CostEstimate(flops=flops, transcendentals=0,
                                      bytes_accessed=bytes_accessed),
    )(x_bkn.astype(jnp.float32),
      w1, b1, w2, b2, w3, b3, bf1, bf2, bf3, wf1, wf2, wf3)
    return out.reshape(B, k, k)


# ----------------------------- parameter setup (glue) -----------------------------

def _linear_init(key, cout, cin, scale=0.05):
    kw, kb = jax.random.split(key)
    w = scale * jax.random.normal(kw, (cout, cin), jnp.float32)   # torch layout (C_out, C_in)
    b = scale * jax.random.normal(kb, (cout,), jnp.float32)
    return w, b


def _bn_init(key, c):
    k1, k2, k3, k4 = jax.random.split(key, 4)
    gamma = 1.0 + 0.1 * jax.random.normal(k1, (c,), jnp.float32)
    beta = 0.1 * jax.random.normal(k2, (c,), jnp.float32)
    mean = 0.1 * jax.random.normal(k3, (c,), jnp.float32)
    var = 1.0 + 0.1 * jax.random.uniform(k4, (c,), jnp.float32)
    return gamma, beta, mean, var


def _fold_bn(w, b, bn, eps=1e-5):
    """Fold eval-mode BatchNorm into the preceding conv1d(k=1)/linear layer.

    Returns (W_eff, b_eff) with W_eff transposed to (C_in, C_out) in bf16
    (MXU operand); bias kept in f32 with shape (1, C_out).
    """
    gamma, beta, mean, var = bn
    scale = gamma / jnp.sqrt(var + eps)
    w_eff = (w * scale[:, None]).T.astype(jnp.bfloat16)
    b_eff = ((b - mean) * scale + beta)[None, :].astype(jnp.float32)
    return w_eff, b_eff


def init_params(key, k=64):
    keys = jax.random.split(key, 12)
    p = {}
    w, b = _linear_init(keys[0], 64, k);      p["c1"] = _fold_bn(w, b, _bn_init(keys[1], 64))
    w, b = _linear_init(keys[2], 128, 64);    p["c2"] = _fold_bn(w, b, _bn_init(keys[3], 128))
    w, b = _linear_init(keys[4], 1024, 128);  p["c3"] = _fold_bn(w, b, _bn_init(keys[5], 1024))
    w, b = _linear_init(keys[6], 512, 1024);  p["f1"] = _fold_bn(w, b, _bn_init(keys[7], 512))
    w, b = _linear_init(keys[8], 256, 512);   p["f2"] = _fold_bn(w, b, _bn_init(keys[9], 256))
    # fc3: plain linear; identity matrix (the "+ iden" in torch) folded into the bias.
    w, b = _linear_init(keys[10], k * k, 256)
    iden = jnp.eye(k, dtype=jnp.float32).reshape(-1)
    p["f3"] = (w.T.astype(jnp.bfloat16), (b + iden)[None, :].astype(jnp.float32))
    return p


# ----------------------------- plain-JAX reference (same bf16 operand path) -----------------------------

def stnkd_reference(x_bkn, p):
    B, k, N = x_bkn.shape
    x = jnp.transpose(x_bkn, (0, 2, 1)).astype(jnp.float32)          # (B, N, k)

    def conv(h, wb):
        w, b = wb
        return jnp.einsum("bnc,cd->bnd", h.astype(jnp.bfloat16), w,
                          preferred_element_type=jnp.float32) + b

    def fc(h, wb):
        w, b = wb
        return jnp.dot(h.astype(jnp.bfloat16), w,
                       preferred_element_type=jnp.float32) + b

    h = jnp.maximum(conv(x, p["c1"]), 0.0)
    h = jnp.maximum(conv(h, p["c2"]), 0.0)
    h = jnp.maximum(conv(h, p["c3"]), 0.0)
    g = jnp.max(h, axis=1)                                            # (B, 1024)
    f = jnp.maximum(fc(g, p["f1"]), 0.0)
    f = jnp.maximum(fc(f, p["f2"]), 0.0)
    o = fc(f, p["f3"])
    return o.reshape(B, k, k)


# ----------------------------- driver -----------------------------

if __name__ == "__main__":
    key = jax.random.PRNGKey(0)
    k_in, k_param = jax.random.split(key)

    B, K, N = 2, 64, 256                    # batch, k channels, points (2 chunks of 128)
    x = jax.random.normal(k_in, (B, K, N), jnp.float32)
    params = init_params(k_param, k=K)

    out = stnkd_forward(x, params)
    jax.block_until_ready(out)

    assert out.shape == (B, K, K)
    assert bool(jnp.all(jnp.isfinite(out)))

    ref = stnkd_reference(x, params)
    rel_err = float(jnp.max(jnp.abs(out - ref)) / (jnp.max(jnp.abs(ref)) + 1e-6))
    assert rel_err < 2e-2, f"mismatch vs reference: rel err {rel_err}"

    print("KERNEL_OK")
</pallas_src>

<mosaic_0001>
module attributes {stable_mosaic.version = 11 : i64} {
  func.func @_stnkd_kernel(%arg0: i32, %arg1: i32, %arg2: memref<1x64x128xf32, #tpu.memory_space<vmem>>, %arg3: memref<64x64xbf16, #tpu.memory_space<vmem>>, %arg4: memref<1x64xf32, #tpu.memory_space<vmem>>, %arg5: memref<64x128xbf16, #tpu.memory_space<vmem>>, %arg6: memref<1x128xf32, #tpu.memory_space<vmem>>, %arg7: memref<128x1024xbf16, #tpu.memory_space<vmem>>, %arg8: memref<1x1024xf32, #tpu.memory_space<vmem>>, %arg9: memref<1x512xf32, #tpu.memory_space<vmem>>, %arg10: memref<1x256xf32, #tpu.memory_space<vmem>>, %arg11: memref<1x4096xf32, #tpu.memory_space<vmem>>, %arg12: memref<1024x512xbf16, #tpu.memory_space<any>>, %arg13: memref<512x256xbf16, #tpu.memory_space<any>>, %arg14: memref<256x4096xbf16, #tpu.memory_space<any>>, %arg15: memref<1x1x4096xf32, #tpu.memory_space<vmem>>, %arg16: memref<1x1024xf32, #tpu.memory_space<vmem>>, %arg17: memref<1024x512xbf16, #tpu.memory_space<vmem>>, %arg18: memref<512x256xbf16, #tpu.memory_space<vmem>>, %arg19: memref<256x4096xbf16, #tpu.memory_space<vmem>>, %arg20: memref<3x!tpu.dma_semaphore, #tpu.memory_space<semaphore_mem>>) attributes {dimension_semantics = [#tpu.dimension_semantics<parallel>, #tpu.dimension_semantics<arbitrary>], iteration_bounds = array<i64: 2, 2>, scalar_prefetch = 0 : i64, scratch_operands = 5 : i64, tpu.core_type = #tpu.core_type<tc>, window_params = [{transform_indices = @transform_0, window_bounds = array<i64: 1, 64, 128>}, {pipeline_mode = #tpu.pipeline_mode<synchronous>, transform_indices = @transform_1, window_bounds = array<i64: 64, 64>}, {pipeline_mode = #tpu.pipeline_mode<synchronous>, transform_indices = @transform_2, window_bounds = array<i64: 1, 64>}, {pipeline_mode = #tpu.pipeline_mode<synchronous>, transform_indices = @transform_3, window_bounds = array<i64: 64, 128>}, {pipeline_mode = #tpu.pipeline_mode<synchronous>, transform_indices = @transform_4, window_bounds = array<i64: 1, 128>}, {pipeline_mode = #tpu.pipeline_mode<synchronous>, transform_indices = @transform_5, window_bounds = array<i64: 128, 1024>}, {pipeline_mode = #tpu.pipeline_mode<synchronous>, transform_indices = @transform_6, window_bounds = array<i64: 1, 1024>}, {pipeline_mode = #tpu.pipeline_mode<synchronous>, transform_indices = @transform_7, window_bounds = array<i64: 1, 512>}, {pipeline_mode = #tpu.pipeline_mode<synchronous>, transform_indices = @transform_8, window_bounds = array<i64: 1, 256>}, {pipeline_mode = #tpu.pipeline_mode<synchronous>, transform_indices = @transform_9, window_bounds = array<i64: 1, 4096>}, {}, {}, {}, {transform_indices = @transform_13, window_bounds = array<i64: 1, 1, 4096>}]} {
    %c0_i32 = arith.constant 0 : i32
    %0 = arith.cmpi eq, %arg1, %c0_i32 : i32
    %1 = arith.extui %0 : i1 to i32
    %c0_i32_0 = arith.constant 0 : i32
    %2 = arith.cmpi ne, %1, %c0_i32_0 : i32
    scf.if %2 {
      %cst_26 = arith.constant 0.000000e+00 : f32
      %38 = vector.broadcast %cst_26 : f32 to vector<1x1024xf32>
      %c0_27 = arith.constant 0 : index
      %c0_28 = arith.constant 0 : index
      %39 = vector.load %arg16[%c0_27, %c0_28] : memref<1x1024xf32, #tpu.memory_space<vmem>>, vector<1x1024xf32>
      tpu.vector_store %arg16[%c0_27, %c0_28], %38 {strides = array<i32>} : memref<1x1024xf32, #tpu.memory_space<vmem>>, vector<1x1024xf32>,
      %c0_i32_29 = arith.constant 0 : i32
      %40 = tpu.memref_slice %arg20[%c0_i32_29] : memref<3x!tpu.dma_semaphore, #tpu.memory_space<semaphore_mem>> -> memref<1x!tpu.dma_semaphore, #tpu.memory_space<semaphore_mem>>
      %41 = tpu.memref_squeeze %40 : memref<1x!tpu.dma_semaphore, #tpu.memory_space<semaphore_mem>> -> memref<!tpu.dma_semaphore, #tpu.memory_space<semaphore_mem>>
      tpu.enqueue_dma source(%arg12 : memref<1024x512xbf16, #tpu.memory_space<any>>) target(%arg17 : memref<1024x512xbf16, #tpu.memory_space<vmem>>) target_semaphore(%41 : memref<!tpu.dma_semaphore, #tpu.memory_space<semaphore_mem>>)
      %c1_i32_30 = arith.constant 1 : i32
      %42 = tpu.memref_slice %arg20[%c1_i32_30] : memref<3x!tpu.dma_semaphore, #tpu.memory_space<semaphore_mem>> -> memref<1x!tpu.dma_semaphore, #tpu.memory_space<semaphore_mem>>
      %43 = tpu.memref_squeeze %42 : memref<1x!tpu.dma_semaphore, #tpu.memory_space<semaphore_mem>> -> memref<!tpu.dma_semaphore, #tpu.memory_space<semaphore_mem>>
      tpu.enqueue_dma source(%arg13 : memref<512x256xbf16, #tpu.memory_space<any>>) target(%arg18 : memref<512x256xbf16, #tpu.memory_space<vmem>>) target_semaphore(%43 : memref<!tpu.dma_semaphore, #tpu.memory_space<semaphore_mem>>)
      %c2_i32 = arith.constant 2 : i32
      %44 = tpu.memref_slice %arg20[%c2_i32] : memref<3x!tpu.dma_semaphore, #tpu.memory_space<semaphore_mem>> -> memref<1x!tpu.dma_semaphore, #tpu.memory_space<semaphore_mem>>
      %45 = tpu.memref_squeeze %44 : memref<1x!tpu.dma_semaphore, #tpu.memory_space<semaphore_mem>> -> memref<!tpu.dma_semaphore, #tpu.memory_space<semaphore_mem>>
      tpu.enqueue_dma source(%arg14 : memref<256x4096xbf16, #tpu.memory_space<any>>) target(%arg19 : memref<256x4096xbf16, #tpu.memory_space<vmem>>) target_semaphore(%45 : memref<!tpu.dma_semaphore, #tpu.memory_space<semaphore_mem>>)
    } else {
    }
    %c0 = arith.constant 0 : index
    %c0_1 = arith.constant 0 : index
    %c0_2 = arith.constant 0 : index
    %3 = vector.load %arg2[%c0, %c0_1, %c0_2] : memref<1x64x128xf32, #tpu.memory_space<vmem>>, vector<1x64x128xf32>
    %4 = vector.shape_cast %3 : vector<1x64x128xf32> to vector<64x128xf32>
    %5 = tpu.transpose %4, [1, 0] : vector<64x128xf32> -> vector<128x64xf32>
    %6 = arith.truncf %5 : vector<128x64xf32> to vector<128x64xbf16>
    %c0_3 = arith.constant 0 : index
    %c0_4 = arith.constant 0 : index
    %7 = vector.load %arg3[%c0_3, %c0_4] : memref<64x64xbf16, #tpu.memory_space<vmem>>, vector<64x64xbf16>
    %cst = arith.constant dense<0.000000e+00> : vector<128x64xf32>
    %8 = tpu.matmul %6, %7, %cst {dimension_numbers = #tpu.dot_dimension_numbers<[1], [0], [0], [1], [0, 0, 1, 1], [], []>} : vector<128x64xbf16>, vector<64x64xbf16>, vector<128x64xf32> -> vector<128x64xf32>
    %c0_5 = arith.constant 0 : index
    %c0_6 = arith.constant 0 : index
    %9 = vector.load %arg4[%c0_5, %c0_6] : memref<1x64xf32, #tpu.memory_space<vmem>>, vector<1x64xf32>
    %10 = vector.broadcast %9 : vector<1x64xf32> to vector<128x64xf32>
    %11 = arith.addf %8, %10 : vector<128x64xf32>
    %cst_7 = arith.constant 0.000000e+00 : f32
    %12 = vector.broadcast %cst_7 : f32 to vector<128x64xf32>
    %13 = arith.maximumf %11, %12 : vector<128x64xf32>
    %14 = arith.truncf %13 : vector<128x64xf32> to vector<128x64xbf16>
    %c0_8 = arith.constant 0 : index
    %c0_9 = arith.constant 0 : index
    %15 = vector.load %arg5[%c0_8, %c0_9] : memref<64x128xbf16, #tpu.memory_space<vmem>>, vector<64x128xbf16>
    %cst_10 = arith.constant dense<0.000000e+00> : vector<128x128xf32>
    %16 = tpu.matmul %14, %15, %cst_10 {dimension_numbers = #tpu.dot_dimension_numbers<[1], [0], [0], [1], [0, 0, 1, 1], [], []>} : vector<128x64xbf16>, vector<64x128xbf16>, vector<128x128xf32> -> vector<128x128xf32>
    %c0_11 = arith.constant 0 : index
    %c0_12 = arith.constant 0 : index
    %17 = vector.load %arg6[%c0_11, %c0_12] : memref<1x128xf32, #tpu.memory_space<vmem>>, vector<1x128xf32>
    %18 = vector.broadcast %17 : vector<1x128xf32> to vector<128x128xf32>
    %19 = arith.addf %16, %18 : vector<128x128xf32>
    %cst_13 = arith.constant 0.000000e+00 : f32
    %20 = vector.broadcast %cst_13 : f32 to vector<128x128xf32>
    %21 = arith.maximumf %19, %20 : vector<128x128xf32>
    %22 = arith.truncf %21 : vector<128x128xf32> to vector<128x128xbf16>
    %c0_14 = arith.constant 0 : index
    %c0_15 = arith.constant 0 : index
    %23 = vector.load %arg7[%c0_14, %c0_15] : memref<128x1024xbf16, #tpu.memory_space<vmem>>, vector<128x1024xbf16>
    %cst_16 = arith.constant dense<0.000000e+00> : vector<128x1024xf32>
    %24 = tpu.matmul %22, %23, %cst_16 {dimension_numbers = #tpu.dot_dimension_numbers<[1], [0], [0], [1], [0, 0, 1, 1], [], []>} : vector<128x128xbf16>, vector<128x1024xbf16>, vector<128x1024xf32> -> vector<128x1024xf32>
    %c0_17 = arith.constant 0 : index
    %c0_18 = arith.constant 0 : index
    %25 = vector.load %arg8[%c0_17, %c0_18] : memref<1x1024xf32, #tpu.memory_space<vmem>>, vector<1x1024xf32>
    %26 = vector.broadcast %25 : vector<1x1024xf32> to vector<128x1024xf32>
    %27 = arith.addf %24, %26 : vector<128x1024xf32>
    %cst_19 = arith.constant 0.000000e+00 : f32
    %28 = vector.broadcast %cst_19 : f32 to vector<128x1024xf32>
    %29 = arith.maximumf %27, %28 : vector<128x1024xf32>
    %c0_20 = arith.constant 0 : index
    %c0_21 = arith.constant 0 : index
    %30 = vector.load %arg16[%c0_20, %c0_21] : memref<1x1024xf32, #tpu.memory_space<vmem>>, vector<1x1024xf32>
    %cst_22 = arith.constant dense<0xFF800000> : vector<1024xf32>
    %31 = vector.multi_reduction <maximumf>, %29, %cst_22 [0] : vector<128x1024xf32> to vector<1024xf32>
    %32 = vector.shape_cast %31 : vector<1024xf32> to vector<1x1024xf32>
    %33 = arith.maximumf %30, %32 : vector<1x1024xf32>
    %c0_23 = arith.constant 0 : index
    %c0_24 = arith.constant 0 : index
    %34 = vector.load %arg16[%c0_23, %c0_24] : memref<1x1024xf32, #tpu.memory_space<vmem>>, vector<1x1024xf32>
    tpu.vector_store %arg16[%c0_23, %c0_24], %33 {strides = array<i32>} : memref<1x1024xf32, #tpu.memory_space<vmem>>, vector<1x1024xf32>,
    %c1_i32 = arith.constant 1 : i32
    %35 = arith.cmpi eq, %arg1, %c1_i32 : i32
    %36 = arith.extui %35 : i1 to i32
    %c0_i32_25 = arith.constant 0 : i32
    %37 = arith.cmpi ne, %36, %c0_i32_25 : i32
    scf.if %37 {
      %c0_i32_26 = arith.constant 0 : i32
      %38 = tpu.memref_slice %arg20[%c0_i32_26] : memref<3x!tpu.dma_semaphore, #tpu.memory_space<semaphore_mem>> -> memref<1x!tpu.dma_semaphore, #tpu.memory_space<semaphore_mem>>
      %39 = tpu.memref_squeeze %38 : memref<1x!tpu.dma_semaphore, #tpu.memory_space<semaphore_mem>> -> memref<!tpu.dma_semaphore, #tpu.memory_space<semaphore_mem>>
      tpu.wait_dma2 semaphore(%39 : memref<!tpu.dma_semaphore, #tpu.memory_space<semaphore_mem>>) src(%arg12 : memref<1024x512xbf16, #tpu.memory_space<any>>) dst(%arg17 : memref<1024x512xbf16, #tpu.memory_space<vmem>>)
      %c1_i32_27 = arith.constant 1 : i32
      %40 = tpu.memref_slice %arg20[%c1_i32_27] : memref<3x!tpu.dma_semaphore, #tpu.memory_space<semaphore_mem>> -> memref<1x!tpu.dma_semaphore, #tpu.memory_space<semaphore_mem>>
      %41 = tpu.memref_squeeze %40 : memref<1x!tpu.dma_semaphore, #tpu.memory_space<semaphore_mem>> -> memref<!tpu.dma_semaphore, #tpu.memory_space<semaphore_mem>>
      tpu.wait_dma2 semaphore(%41 : memref<!tpu.dma_semaphore, #tpu.memory_space<semaphore_mem>>) src(%arg13 : memref<512x256xbf16, #tpu.memory_space<any>>) dst(%arg18 : memref<512x256xbf16, #tpu.memory_space<vmem>>)
      %c2_i32 = arith.constant 2 : i32
      %42 = tpu.memref_slice %arg20[%c2_i32] : memref<3x!tpu.dma_semaphore, #tpu.memory_space<semaphore_mem>> -> memref<1x!tpu.dma_semaphore, #tpu.memory_space<semaphore_mem>>
      %43 = tpu.memref_squeeze %42 : memref<1x!tpu.dma_semaphore, #tpu.memory_space<semaphore_mem>> -> memref<!tpu.dma_semaphore, #tpu.memory_space<semaphore_mem>>
      tpu.wait_dma2 semaphore(%43 : memref<!tpu.dma_semaphore, #tpu.memory_space<semaphore_mem>>) src(%arg14 : memref<256x4096xbf16, #tpu.memory_space<any>>) dst(%arg19 : memref<256x4096xbf16, #tpu.memory_space<vmem>>)
      %c0_28 = arith.constant 0 : index
      %c0_29 = arith.constant 0 : index
      %44 = vector.load %arg16[%c0_28, %c0_29] : memref<1x1024xf32, #tpu.memory_space<vmem>>, vector<1x1024xf32>
      %45 = arith.truncf %44 : vector<1x1024xf32> to vector<1x1024xbf16>
      %c0_30 = arith.constant 0 : index
      %c0_31 = arith.constant 0 : index
      %46 = vector.load %arg17[%c0_30, %c0_31] : memref<1024x512xbf16, #tpu.memory_space<vmem>>, vector<1024x512xbf16>
      %cst_32 = arith.constant dense<0.000000e+00> : vector<1x512xf32>
      %47 = tpu.matmul %45, %46, %cst_32 {dimension_numbers = #tpu.dot_dimension_numbers<[1], [0], [0], [1], [0, 0, 1, 1], [], []>} : vector<1x1024xbf16>, vector<1024x512xbf16>, vector<1x512xf32> -> vector<1x512xf32>
      %c0_33 = arith.constant 0 : index
      %c0_34 = arith.constant 0 : index
      %48 = vector.load %arg9[%c0_33, %c0_34] : memref<1x512xf32, #tpu.memory_space<vmem>>, vector<1x512xf32>
      %49 = arith.addf %47, %48 : vector<1x512xf32>
      %cst_35 = arith.constant 0.000000e+00 : f32
      %50 = vector.broadcast %cst_35 : f32 to vector<1x512xf32>
      %51 = arith.maximumf %49, %50 : vector<1x512xf32>
      %52 = arith.truncf %51 : vector<1x512xf32> to vector<1x512xbf16>
      %c0_36 = arith.constant 0 : index
      %c0_37 = arith.constant 0 : index
      %53 = vector.load %arg18[%c0_36, %c0_37] : memref<512x256xbf16, #tpu.memory_space<vmem>>, vector<512x256xbf16>
      %cst_38 = arith.constant dense<0.000000e+00> : vector<1x256xf32>
      %54 = tpu.matmul %52, %53, %cst_38 {dimension_numbers = #tpu.dot_dimension_numbers<[1], [0], [0], [1], [0, 0, 1, 1], [], []>} : vector<1x512xbf16>, vector<512x256xbf16>, vector<1x256xf32> -> vector<1x256xf32>
      %c0_39 = arith.constant 0 : index
      %c0_40 = arith.constant 0 : index
      %55 = vector.load %arg10[%c0_39, %c0_40] : memref<1x256xf32, #tpu.memory_space<vmem>>, vector<1x256xf32>
      %56 = arith.addf %54, %55 : vector<1x256xf32>
      %cst_41 = arith.constant 0.000000e+00 : f32
      %57 = vector.broadcast %cst_41 : f32 to vector<1x256xf32>
      %58 = arith.maximumf %56, %57 : vector<1x256xf32>
      %59 = arith.truncf %58 : vector<1x256xf32> to vector<1x256xbf16>
      %c0_42 = arith.constant 0 : index
      %c0_43 = arith.constant 0 : index
      %60 = vector.load %arg19[%c0_42, %c0_43] : memref<256x4096xbf16, #tpu.memory_space<vmem>>, vector<256x4096xbf16>
      %cst_44 = arith.constant dense<0.000000e+00> : vector<1x4096xf32>
      %61 = tpu.matmul %59, %60, %cst_44 {dimension_numbers = #tpu.dot_dimension_numbers<[1], [0], [0], [1], [0, 0, 1, 1], [], []>} : vector<1x256xbf16>, vector<256x4096xbf16>, vector<1x4096xf32> -> vector<1x4096xf32>
      %c0_45 = arith.constant 0 : index
      %c0_46 = arith.constant 0 : index
      %62 = vector.load %arg11[%c0_45, %c0_46] : memref<1x4096xf32, #tpu.memory_space<vmem>>, vector<1x4096xf32>
      %63 = arith.addf %61, %62 : vector<1x4096xf32>
      %c0_47 = arith.constant 0 : index
      %c0_48 = arith.constant 0 : index
      %c0_49 = arith.constant 0 : index
      %64 = vector.load %arg15[%c0_47, %c0_48, %c0_49] : memref<1x1x4096xf32, #tpu.memory_space<vmem>>, vector<1x1x4096xf32>
      %65 = vector.shape_cast %64 : vector<1x1x4096xf32> to vector<1x4096xf32>
      %66 = vector.shape_cast %63 : vector<1x4096xf32> to vector<1x1x4096xf32>
      tpu.vector_store %arg15[%c0_47, %c0_48, %c0_49], %66 {strides = array<i32>} : memref<1x1x4096xf32, #tpu.memory_space<vmem>>, vector<1x1x4096xf32>,
    } else {
    }
    return
  }
  func.func @transform_0(%arg0: i32, %arg1: i32) -> (i32, i32, i32) {
    %c0_i32 = arith.constant 0 : i32
    %c0_i32_0 = arith.constant 0 : i32
    return %arg0, %c0_i32, %arg1 : i32, i32, i32
  }
  func.func @transform_1(%arg0: i32, %arg1: i32) -> (i32, i32) {
    %c0_i32 = arith.constant 0 : i32
    %c0_i32_0 = arith.constant 0 : i32
    %c0_i32_1 = arith.constant 0 : i32
    return %c0_i32, %c0_i32_0 : i32, i32
  }
  func.func @transform_2(%arg0: i32, %arg1: i32) -> (i32, i32) {
    %c0_i32 = arith.constant 0 : i32
    %c0_i32_0 = arith.constant 0 : i32
    %c0_i32_1 = arith.constant 0 : i32
    return %c0_i32, %c0_i32_0 : i32, i32
  }
  func.func @transform_3(%arg0: i32, %arg1: i32) -> (i32, i32) {
    %c0_i32 = arith.constant 0 : i32
    %c0_i32_0 = arith.constant 0 : i32
    %c0_i32_1 = arith.constant 0 : i32
    return %c0_i32, %c0_i32_0 : i32, i32
  }
  func.func @transform_4(%arg0: i32, %arg1: i32) -> (i32, i32) {
    %c0_i32 = arith.constant 0 : i32
    %c0_i32_0 = arith.constant 0 : i32
    %c0_i32_1 = arith.constant 0 : i32
    return %c0_i32, %c0_i32_0 : i32, i32
  }
  func.func @transform_5(%arg0: i32, %arg1: i32) -> (i32, i32) {
    %c0_i32 = arith.constant 0 : i32
    %c0_i32_0 = arith.constant 0 : i32
    %c0_i32_1 = arith.constant 0 : i32
    return %c0_i32, %c0_i32_0 : i32, i32
  }
  func.func @transform_6(%arg0: i32, %arg1: i32) -> (i32, i32) {
    %c0_i32 = arith.constant 0 : i32
    %c0_i32_0 = arith.constant 0 : i32
    %c0_i32_1 = arith.constant 0 : i32
    return %c0_i32, %c0_i32_0 : i32, i32
  }
  func.func @transform_7(%arg0: i32, %arg1: i32) -> (i32, i32) {
    %c0_i32 = arith.constant 0 : i32
    %c0_i32_0 = arith.constant 0 : i32
    %c0_i32_1 = arith.constant 0 : i32
    return %c0_i32, %c0_i32_0 : i32, i32
  }
  func.func @transform_8(%arg0: i32, %arg1: i32) -> (i32, i32) {
    %c0_i32 = arith.constant 0 : i32
    %c0_i32_0 = arith.constant 0 : i32
    %c0_i32_1 = arith.constant 0 : i32
    return %c0_i32, %c0_i32_0 : i32, i32
  }
  func.func @transform_9(%arg0: i32, %arg1: i32) -> (i32, i32) {
    %c0_i32 = arith.constant 0 : i32
    %c0_i32_0 = arith.constant 0 : i32
    %c0_i32_1 = arith.constant 0 : i32
    return %c0_i32, %c0_i32_0 : i32, i32
  }
  func.func @transform_13(%arg0: i32, %arg1: i32) -> (i32, i32, i32) {
    %c0_i32 = arith.constant 0 : i32
    %c0_i32_0 = arith.constant 0 : i32
    %c0_i32_1 = arith.constant 0 : i32
    return %arg0, %c0_i32, %c0_i32_0 : i32, i32, i32
  }
}

</mosaic_0001>

<llo_original>
// kernel: tpu_custom_call.1
$region0: #{tpu_custom_call.1}
  #allocation0 [shape = 'u32[]', space=smem, size = 0x4, offset = 0x4, fixed_abs, tag = 'smem constant byte address 0x4 - core index']
  #allocation1 [shape = 'u32[144,128]{1,0:T(1,128)}', space=vmem, size = 0x12000, scoped, tag = 'internal scratch']
  #allocation2 [shape = 'f32[1,1024]{1,0:T(1,128)}', space=vmem, size = 0x1000, scoped, tag = 'scratch operand']
  #allocation3 [shape = 'bf16[1024,512]{1,0:T(16,128)(2,1)}', space=vmem, size = 0x100000, scoped, tag = 'scratch operand']
  #allocation4 [shape = 'bf16[512,256]{1,0:T(16,128)(2,1)}', space=vmem, size = 0x40000, scoped, tag = 'scratch operand']
  #allocation5 [shape = 'bf16[256,4096]{1,0:T(16,128)(2,1)}', space=vmem, size = 0x200000, scoped, tag = 'scratch operand']
  #allocation6 [shape = 's32[3]{0}', space=sflag, size = 0xc, scoped, tag = 'scratch operand']
  #allocation25 [shape = 's32[]', space=sflag, size = 0x4, offset = 0, fixed_abs, tag = 'sflag constant byte address 0x0 - dummy sync flag']
  #allocation27 [shape = 's32[]', space=sflag, size = 0x4, offset = 0, fixed_abs, tag = 'sflag constant byte address 0x0 - dummy sync flag']
  #allocation29 [shape = 's32[]', space=sflag, size = 0x4, offset = 0, fixed_abs, tag = 'sflag constant byte address 0x0 - dummy sync flag']
  %s0 = inlined_call_operand.hbm [shape: f32[2,64,256], index: 0, kind: input, shape index: {}]
  %s1 = inlined_call_operand.hbm [shape: bf16[64,64], index: 1, kind: input, shape index: {}]
  %s2 = inlined_call_operand.hbm [shape: f32[1,64], index: 2, kind: input, shape index: {}]
  %s3 = inlined_call_operand.hbm [shape: bf16[64,128], index: 3, kind: input, shape index: {}]
  %s4 = inlined_call_operand.hbm [shape: f32[1,128], index: 4, kind: input, shape index: {}]
  %s5 = inlined_call_operand.hbm [shape: bf16[128,1024], index: 5, kind: input, shape index: {}]
  %s6 = inlined_call_operand.hbm [shape: f32[1,1024], index: 6, kind: input, shape index: {}]
  %s7 = inlined_call_operand.hbm [shape: f32[1,512], index: 7, kind: input, shape index: {}]
  %s8 = inlined_call_operand.hbm [shape: f32[1,256], index: 8, kind: input, shape index: {}]
  %s9 = inlined_call_operand.hbm [shape: f32[1,4096], index: 9, kind: input, shape index: {}]
  %s10 = inlined_call_operand.hbm [shape: bf16[1024,512], index: 10, kind: input, shape index: {}]
  %s11 = inlined_call_operand.hbm [shape: bf16[512,256], index: 11, kind: input, shape index: {}]
  %s12 = inlined_call_operand.hbm [shape: bf16[256,4096], index: 12, kind: input, shape index: {}]
  %s13 = inlined_call_operand.hbm [shape: f32[2,1,4096], index: 13, kind: output, shape index: {}]
  %s14 = sld [smem:[#allocation0]]
  $region121: #{tpu_custom_call.1} parent=0
    _
  %s16 = ssub.s32 1, %s14
  %s17 = scalar_select 0, %s16, %s14
  $region1: #{tpu_custom_call.1} parent=0
    #allocation7 [shape = 'u8[65536]{0}', space=vmem, size = 0x10000, scoped, tag = 'input window, operand 0']
    #allocation8 [shape = 's32[2]{0}', space=sflag, size = 0x8, scoped, tag = 'scoped memory for tpu_custom_call.1']
    #allocation9 [shape = 's32[2]{0}', space=sflag, size = 0x8, scoped, tag = 'scoped memory for tpu_custom_call.1']
    #allocation10 [shape = 'u8[16384]{0}', space=vmem, size = 0x4000, scoped, tag = 'input window, operand 1, single buffered']
    #allocation11 [shape = 's32[1]{0}', space=sflag, size = 0x4, scoped, tag = 'scoped memory for tpu_custom_call.1']
    #allocation12 [shape = 'u8[512]{0}', space=vmem, size = 0x400, scoped, tag = 'input window, operand 2, single buffered']
    #allocation13 [shape = 'u8[16384]{0}', space=vmem, size = 0x4000, scoped, tag = 'input window, operand 3, single buffered']
    #allocation14 [shape = 's32[1]{0}', space=sflag, size = 0x4, scoped, tag = 'scoped memory for tpu_custom_call.1']
    #allocation15 [shape = 'u8[512]{0}', space=vmem, size = 0x400, scoped, tag = 'input window, operand 4, single buffered']
    #allocation16 [shape = 'u8[262144]{0}', space=vmem, size = 0x40000, scoped, tag = 'input window, operand 5, single buffered']
    #allocation17 [shape = 's32[1]{0}', space=sflag, size = 0x4, scoped, tag = 'scoped memory for tpu_custom_call.1']
    #allocation18 [shape = 'u8[4096]{0}', space=vmem, size = 0x1000, scoped, tag = 'input window, operand 6, single buffered']
    #allocation19 [shape = 'u8[2048]{0}', space=vmem, size = 0x800, scoped, tag = 'input window, operand 7, single buffered']
    #allocation20 [shape = 's32[1]{0}', space=sflag, size = 0x4, scoped, tag = 'scoped memory for tpu_custom_call.1']
    #allocation21 [shape = 'u8[1024]{0}', space=vmem, size = 0x400, scoped, tag = 'input window, operand 8, single buffered']
    #allocation22 [shape = 'u8[16384]{0}', space=vmem, size = 0x4000, scoped, tag = 'input window, operand 9, single buffered']
    #allocation23 [shape = 's32[1]{0}', space=sflag, size = 0x4, scoped, tag = 'scoped memory for tpu_custom_call.1']
    #allocation24 [shape = 'u8[32768]{0}', space=vmem, size = 0x8000, scoped, tag = 'output window, operand 0']
    %18 = vsyncpa [#allocation8], 0
    %s19 = scalar_lea.sflag [#allocation8], 1
    %20 = vsyncpa %s19, 0
    %21 = vsyncpa [#allocation11], 0
    %22 = vsyncpa [#allocation14], 0
    %23 = vsyncpa [#allocation17], 0
    %24 = vsyncpa [#allocation20], 0
    %25 = vsyncpa [#allocation23], 0
    %26 = vsyncpa [#allocation9], 0
    %s27 = scalar_lea.sflag [#allocation9], 1
    %28 = vsyncpa %s27, 0
    loop: start=0, step=1, limit=6
    $region2: #{tpu_custom_call.1} parent=1 // loop_pre_header
      _
    $region3: #{tpu_custom_call.1} parent=1 // loop_header
      %s30 = sphi 0, %s34
      %p31 = scmp.ge.s32.totalorder %s30, 6
      %s37 = sphi 0, %s49
      %s38 = sphi 0, %s45
      %s39 = sphi 0, %s37
      %s40 = sphi 0, %s38
      %s41 = sphi 0, %s39
      %s42 = sphi 0, %s40
      %s54 = sphi 0, %s56
      %s57 = sphi 0, %s54
      %s58 = sphi 0, %s57
      %s74 = sphi 0, %s58
      %s78 = sphi 0, %s78
      %s80 = sphi 0, %s78
      %s81 = sphi 0, %s80
      %s95 = sphi 0, %s81
      %s99 = sphi 0, %s99
      %s101 = sphi 0, %s99
      %s102 = sphi 0, %s101
      %s116 = sphi 0, %s102
      %s120 = sphi 0, %s120
      %s122 = sphi 0, %s120
      %s123 = sphi 0, %s122
      %s137 = sphi 0, %s123
      %s141 = sphi 0, %s141
      %s143 = sphi 0, %s141
      %s144 = sphi 0, %s143
      %s158 = sphi 0, %s144
      %s162 = sphi 0, %s162
      %s164 = sphi 0, %s162
      %s165 = sphi 0, %s164
      %s179 = sphi 0, %s165
      %s183 = sphi 0, %s183
      %s185 = sphi 0, %s183
      %s186 = sphi 0, %s185
      %s200 = sphi 0, %s186
      %s204 = sphi 0, %s204
      %s206 = sphi 0, %s204
      %s207 = sphi 0, %s206
      %s221 = sphi 0, %s207
      %s225 = sphi 0, %s225
      %s227 = sphi 0, %s225
      %s228 = sphi 0, %s227
      %s242 = sphi 0, %s228
      %s246 = sphi 0, %s246
      %s248 = sphi 0, %s246
      %s249 = sphi 0, %s248
      %s263 = sphi 0, %s249
      %s269 = sphi 0, %s271
      %s272 = sphi 0, %s269
      %s273 = sphi 0, %s272
      %s289 = sphi 0, %s273
    $region4: #{tpu_custom_call.1} parent=1 // loop_header_branch
      %33 = sbr.rel (%p31) target = $region8
    $region5: #{tpu_custom_call.1} parent=1 // loop_body
      %s35 = ssub.s32 %s30, 1
      %s36 = ssub.s32 %s30, 2
      %s43 = sadd.s32 1, %s38
      %p44 = scmp.ge.s32.totalorder %s43, 2
      %s45 = scalar_select %p44, 0, %s43
      %s46 = sadd.s32 1, %s37
      %s47 = scalar_select %p44, %s46, %s37
      %p48 = scmp.ge.s32.totalorder %s47, 2
      %s49 = scalar_select %p48, 0, %s47
      %s50 = ssub.s32 %s37, %s49
      %s51 = ssub.s32 %s38, %s45
      %s52 = sor.u32 %s50, %s51
      %p53 = scmp.eq.s32.totalorder %s52, 0
      %s55 = sadd.s32 %s54, 1
      %s56 = scalar_select %p53, %s54, %s55
      %p59 = pneg %p53
      %p60 = scmp.eq.s32.totalorder %s30, 3
      %p61 = por %p59, %p60
      %p62 = scmp.ne.s32.totalorder %s54, %s57
      %p63 = scmp.eq.s32.totalorder %s30, 0
      %p64 = por %p62, %p63
      %p65 = scmp.ne.s32.totalorder %s54, %s57
      %p66 = scmp.eq.s32.totalorder %s35, 3
      %p67 = por %p65, %p66
      %p68 = scmp.ne.s32.totalorder %s57, %s58
      %p69 = scmp.eq.s32.totalorder %s35, 0
      %p70 = por %p68, %p69
      %p71 = scmp.ne.s32.totalorder %s57, %s58
      %p72 = scmp.eq.s32.totalorder %s36, 3
      %p73 = por %p71, %p72
      %p75 = scmp.ne.s32.totalorder %s58, %s74
      %p76 = scmp.eq.s32.totalorder %s36, 0
      %p77 = por %p75, %p76
      %s79 = sadd.s32 %s78, 1
      %p82 = scmp.eq.s32.totalorder %s30, 3
      %p83 = scmp.ne.s32.totalorder %s78, %s80
      %p84 = scmp.eq.s32.totalorder %s30, 0
      %p85 = por %p83, %p84
      %p86 = scmp.ne.s32.totalorder %s78, %s80
      %p87 = scmp.eq.s32.totalorder %s35, 3
      %p88 = por %p86, %p87
      %p89 = scmp.ne.s32.totalorder %s80, %s81
      %p90 = scmp.eq.s32.totalorder %s35, 0
      %p91 = por %p89, %p90
      %p92 = scmp.ne.s32.totalorder %s80, %s81
      %p93 = scmp.eq.s32.totalorder %s36, 3
      %p94 = por %p92, %p93
      %p96 = scmp.ne.s32.totalorder %s81, %s95
      %p97 = scmp.eq.s32.totalorder %s36, 0
      %p98 = por %p96, %p97
      %s100 = sadd.s32 %s99, 1
      %p103 = scmp.eq.s32.totalorder %s30, 3
      %p104 = scmp.ne.s32.totalorder %s99, %s101
      %p105 = scmp.eq.s32.totalorder %s30, 0
      %p106 = por %p104, %p105
      %p107 = scmp.ne.s32.totalorder %s99, %s101
      %p108 = scmp.eq.s32.totalorder %s35, 3
      %p109 = por %p107, %p108
      %p110 = scmp.ne.s32.totalorder %s101, %s102
      %p111 = scmp.eq.s32.totalorder %s35, 0
      %p112 = por %p110, %p111
      %p113 = scmp.ne.s32.totalorder %s101, %s102
      %p114 = scmp.eq.s32.totalorder %s36, 3
      %p115 = por %p113, %p114
      %p117 = scmp.ne.s32.totalorder %s102, %s116
      %p118 = scmp.eq.s32.totalorder %s36, 0
      %p119 = por %p117, %p118
      %s121 = sadd.s32 %s120, 1
      %p124 = scmp.eq.s32.totalorder %s30, 3
      %p125 = scmp.ne.s32.totalorder %s120, %s122
      %p126 = scmp.eq.s32.totalorder %s30, 0
      %p127 = por %p125, %p126
      %p128 = scmp.ne.s32.totalorder %s120, %s122
      %p129 = scmp.eq.s32.totalorder %s35, 3
      %p130 = por %p128, %p129
      %p131 = scmp.ne.s32.totalorder %s122, %s123
      %p132 = scmp.eq.s32.totalorder %s35, 0
      %p133 = por %p131, %p132
      %p134 = scmp.ne.s32.totalorder %s122, %s123
      %p135 = scmp.eq.s32.totalorder %s36, 3
      %p136 = por %p134, %p135
      %p138 = scmp.ne.s32.totalorder %s123, %s137
      %p139 = scmp.eq.s32.totalorder %s36, 0
      %p140 = por %p138, %p139
      %s142 = sadd.s32 %s141, 1
      %p145 = scmp.eq.s32.totalorder %s30, 3
      %p146 = scmp.ne.s32.totalorder %s141, %s143
      %p147 = scmp.eq.s32.totalorder %s30, 0
      %p148 = por %p146, %p147
      %p149 = scmp.ne.s32.totalorder %s141, %s143
      %p150 = scmp.eq.s32.totalorder %s35, 3
      %p151 = por %p149, %p150
      %p152 = scmp.ne.s32.totalorder %s143, %s144
      %p153 = scmp.eq.s32.totalorder %s35, 0
      %p154 = por %p152, %p153
      %p155 = scmp.ne.s32.totalorder %s143, %s144
      %p156 = scmp.eq.s32.totalorder %s36, 3
      %p157 = por %p155, %p156
      %p159 = scmp.ne.s32.totalorder %s144, %s158
      %p160 = scmp.eq.s32.totalorder %s36, 0
      %p161 = por %p159, %p160
      %s163 = sadd.s32 %s162, 1
      %p166 = scmp.eq.s32.totalorder %s30, 3
      %p167 = scmp.ne.s32.totalorder %s162, %s164
      %p168 = scmp.eq.s32.totalorder %s30, 0
      %p169 = por %p167, %p168
      %p170 = scmp.ne.s32.totalorder %s162, %s164
      %p171 = scmp.eq.s32.totalorder %s35, 3
      %p172 = por %p170, %p171
      %p173 = scmp.ne.s32.totalorder %s164, %s165
      %p174 = scmp.eq.s32.totalorder %s35, 0
      %p175 = por %p173, %p174
      %p176 = scmp.ne.s32.totalorder %s164, %s165
      %p177 = scmp.eq.s32.totalorder %s36, 3
      %p178 = por %p176, %p177
      %p180 = scmp.ne.s32.totalorder %s165, %s179
      %p181 = scmp.eq.s32.totalorder %s36, 0
      %p182 = por %p180, %p181
      %s184 = sadd.s32 %s183, 1
      %p187 = scmp.eq.s32.totalorder %s30, 3
      %p188 = scmp.ne.s32.totalorder %s183, %s185
      %p189 = scmp.eq.s32.totalorder %s30, 0
      %p190 = por %p188, %p189
      %p191 = scmp.ne.s32.totalorder %s183, %s185
      %p192 = scmp.eq.s32.totalorder %s35, 3
      %p193 = por %p191, %p192
      %p194 = scmp.ne.s32.totalorder %s185, %s186
      %p195 = scmp.eq.s32.totalorder %s35, 0
      %p196 = por %p194, %p195
      %p197 = scmp.ne.s32.totalorder %s185, %s186
      %p198 = scmp.eq.s32.totalorder %s36, 3
      %p199 = por %p197, %p198
      %p201 = scmp.ne.s32.totalorder %s186, %s200
      %p202 = scmp.eq.s32.totalorder %s36, 0
      %p203 = por %p201, %p202
      %s205 = sadd.s32 %s204, 1
      %p208 = scmp.eq.s32.totalorder %s30, 3
      %p209 = scmp.ne.s32.totalorder %s204, %s206
      %p210 = scmp.eq.s32.totalorder %s30, 0
      %p211 = por %p209, %p210
      %p212 = scmp.ne.s32.totalorder %s204, %s206
      %p213 = scmp.eq.s32.totalorder %s35, 3
      %p214 = por %p212, %p213
      %p215 = scmp.ne.s32.totalorder %s206, %s207
      %p216 = scmp.eq.s32.totalorder %s35, 0
      %p217 = por %p215, %p216
      %p218 = scmp.ne.s32.totalorder %s206, %s207
      %p219 = scmp.eq.s32.totalorder %s36, 3
      %p220 = por %p218, %p219
      %p222 = scmp.ne.s32.totalorder %s207, %s221
      %p223 = scmp.eq.s32.totalorder %s36, 0
      %p224 = por %p222, %p223
      %s226 = sadd.s32 %s225, 1
      %p229 = scmp.eq.s32.totalorder %s30, 3
      %p230 = scmp.ne.s32.totalorder %s225, %s227
      %p231 = scmp.eq.s32.totalorder %s30, 0
      %p232 = por %p230, %p231
      %p233 = scmp.ne.s32.totalorder %s225, %s227
      %p234 = scmp.eq.s32.totalorder %s35, 3
      %p235 = por %p233, %p234
      %p236 = scmp.ne.s32.totalorder %s227, %s228
      %p237 = scmp.eq.s32.totalorder %s35, 0
      %p238 = por %p236, %p237
      %p239 = scmp.ne.s32.totalorder %s227, %s228
      %p240 = scmp.eq.s32.totalorder %s36, 3
      %p241 = por %p239, %p240
      %p243 = scmp.ne.s32.totalorder %s228, %s242
      %p244 = scmp.eq.s32.totalorder %s36, 0
      %p245 = por %p243, %p244
      %s247 = sadd.s32 %s246, 1
      %p250 = scmp.eq.s32.totalorder %s30, 3
      %p251 = scmp.ne.s32.totalorder %s246, %s248
      %p252 = scmp.eq.s32.totalorder %s30, 0
      %p253 = por %p251, %p252
      %p254 = scmp.ne.s32.totalorder %s246, %s248
      %p255 = scmp.eq.s32.totalorder %s35, 3
      %p256 = por %p254, %p255
      %p257 = scmp.ne.s32.totalorder %s248, %s249
      %p258 = scmp.eq.s32.totalorder %s35, 0
      %p259 = por %p257, %p258
      %p260 = scmp.ne.s32.totalorder %s248, %s249
      %p261 = scmp.eq.s32.totalorder %s36, 3
      %p262 = por %p260, %p261
      %p264 = scmp.ne.s32.totalorder %s249, %s263
      %p265 = scmp.eq.s32.totalorder %s36, 0
      %p266 = por %p264, %p265
      %s267 = ssub.s32 %s37, %s49
      %p268 = scmp.eq.s32.totalorder %s267, 0
      %s270 = sadd.s32 %s269, 1
      %s271 = scalar_select %p268, %s269, %s270
      %p274 = pneg %p268
      %p275 = scmp.eq.s32.totalorder %s30, 3
      %p276 = por %p274, %p275
      %p277 = scmp.ne.s32.totalorder %s269, %s272
      %p278 = scmp.eq.s32.totalorder %s30, 0
      %p279 = por %p277, %p278
      %p280 = scmp.ne.s32.totalorder %s269, %s272
      %p281 = scmp.eq.s32.totalorder %s35, 3
      %p282 = por %p280, %p281
      %p283 = scmp.ne.s32.totalorder %s272, %s273
      %p284 = scmp.eq.s32.totalorder %s35, 0
      %p285 = por %p283, %p284
      %p286 = scmp.ne.s32.totalorder %s272, %s273
      %p287 = scmp.eq.s32.totalorder %s36, 3
      %p288 = por %p286, %p287
      %p290 = scmp.ne.s32.totalorder %s273, %s289
      %p291 = scmp.eq.s32.totalorder %s36, 0
      %p292 = por %p290, %p291
      %p293 = scmp.le.s32.totalorder 1, %s30
      %p294 = scmp.lt.s32.totalorder %s30, 5
      %p295 = pnand %p293, %p294
      %p296 = pneg %p295
      // Predicated region
      $region9: #{tpu_custom_call.1} parent=5 // pred_check
        _
      $region10: #{tpu_custom_call.1} parent=5 // pred_check_branch
        %298 = sbr.rel (%p295) target = $region12
      $region11: #{tpu_custom_call.1} parent=5 // pred_region
        %s299 = ssub.s32 %s30, 1
        // Predicated region
        $region13: #{tpu_custom_call.1} parent=11 // pred_check
          %p300 = pneg %p91
        $region14: #{tpu_custom_call.1} parent=11 // pred_check_branch
          %302 = sbr.rel (%p300) target = $region16
        $region15: #{tpu_custom_call.1} parent=11 // pred_region
          %s304 = ssub.s32 512, 512
          %305 = vsyncadd [#allocation11], %s304
          %s306 = sshll.u32 [#allocation10], 4
          %s307 = int_to_ptr.vmem [resolvable:$true] %s306
          %312 = dma.hbm_to_vmem [thread:$0]  %s1, 512, %s307, [#allocation11], 64, 64, 4
        $region16: #{tpu_custom_call.1} parent=11 // pred_fallthru
          _
        // Predicated region
        $region17: #{tpu_custom_call.1} parent=11 // pred_check
          %p313 = pneg %p112
        $region18: #{tpu_custom_call.1} parent=11 // pred_check_branch
          %315 = sbr.rel (%p313) target = $region20
        $region19: #{tpu_custom_call.1} parent=11 // pred_region
          %s317 = ssub.s32 16, 16
          %318 = vsyncadd [#allocation11], %s317
          %s320 = sshll.u32 [#allocation12], 4
          %s321 = int_to_ptr.vmem [resolvable:$true] %s320
          %323 = dma.hbm_to_vmem [thread:$0]  %s2, 16, %s321, [#allocation11]
        $region20: #{tpu_custom_call.1} parent=11 // pred_fallthru
          _
        // Predicated region
        $region21: #{tpu_custom_call.1} parent=11 // pred_check
          %p324 = pneg %p133
        $region22: #{tpu_custom_call.1} parent=11 // pred_check_branch
          %326 = sbr.rel (%p324) target = $region24
        $region23: #{tpu_custom_call.1} parent=11 // pred_region
          %s328 = ssub.s32 512, 512
          %329 = vsyncadd [#allocation14], %s328
          %s330 = sshll.u32 [#allocation13], 4
          %s331 = int_to_ptr.vmem [resolvable:$true] %s330
          %336 = dma.hbm_to_vmem [thread:$0]  %s3, 512, %s331, [#allocation14], 64, 64, 4
        $region24: #{tpu_custom_call.1} parent=11 // pred_fallthru
          _
        // Predicated region
        $region25: #{tpu_custom_call.1} parent=11 // pred_check
          %p337 = pneg %p154
        $region26: #{tpu_custom_call.1} parent=11 // pred_check_branch
          %339 = sbr.rel (%p337) target = $region28
        $region27: #{tpu_custom_call.1} parent=11 // pred_region
          %s341 = ssub.s32 16, 16
          %342 = vsyncadd [#allocation14], %s341
          %s344 = sshll.u32 [#allocation15], 4
          %s345 = int_to_ptr.vmem [resolvable:$true] %s344
          %347 = dma.hbm_to_vmem [thread:$0]  %s4, 16, %s345, [#allocation14]
        $region28: #{tpu_custom_call.1} parent=11 // pred_fallthru
          _
        // Predicated region
        $region29: #{tpu_custom_call.1} parent=11 // pred_check
          %p348 = pneg %p175
        $region30: #{tpu_custom_call.1} parent=11 // pred_check_branch
          %350 = sbr.rel (%p348) target = $region32
        $region31: #{tpu_custom_call.1} parent=11 // pred_region
          %s352 = ssub.s32 8192, 8192
          %353 = vsyncadd [#allocation17], %s352
          %s354 = sshll.u32 [#allocation16], 4
          %s355 = int_to_ptr.vmem [resolvable:$true] %s354
          %360 = dma.hbm_to_vmem [thread:$0]  %s5, 8192, %s355, [#allocation17], 512, 512, 32
        $region32: #{tpu_custom_call.1} parent=11 // pred_fallthru
          _
        // Predicated region
        $region33: #{tpu_custom_call.1} parent=11 // pred_check
          %p361 = pneg %p196
        $region34: #{tpu_custom_call.1} parent=11 // pred_check_branch
          %363 = sbr.rel (%p361) target = $region36
        $region35: #{tpu_custom_call.1} parent=11 // pred_region
          %s365 = ssub.s32 128, 128
          %366 = vsyncadd [#allocation17], %s365
          %s368 = sshll.u32 [#allocation18], 4
          %s369 = int_to_ptr.vmem [resolvable:$true] %s368
          %371 = dma.hbm_to_vmem [thread:$0]  %s6, 128, %s369, [#allocation17]
        $region36: #{tpu_custom_call.1} parent=11 // pred_fallthru
          _
        // Predicated region
        $region37: #{tpu_custom_call.1} parent=11 // pred_check
          %p372 = pneg %p217
        $region38: #{tpu_custom_call.1} parent=11 // pred_check_branch
          %374 = sbr.rel (%p372) target = $region40
        $region39: #{tpu_custom_call.1} parent=11 // pred_region
          %s376 = ssub.s32 64, 64
          %377 = vsyncadd [#allocation20], %s376
          %s379 = sshll.u32 [#allocation19], 4
          %s380 = int_to_ptr.vmem [resolvable:$true] %s379
          %382 = dma.hbm_to_vmem [thread:$0]  %s7, 64, %s380, [#allocation20]
        $region40: #{tpu_custom_call.1} parent=11 // pred_fallthru
          _
        // Predicated region
        $region41: #{tpu_custom_call.1} parent=11 // pred_check
          %p383 = pneg %p238
        $region42: #{tpu_custom_call.1} parent=11 // pred_check_branch
          %385 = sbr.rel (%p383) target = $region44
        $region43: #{tpu_custom_call.1} parent=11 // pred_region
          %s387 = ssub.s32 32, 32
          %388 = vsyncadd [#allocation20], %s387
          %s390 = sshll.u32 [#allocation21], 4
          %s391 = int_to_ptr.vmem [resolvable:$true] %s390
          %393 = dma.hbm_to_vmem [thread:$0]  %s8, 32, %s391, [#allocation20]
        $region44: #{tpu_custom_call.1} parent=11 // pred_fallthru
          _
        // Predicated region
        $region45: #{tpu_custom_call.1} parent=11 // pred_check
          %p394 = pneg %p259
        $region46: #{tpu_custom_call.1} parent=11 // pred_check_branch
          %396 = sbr.rel (%p394) target = $region48
        $region47: #{tpu_custom_call.1} parent=11 // pred_region
          %s398 = ssub.s32 512, 512
          %399 = vsyncadd [#allocation23], %s398
          %s401 = sshll.u32 [#allocation22], 4
          %s402 = int_to_ptr.vmem [resolvable:$true] %s401
          %404 = dma.hbm_to_vmem [thread:$0]  %s9, 512, %s402, [#allocation23]
        $region48: #{tpu_custom_call.1} parent=11 // pred_fallthru
          _
      $region12: #{tpu_custom_call.1} parent=5 // pred_fallthru
        _
      %p405 = scmp.lt.s32.totalorder %s30, 4
      // Predicated region
      $region49: #{tpu_custom_call.1} parent=5 // pred_check
        %p406 = pneg %p405
      $region50: #{tpu_custom_call.1} parent=5 // pred_check_branch
        %408 = sbr.rel (%p406) target = $region52
      $region51: #{tpu_custom_call.1} parent=5 // pred_region
        // Predicated region
        $region53: #{tpu_custom_call.1} parent=51 // pred_check
          %p409 = pneg %p64
        $region54: #{tpu_custom_call.1} parent=51 // pred_check_branch
          %411 = sbr.rel (%p409) target = $region56
        $region55: #{tpu_custom_call.1} parent=51 // pred_region
          %s412 = sand.u32 %s54, 1
          %s413 = scalar_lea.sflag [#allocation8], %s412
          %s414 = sand.u32 %s54, 1
          %s415 = smul.addr %s414, 64
          %s416 = scalar_lea.vmem [#allocation7], %s415
          %s418 = ssub.s32 1024, 1024
          %419 = vsyncadd %s413, %s418
          %s420 = smul.addr %s37, 16
          %s421 = sadd.s32 %s38, %s420
          %s422 = smul.addr %s421, 128
          %s423 = scalar_lea.hbm %s0, %s422
          %s424 = sshll.u32 %s416, 4
          %s425 = int_to_ptr.vmem [resolvable:$true] %s424
          %430 = dma.hbm_to_vmem [thread:$0]  %s423, 1024, %s425, %s413, 256, 128, 8
        $region56: #{tpu_custom_call.1} parent=51 // pred_fallthru
          _
      $region52: #{tpu_custom_call.1} parent=5 // pred_fallthru
        _
      %p431 = scmp.le.s32.totalorder 1, %s30
      %p432 = scmp.lt.s32.totalorder %s30, 5
      %p433 = pnand %p431, %p432
      %p434 = pneg %p433
      // Predicated region
      $region57: #{tpu_custom_call.1} parent=5 // pred_check
        _
      $region58: #{tpu_custom_call.1} parent=5 // pred_check_branch
        %436 = sbr.rel (%p433) target = $region60
      $region59: #{tpu_custom_call.1} parent=5 // pred_region
        %s437 = ssub.s32 %s30, 1
        %s438 = sand.u32 %s57, 1
        %s439 = scalar_lea.sflag [#allocation8], %s438
        %s440 = sand.u32 %s57, 1
        %s441 = smul.addr %s440, 64
        %s442 = scalar_lea.vmem [#allocation7], %s441
        // Predicated region
        $region61: #{tpu_custom_call.1} parent=59 // pred_check
          %p443 = pneg %p70
        $region62: #{tpu_custom_call.1} parent=59 // pred_check_branch
          %445 = sbr.rel (%p443) target = $region64
        $region63: #{tpu_custom_call.1} parent=59 // pred_region
          %446 = dma.done %s439, 1024
        $region64: #{tpu_custom_call.1} parent=59 // pred_fallthru
          _
        // Predicated region
        $region65: #{tpu_custom_call.1} parent=59 // pred_check
          %p447 = pneg %p91
        $region66: #{tpu_custom_call.1} parent=59 // pred_check_branch
          %449 = sbr.rel (%p447) target = $region68
        $region67: #{tpu_custom_call.1} parent=59 // pred_region
          %450 = dma.done [#allocation11], 512
        $region68: #{tpu_custom_call.1} parent=59 // pred_fallthru
          _
        // Predicated region
        $region69: #{tpu_custom_call.1} parent=59 // pred_check
          %p451 = pneg %p112
        $region70: #{tpu_custom_call.1} parent=59 // pred_check_branch
          %453 = sbr.rel (%p451) target = $region72
        $region71: #{tpu_custom_call.1} parent=59 // pred_region
          %454 = dma.done [#allocation11], 16
        $region72: #{tpu_custom_call.1} parent=59 // pred_fallthru
          _
        // Predicated region
        $region73: #{tpu_custom_call.1} parent=59 // pred_check
          %p455 = pneg %p133
        $region74: #{tpu_custom_call.1} parent=59 // pred_check_branch
          %457 = sbr.rel (%p455) target = $region76
        $region75: #{tpu_custom_call.1} parent=59 // pred_region
          %458 = dma.done [#allocation14], 512
        $region76: #{tpu_custom_call.1} parent=59 // pred_fallthru
          _
        // Predicated region
        $region77: #{tpu_custom_call.1} parent=59 // pred_check
          %p459 = pneg %p154
        $region78: #{tpu_custom_call.1} parent=59 // pred_check_branch
          %461 = sbr.rel (%p459) target = $region80
        $region79: #{tpu_custom_call.1} parent=59 // pred_region
          %462 = dma.done [#allocation14], 16
        $region80: #{tpu_custom_call.1} parent=59 // pred_fallthru
          _
        // Predicated region
        $region81: #{tpu_custom_call.1} parent=59 // pred_check
          %p463 = pneg %p175
        $region82: #{tpu_custom_call.1} parent=59 // pred_check_branch
          %465 = sbr.rel (%p463) target = $region84
        $region83: #{tpu_custom_call.1} parent=59 // pred_region
          %466 = dma.done [#allocation17], 8192
        $region84: #{tpu_custom_call.1} parent=59 // pred_fallthru
          _
        // Predicated region
        $region85: #{tpu_custom_call.1} parent=59 // pred_check
          %p467 = pneg %p196
        $region86: #{tpu_custom_call.1} parent=59 // pred_check_branch
          %469 = sbr.rel (%p467) target = $region88
        $region87: #{tpu_custom_call.1} parent=59 // pred_region
          %470 = dma.done [#allocation17], 128
        $region88: #{tpu_custom_call.1} parent=59 // pred_fallthru
          _
        // Predicated region
        $region89: #{tpu_custom_call.1} parent=59 // pred_check
          %p471 = pneg %p217
        $region90: #{tpu_custom_call.1} parent=59 // pred_check_branch
          %473 = sbr.rel (%p471) target = $region92
        $region91: #{tpu_custom_call.1} parent=59 // pred_region
          %474 = dma.done [#allocation20], 64
        $region92: #{tpu_custom_call.1} parent=59 // pred_fallthru
          _
        // Predicated region
        $region93: #{tpu_custom_call.1} parent=59 // pred_check
          %p475 = pneg %p238
        $region94: #{tpu_custom_call.1} parent=59 // pred_check_branch
          %477 = sbr.rel (%p475) target = $region96
        $region95: #{tpu_custom_call.1} parent=59 // pred_region
          %478 = dma.done [#allocation20], 32
        $region96: #{tpu_custom_call.1} parent=59 // pred_fallthru
          _
        // Predicated region
        $region97: #{tpu_custom_call.1} parent=59 // pred_check
          %p479 = pneg %p259
        $region98: #{tpu_custom_call.1} parent=59 // pred_check_branch
          %481 = sbr.rel (%p479) target = $region100
        $region99: #{tpu_custom_call.1} parent=59 // pred_region
          %482 = dma.done [#allocation23], 512
        $region100: #{tpu_custom_call.1} parent=59 // pred_fallthru
          _
        %s483 = sand.u32 %s57, 1
        %s484 = scalar_lea.sflag [#allocation8], %s483
        %s485 = sand.u32 %s57, 1
        %s486 = smul.addr %s485, 64
        %s487 = scalar_lea.vmem [#allocation7], %s486
        %p488 = pneg %p70
        %p489 = pneg %p67
        %p490 = pneg %p91
        %p491 = pneg %p88
        %p492 = pneg %p112
        %p493 = pneg %p109
        %p494 = pneg %p133
        %p495 = pneg %p130
        %p496 = pneg %p154
        %p497 = pneg %p151
        %p498 = pneg %p175
        %p499 = pneg %p172
        %p500 = pneg %p196
        %p501 = pneg %p193
        %p502 = pneg %p217
        %p503 = pneg %p214
        %p504 = pneg %p238
        %p505 = pneg %p235
        %p506 = pneg %p259
        %p507 = pneg %p256
        %p508 = pneg %p285
        %p509 = pneg %p282
        %s510 = sand.u32 %s272, 1
        %s511 = scalar_lea.sflag [#allocation9], %s510
        %s512 = sand.u32 %s272, 1
        %s513 = smul.addr %s512, 32
        %s514 = scalar_lea.vmem [#allocation24], %s513
        %p516 = scmp.eq.s32.totalorder %s40, 0
        // Predicated region
        $region101: #{tpu_custom_call.1} parent=59 // pred_check
          %p517 = pneg %p516
        $region102: #{tpu_custom_call.1} parent=59 // pred_check_branch
          %519 = sbr.rel (%p517) target = $region104
        $region103: #{tpu_custom_call.1} parent=59 // pred_region
          #allocation26 [shape = 'u32[9]{0}', space=smem, size = 0x24, scoped, tag = 'DMA stride descriptor']
          #allocation28 [shape = 'u32[9]{0}', space=smem, size = 0x24, scoped, tag = 'DMA stride descriptor']
          #allocation30 [shape = 'u32[9]{0}', space=smem, size = 0x24, scoped, tag = 'DMA stride descriptor']
          %520 = vst [vmem:[#allocation2] sm:$0xff] 0.0
          %s522 = sshll.u32 1, 14
          %s523 = sxor.u32 4294967295, %s522
          %s525 = sld [smem:[#allocation0]]
          %s526 = sadd.s32 2, %s525
          %s528 = sshll.u32 7, 26
          %s529 = sxor.u32 4294967295, %s528
          %s530 = sand.u32 0, %s529
          %s531 = sshll.u32 %s526, 26
          %s532 = sor.u32 %s530, %s531
          %s533 = sshll.u32 [#allocation3], 4
          %s534 = int_to_ptr.vmem [resolvable:$true] %s533
          %537 = sst [smem:[#allocation26]] 512
          %s538 = scalar_lea.smem [#allocation26], 1
          %539 = sst [smem:[%s538]] 512
          %s540 = scalar_lea.smem [#allocation26], 2
          %541 = sst [smem:[%s540]] 4
          %s542 = scalar_lea.smem [#allocation26], 3
          %543 = sst [smem:[%s542]] 64
          %s544 = scalar_lea.smem [#allocation26], 4
          %545 = sst [smem:[%s544]] 128
          %s546 = scalar_lea.smem [#allocation26], 5
          %547 = sst [smem:[%s546]] 2
          %s548 = scalar_lea.smem [#allocation26], 6
          %549 = sst [smem:[%s548]] 256
          %s550 = scalar_lea.smem [#allocation26], 7
          %551 = sst [smem:[%s550]] 64
          %s552 = scalar_lea.smem [#allocation26], 8
          %553 = sst [smem:[%s552]] 4
          %555 = dma.general %s10, 32768, %s534, [#allocation6], [#allocation25], [#allocation26], %s532, 0
          %s556 = scalar_lea.sflag [#allocation6], 1
          %s558 = sshll.u32 1, 14
          %s559 = sxor.u32 4294967295, %s558
          %s561 = sadd.s32 2, %s525
          %s563 = sshll.u32 7, 26
          %s564 = sxor.u32 4294967295, %s563
          %s565 = sand.u32 0, %s564
          %s566 = sshll.u32 %s561, 26
          %s567 = sor.u32 %s565, %s566
          %s568 = sshll.u32 [#allocation4], 4
          %s569 = int_to_ptr.vmem [resolvable:$true] %s568
          %572 = sst [smem:[#allocation28]] 256
          %s573 = scalar_lea.smem [#allocation28], 1
          %574 = sst [smem:[%s573]] 256
          %s575 = scalar_lea.smem [#allocation28], 2
          %576 = sst [smem:[%s575]] 2
          %s577 = scalar_lea.smem [#allocation28], 3
          %578 = sst [smem:[%s577]] 64
          %s579 = scalar_lea.smem [#allocation28], 4
          %580 = sst [smem:[%s579]] 128
          %s581 = scalar_lea.smem [#allocation28], 5
          %582 = sst [smem:[%s581]] 2
          %s583 = scalar_lea.smem [#allocation28], 6
          %584 = sst [smem:[%s583]] 128
          %s585 = scalar_lea.smem [#allocation28], 7
          %586 = sst [smem:[%s585]] 64
          %s587 = scalar_lea.smem [#allocation28], 8
          %588 = sst [smem:[%s587]] 4
          %590 = dma.general %s11, 8192, %s569, %s556, [#allocation27], [#allocation28], %s567, 0
          %s591 = scalar_lea.sflag [#allocation6], 2
          %s593 = sshll.u32 1, 14
          %s594 = sxor.u32 4294967295, %s593
          %s596 = sadd.s32 2, %s525
          %s598 = sshll.u32 7, 26
          %s599 = sxor.u32 4294967295, %s598
          %s600 = sand.u32 0, %s599
          %s601 = sshll.u32 %s596, 26
          %s602 = sor.u32 %s600, %s601
          %s603 = sshll.u32 [#allocation5], 4
          %s604 = int_to_ptr.vmem [resolvable:$true] %s603
          %607 = sst [smem:[#allocation30]] 4096
          %s608 = scalar_lea.smem [#allocation30], 1
          %609 = sst [smem:[%s608]] 4096
          %s610 = scalar_lea.smem [#allocation30], 2
          %611 = sst [smem:[%s610]] 32
          %s612 = scalar_lea.smem [#allocation30], 3
          %613 = sst [smem:[%s612]] 64
          %s614 = scalar_lea.smem [#allocation30], 4
          %615 = sst [smem:[%s614]] 128
          %s616 = scalar_lea.smem [#allocation30], 5
          %617 = sst [smem:[%s616]] 2
          %s618 = scalar_lea.smem [#allocation30], 6
          %619 = sst [smem:[%s618]] 2048
          %s620 = scalar_lea.smem [#allocation30], 7
          %621 = sst [smem:[%s620]] 64
          %s622 = scalar_lea.smem [#allocation30], 8
          %623 = sst [smem:[%s622]] 4
          %625 = dma.general %s12, 65536, %s604, %s591, [#allocation29], [#allocation30], %s602, 0
        $region104: #{tpu_custom_call.1} parent=59 // pred_fallthru
          _
        %v626 = vld [vmem:[%s442] sm:$0xff]
        %v627 = vld [vmem:[%s442 + $0x8] sm:$0xff]
        %v628 = vld [vmem:[%s442 + $0x10] sm:$0xff]
        %v629 = vld [vmem:[%s442 + $0x18] sm:$0xff]
        %v630 = vld [vmem:[%s442 + $0x20] sm:$0xff]
        %v631 = vld [vmem:[%s442 + $0x28] sm:$0xff]
        %v632 = vld [vmem:[%s442 + $0x30] sm:$0xff]
        %v633 = vld [vmem:[%s442 + $0x38] sm:$0xff]
        %634 = vxpose.xlu0.b32.start [1/16] %v626, 128
        %635 = vxpose.xlu0.b32.cont [2/16] %v627, 128
        %636 = vxpose.xlu0.b32.cont [3/16] %v628, 128
        %637 = vxpose.xlu0.b32.cont [4/16] %v629, 128
        %638 = vxpose.xlu0.b32.cont [5/16] %v630, 128
        %639 = vxpose.xlu0.b32.cont [6/16] %v631, 128
        %640 = vxpose.xlu0.b32.cont [7/16] %v632, 128
        %641 = vxpose.xlu0.b32.cont [8/16] %v633, 128
        %642 = vxpose.xlu0.b32.cont [9/16] 0.0, 128
        %643 = vxpose.xlu0.b32.cont [10/16] 0.0, 128
        %644 = vxpose.xlu0.b32.cont [11/16] 0.0, 128
        %645 = vxpose.xlu0.b32.cont [12/16] 0.0, 128
        %646 = vxpose.xlu0.b32.cont [13/16] 0.0, 128
        %647 = vxpose.xlu0.b32.cont [14/16] 0.0, 128
        %648 = vxpose.xlu0.b32.cont [15/16] 0.0, 128
        %649 = vxpose.xlu0.b32.end [16/16] 0.0, 128
        %v650 = vpop.trf.xlu0
        %v651 = vpop.trf.xlu0
        %v652 = vpop.trf.xlu0
        %v653 = vpop.trf.xlu0
        %v654 = vpop.trf.xlu0
        %v655 = vpop.trf.xlu0
        %v656 = vpop.trf.xlu0
        %v657 = vpop.trf.xlu0
        %v658 = vpop.trf.xlu0
        %v659 = vpop.trf.xlu0
        %v660 = vpop.trf.xlu0
        %v661 = vpop.trf.xlu0
        %v662 = vpop.trf.xlu0
        %v663 = vpop.trf.xlu0
        %v664 = vpop.trf.xlu0
        %v665 = vpop.trf.xlu0
        %v666 = vpack.c.bf16 %v651, %v650
        %v667 = vpack.c.bf16 %v653, %v652
        %v668 = vpack.c.bf16 %v655, %v654
        %v669 = vpack.c.bf16 %v657, %v656
        %v670 = vpack.c.bf16 %v659, %v658
        %v671 = vpack.c.bf16 %v661, %v660
        %v672 = vpack.c.bf16 %v663, %v662
        %v673 = vpack.c.bf16 %v665, %v664
        %v674 = vld [vmem:[#allocation10] sm:$0xf]
        %v675 = vld [vmem:[#allocation10 + $0x4] sm:$0xf]
        %v676 = vld [vmem:[#allocation10 + $0x8] sm:$0xf]
        %v677 = vld [vmem:[#allocation10 + $0xc] sm:$0xf]
        %v678 = vld [vmem:[#allocation10 + $0x10] sm:$0xf]
        %v679 = vld [vmem:[#allocation10 + $0x14] sm:$0xf]
        %v680 = vld [vmem:[#allocation10 + $0x18] sm:$0xf]
        %v681 = vld [vmem:[#allocation10 + $0x1c] sm:$0xf]
        %v682 = vld [vmem:[#allocation12] sm:$0x1]
        %v684 = vlaneseq
        %v685 = vshrl.u32 %v684, 7
        %v686 = vsub.s32 0, %v685
        %v687 = vrot.slane %v682, %v686
        %v697 = vunpack.c.l.b16 %v674
        %v698 = vunpack.c.l.b16 %v675
        %v699 = vunpack.c.l.b16 %v676
        %v700 = vunpack.c.l.b16 %v677
        %v701 = vunpack.c.l.b16 %v678
        %v702 = vunpack.c.l.b16 %v679
        %v703 = vunpack.c.l.b16 %v680
        %v704 = vunpack.c.l.b16 %v681
        %v705 = vpack.c.b16 %v698, %v697
        %v706 = vpack.c.b16 %v700, %v699
        %v707 = vpack.c.b16 %v702, %v701
        %v708 = vpack.c.b16 %v704, %v703
        %vm713 = vcmask 523264
        %v715 = vsel %vm713, %v666, 0
        %v718 = vsel %vm713, %v667, 0
        %v721 = vsel %vm713, %v668, 0
        %v724 = vsel %vm713, %v669, 0
        %v727 = vsel %vm713, %v670, 0
        %v730 = vsel %vm713, %v671, 0
        %v733 = vsel %vm713, %v672, 0
        %v736 = vsel %vm713, %v673, 0
        %738 = vmatprep.subr.bf16.mxu0 0
        %739 = vmatpush1.bf16.msra.mxu0 %v705
        %740 = vmatprep.subr.bf16.mxu0 0
        %741 = vmatpush1.bf16.msra.mxu0 %v706
        %742 = vmatprep.subr.bf16.mxu0 0
        %743 = vmatpush1.bf16.msra.mxu0 %v707
        %744 = vmatprep.subr.bf16.mxu0 0
        %745 = vmatpush1.bf16.msra.mxu0 %v708
        %746 = vmatprep.subr.bf16.mxu0 0
        %747 = vmatpush1.bf16.msra.mxu0 0
        %748 = vmatprep.subr.bf16.mxu0 0
        %749 = vmatpush1.bf16.msra.mxu0 0
        %750 = vmatprep.subr.bf16.mxu0 0
        %751 = vmatpush1.bf16.msra.mxu0 0
        %752 = vmatprep.subr.bf16.mxu0 0
        %753 = vmatpush1.bf16.msra.mxu0 0
        %754 = vmatprep.subr.bf16.mxu0 0
        %755 = vmatpush1.bf16.msra.mxu0 0
        %756 = vmatprep.subr.bf16.mxu0 0
        %757 = vmatpush1.bf16.msra.mxu0 0
        %758 = vmatprep.subr.bf16.mxu0 0
        %759 = vmatpush1.bf16.msra.mxu0 0
        %760 = vmatprep.subr.bf16.mxu0 0
        %761 = vmatpush1.bf16.msra.mxu0 0
        %762 = vmatprep.subr.bf16.mxu0 0
        %763 = vmatpush1.bf16.msra.mxu0 0
        %764 = vmatprep.subr.bf16.mxu0 0
        %765 = vmatpush1.bf16.msra.mxu0 0
        %766 = vmatprep.subr.bf16.mxu0 0
        %767 = vmatpush1.bf16.msra.mxu0 0
        %768 = vmatprep.subr.bf16.mxu0 0
        %769 = vmatpush1.bf16.msra.mxu0 0
        %770 = vmatprep.mubr.bf16.mxu0 0
        %771 = vmatmul.mubr.bf16.gmra.mrb[0].mxu0 %v715
        %v772 = vpop.f32.mrb[0].mxu0
        %v773 = vadd.f32 %v687, %v772
        %v774 = vpop.f32.mrb[0].mxu0
        %v775 = vpop.f32.mrb[0].mxu0
        %v776 = vadd.f32 %v687, %v775
        %v777 = vpop.f32.mrb[0].mxu0
        %778 = vmatprep.mubr.bf16.mxu0 0
        %779 = vmatmul.mubr.bf16.gmra.mrb[0].mxu0 %v718
        %v780 = vpop.f32.mrb[0].mxu0
        %v781 = vadd.f32 %v687, %v780
        %v782 = vpop.f32.mrb[0].mxu0
        %v783 = vpop.f32.mrb[0].mxu0
        %v784 = vadd.f32 %v687, %v783
        %v785 = vpop.f32.mrb[0].mxu0
        %786 = vmatprep.mubr.bf16.mxu0 0
        %787 = vmatmul.mubr.bf16.gmra.mrb[0].mxu0 %v721
        %v788 = vpop.f32.mrb[0].mxu0
        %v789 = vadd.f32 %v687, %v788
        %v790 = vpop.f32.mrb[0].mxu0
        %v791 = vpop.f32.mrb[0].mxu0
        %v792 = vadd.f32 %v687, %v791
        %v793 = vpop.f32.mrb[0].mxu0
        %794 = vmatprep.mubr.bf16.mxu0 0
        %795 = vmatmul.mubr.bf16.gmra.mrb[0].mxu0 %v724
        %v796 = vpop.f32.mrb[0].mxu0
        %v797 = vadd.f32 %v687, %v796
        %v798 = vpop.f32.mrb[0].mxu0
        %v799 = vpop.f32.mrb[0].mxu0
        %v800 = vadd.f32 %v687, %v799
        %v801 = vpop.f32.mrb[0].mxu0
        %802 = vmatprep.mubr.bf16.mxu0 0
        %803 = vmatmul.mubr.bf16.gmra.mrb[0].mxu0 %v727
        %v804 = vpop.f32.mrb[0].mxu0
        %v805 = vadd.f32 %v687, %v804
        %v806 = vpop.f32.mrb[0].mxu0
        %v807 = vpop.f32.mrb[0].mxu0
        %v808 = vadd.f32 %v687, %v807
        %v809 = vpop.f32.mrb[0].mxu0
        %810 = vmatprep.mubr.bf16.mxu0 0
        %811 = vmatmul.mubr.bf16.gmra.mrb[0].mxu0 %v730
        %v812 = vpop.f32.mrb[0].mxu0
        %v813 = vadd.f32 %v687, %v812
        %v814 = vpop.f32.mrb[0].mxu0
        %v815 = vpop.f32.mrb[0].mxu0
        %v816 = vadd.f32 %v687, %v815
        %v817 = vpop.f32.mrb[0].mxu0
        %818 = vmatprep.mubr.bf16.mxu0 0
        %819 = vmatmul.mubr.bf16.gmra.mrb[0].mxu0 %v733
        %v820 = vpop.f32.mrb[0].mxu0
        %v821 = vadd.f32 %v687, %v820
        %v822 = vpop.f32.mrb[0].mxu0
        %v823 = vpop.f32.mrb[0].mxu0
        %v824 = vadd.f32 %v687, %v823
        %v825 = vpop.f32.mrb[0].mxu0
        %826 = vmatprep.mubr.bf16.mxu0 0
        %827 = vmatmul.mubr.bf16.gmra.mrb[0].mxu0 %v736
        %v828 = vpop.f32.mrb[0].mxu0
        %v829 = vadd.f32 %v687, %v828
        %v830 = vpop.f32.mrb[0].mxu0
        %v831 = vpop.f32.mrb[0].mxu0
        %v832 = vadd.f32 %v687, %v831
        %v833 = vpop.f32.mrb[0].mxu0
        %834 = vdwg.mxu0
        %v835 = vmax.f32 %v773, 0.0
        %v836 = vmax.f32 %v776, 0.0
        %v837 = vmax.f32 %v781, 0.0
        %v838 = vmax.f32 %v784, 0.0
        %v839 = vmax.f32 %v789, 0.0
        %v840 = vmax.f32 %v792, 0.0
        %v841 = vmax.f32 %v797, 0.0
        %v842 = vmax.f32 %v800, 0.0
        %v843 = vmax.f32 %v805, 0.0
        %v844 = vmax.f32 %v808, 0.0
        %v845 = vmax.f32 %v813, 0.0
        %v846 = vmax.f32 %v816, 0.0
        %v847 = vmax.f32 %v821, 0.0
        %v848 = vmax.f32 %v824, 0.0
        %v849 = vmax.f32 %v829, 0.0
        %v850 = vmax.f32 %v832, 0.0
        %v851 = vpack.c.bf16 %v836, %v835
        %v852 = vpack.c.bf16 %v838, %v837
        %v853 = vpack.c.bf16 %v840, %v839
        %v854 = vpack.c.bf16 %v842, %v841
        %v855 = vpack.c.bf16 %v844, %v843
        %v856 = vpack.c.bf16 %v846, %v845
        %v857 = vpack.c.bf16 %v848, %v847
        %v858 = vpack.c.bf16 %v850, %v849
        %v859 = vld [vmem:[#allocation13] sm:$0xf]
        %v860 = vld [vmem:[#allocation13 + $0x4] sm:$0xf]
        %v861 = vld [vmem:[#allocation13 + $0x8] sm:$0xf]
        %v862 = vld [vmem:[#allocation13 + $0xc] sm:$0xf]
        %v863 = vld [vmem:[#allocation13 + $0x10] sm:$0xf]
        %v864 = vld [vmem:[#allocation13 + $0x14] sm:$0xf]
        %v865 = vld [vmem:[#allocation13 + $0x18] sm:$0xf]
        %v866 = vld [vmem:[#allocation13 + $0x1c] sm:$0xf]
        %v867 = vld [vmem:[#allocation15] sm:$0x1]
        %v869 = vlaneseq
        %v870 = vshrl.u32 %v869, 7
        %v871 = vsub.s32 0, %v870
        %v872 = vrot.slane %v867, %v871
        %v882 = vunpack.c.l.b16 %v859
        %v883 = vunpack.c.l.b16 %v860
        %v884 = vunpack.c.l.b16 %v861
        %v885 = vunpack.c.l.b16 %v862
        %v886 = vunpack.c.l.b16 %v863
        %v887 = vunpack.c.l.b16 %v864
        %v888 = vunpack.c.l.b16 %v865
        %v889 = vunpack.c.l.b16 %v866
        %v890 = vpack.c.b16 %v883, %v882
        %v891 = vpack.c.b16 %v885, %v884
        %v892 = vpack.c.b16 %v887, %v886
        %v893 = vpack.c.b16 %v889, %v888
        %v899 = vsel %vm713, %v851, 0
        %v902 = vsel %vm713, %v852, 0
        %v905 = vsel %vm713, %v853, 0
        %v908 = vsel %vm713, %v854, 0
        %v911 = vsel %vm713, %v855, 0
        %v914 = vsel %vm713, %v856, 0
        %v917 = vsel %vm713, %v857, 0
        %v920 = vsel %vm713, %v858, 0
        %922 = vmatprep.subr.bf16.mxu0 0
        %923 = vmatpush1.bf16.msra.mxu0 %v890
        %924 = vmatprep.subr.bf16.mxu0 0
        %925 = vmatpush1.bf16.msra.mxu0 %v891
        %926 = vmatprep.subr.bf16.mxu0 0
        %927 = vmatpush1.bf16.msra.mxu0 %v892
        %928 = vmatprep.subr.bf16.mxu0 0
        %929 = vmatpush1.bf16.msra.mxu0 %v893
        %930 = vmatprep.subr.bf16.mxu0 0
        %931 = vmatpush1.bf16.msra.mxu0 0
        %932 = vmatprep.subr.bf16.mxu0 0
        %933 = vmatpush1.bf16.msra.mxu0 0
        %934 = vmatprep.subr.bf16.mxu0 0
        %935 = vmatpush1.bf16.msra.mxu0 0
        %936 = vmatprep.subr.bf16.mxu0 0
        %937 = vmatpush1.bf16.msra.mxu0 0
        %938 = vmatprep.subr.bf16.mxu0 0
        %939 = vmatpush1.bf16.msra.mxu0 0
        %940 = vmatprep.subr.bf16.mxu0 0
        %941 = vmatpush1.bf16.msra.mxu0 0
        %942 = vmatprep.subr.bf16.mxu0 0
        %943 = vmatpush1.bf16.msra.mxu0 0
        %944 = vmatprep.subr.bf16.mxu0 0
        %945 = vmatpush1.bf16.msra.mxu0 0
        %946 = vmatprep.subr.bf16.mxu0 0
        %947 = vmatpush1.bf16.msra.mxu0 0
        %948 = vmatprep.subr.bf16.mxu0 0
        %949 = vmatpush1.bf16.msra.mxu0 0
        %950 = vmatprep.subr.bf16.mxu0 0
        %951 = vmatpush1.bf16.msra.mxu0 0
        %952 = vmatprep.subr.bf16.mxu0 0
        %953 = vmatpush1.bf16.msra.mxu0 0
        %954 = vmatprep.mubr.bf16.mxu0 0
        %955 = vmatmul.mubr.bf16.gmra.mrb[0].mxu0 %v899
        %v956 = vpop.f32.mrb[0].mxu0
        %v957 = vadd.f32 %v872, %v956
        %v958 = vpop.f32.mrb[0].mxu0
        %v959 = vpop.f32.mrb[0].mxu0
        %v960 = vadd.f32 %v872, %v959
        %v961 = vpop.f32.mrb[0].mxu0
        %962 = vmatprep.mubr.bf16.mxu0 0
        %963 = vmatmul.mubr.bf16.gmra.mrb[0].mxu0 %v902
        %v964 = vpop.f32.mrb[0].mxu0
        %v965 = vadd.f32 %v872, %v964
        %v966 = vpop.f32.mrb[0].mxu0
        %v967 = vpop.f32.mrb[0].mxu0
        %v968 = vadd.f32 %v872, %v967
        %v969 = vpop.f32.mrb[0].mxu0
        %970 = vmatprep.mubr.bf16.mxu0 0
        %971 = vmatmul.mubr.bf16.gmra.mrb[0].mxu0 %v905
        %v972 = vpop.f32.mrb[0].mxu0
        %v973 = vadd.f32 %v872, %v972
        %v974 = vpop.f32.mrb[0].mxu0
        %v975 = vpop.f32.mrb[0].mxu0
        %v976 = vadd.f32 %v872, %v975
        %v977 = vpop.f32.mrb[0].mxu0
        %978 = vmatprep.mubr.bf16.mxu0 0
        %979 = vmatmul.mubr.bf16.gmra.mrb[0].mxu0 %v908
        %v980 = vpop.f32.mrb[0].mxu0
        %v981 = vadd.f32 %v872, %v980
        %v982 = vpop.f32.mrb[0].mxu0
        %v983 = vpop.f32.mrb[0].mxu0
        %v984 = vadd.f32 %v872, %v983
        %v985 = vpop.f32.mrb[0].mxu0
        %986 = vmatprep.mubr.bf16.mxu0 0
        %987 = vmatmul.mubr.bf16.gmra.mrb[0].mxu0 %v911
        %v988 = vpop.f32.mrb[0].mxu0
        %v989 = vadd.f32 %v872, %v988
        %v990 = vpop.f32.mrb[0].mxu0
        %v991 = vpop.f32.mrb[0].mxu0
        %v992 = vadd.f32 %v872, %v991
        %v993 = vpop.f32.mrb[0].mxu0
        %994 = vmatprep.mubr.bf16.mxu0 0
        %995 = vmatmul.mubr.bf16.gmra.mrb[0].mxu0 %v914
        %v996 = vpop.f32.mrb[0].mxu0
        %v997 = vadd.f32 %v872, %v996
        %v998 = vpop.f32.mrb[0].mxu0
        %v999 = vpop.f32.mrb[0].mxu0
        %v1000 = vadd.f32 %v872, %v999
        %v1001 = vpop.f32.mrb[0].mxu0
        %1002 = vmatprep.mubr.bf16.mxu0 0
        %1003 = vmatmul.mubr.bf16.gmra.mrb[0].mxu0 %v917
        %v1004 = vpop.f32.mrb[0].mxu0
        %v1005 = vadd.f32 %v872, %v1004
        %v1006 = vpop.f32.mrb[0].mxu0
        %v1007 = vpop.f32.mrb[0].mxu0
        %v1008 = vadd.f32 %v872, %v1007
        %v1009 = vpop.f32.mrb[0].mxu0
        %1010 = vmatprep.mubr.bf16.mxu0 0
        %1011 = vmatmul.mubr.bf16.gmra.mrb[0].mxu0 %v920
        %v1012 = vpop.f32.mrb[0].mxu0
        %v1013 = vadd.f32 %v872, %v1012
        %v1014 = vpop.f32.mrb[0].mxu0
        %v1015 = vpop.f32.mrb[0].mxu0
        %v1016 = vadd.f32 %v872, %v1015
        %v1017 = vpop.f32.mrb[0].mxu0
        %1018 = vdwg.mxu0
        %v1019 = vmax.f32 %v957, 0.0
        %v1020 = vmax.f32 %v960, 0.0
        %v1021 = vmax.f32 %v965, 0.0
        %v1022 = vmax.f32 %v968, 0.0
        %v1023 = vmax.f32 %v973, 0.0
        %v1024 = vmax.f32 %v976, 0.0
        %v1025 = vmax.f32 %v981, 0.0
        %v1026 = vmax.f32 %v984, 0.0
        %v1027 = vmax.f32 %v989, 0.0
        %v1028 = vmax.f32 %v992, 0.0
        %v1029 = vmax.f32 %v997, 0.0
        %v1030 = vmax.f32 %v1000, 0.0
        %v1031 = vmax.f32 %v1005, 0.0
        %v1032 = vmax.f32 %v1008, 0.0
        %v1033 = vmax.f32 %v1013, 0.0
        %v1034 = vmax.f32 %v1016, 0.0
        %v1035 = vpack.c.bf16 %v1020, %v1019
        %v1036 = vpack.c.bf16 %v1022, %v1021
        %v1037 = vpack.c.bf16 %v1024, %v1023
        %v1038 = vpack.c.bf16 %v1026, %v1025
        %v1039 = vpack.c.bf16 %v1028, %v1027
        %v1040 = vpack.c.bf16 %v1030, %v1029
        %v1041 = vpack.c.bf16 %v1032, %v1031
        %v1042 = vpack.c.bf16 %v1034, %v1033
        %v1043 = vld [vmem:[#allocation16] sm:$0xff]
        %v1044 = vld [vmem:[#allocation16 + $0x8] sm:$0xff]
        %v1045 = vld [vmem:[#allocation16 + $0x10] sm:$0xff]
        %v1046 = vld [vmem:[#allocation16 + $0x18] sm:$0xff]
        %v1047 = vld [vmem:[#allocation16 + $0x20] sm:$0xff]
        %v1048 = vld [vmem:[#allocation16 + $0x28] sm:$0xff]
        %v1049 = vld [vmem:[#allocation16 + $0x30] sm:$0xff]
        %v1050 = vld [vmem:[#allocation16 + $0x38] sm:$0xff]
        %v1051 = vld [vmem:[#allocation16 + $0x40] sm:$0xff]
        %v1052 = vld [vmem:[#allocation16 + $0x48] sm:$0xff]
        %v1053 = vld [vmem:[#allocation16 + $0x50] sm:$0xff]
        %v1054 = vld [vmem:[#allocation16 + $0x58] sm:$0xff]
        %v1055 = vld [vmem:[#allocation16 + $0x60] sm:$0xff]
        %v1056 = vld [vmem:[#allocation16 + $0x68] sm:$0xff]
        %v1057 = vld [vmem:[#allocation16 + $0x70] sm:$0xff]
        %v1058 = vld [vmem:[#allocation16 + $0x78] sm:$0xff]
        %v1059 = vld [vmem:[#allocation16 + $0x80] sm:$0xff]
        %v1060 = vld [vmem:[#allocation16 + $0x88] sm:$0xff]
        %v1061 = vld [vmem:[#allocation16 + $0x90] sm:$0xff]
        %v1062 = vld [vmem:[#allocation16 + $0x98] sm:$0xff]
        %v1063 = vld [vmem:[#allocation16 + $0xa0] sm:$0xff]
        %v1064 = vld [vmem:[#allocation16 + $0xa8] sm:$0xff]
        %v1065 = vld [vmem:[#allocation16 + $0xb0] sm:$0xff]
        %v1066 = vld [vmem:[#allocation16 + $0xb8] sm:$0xff]
        %v1067 = vld [vmem:[#allocation16 + $0xc0] sm:$0xff]
        %v1068 = vld [vmem:[#allocation16 + $0xc8] sm:$0xff]
        %v1069 = vld [vmem:[#allocation16 + $0xd0] sm:$0xff]
        %v1070 = vld [vmem:[#allocation16 + $0xd8] sm:$0xff]
        %v1071 = vld [vmem:[#allocation16 + $0xe0] sm:$0xff]
        %v1072 = vld [vmem:[#allocation16 + $0xe8] sm:$0xff]
        %v1073 = vld [vmem:[#allocation16 + $0xf0] sm:$0xff]
        %v1074 = vld [vmem:[#allocation16 + $0xf8] sm:$0xff]
        %v1075 = vld [vmem:[#allocation16 + $0x100] sm:$0xff]
        %v1076 = vld [vmem:[#allocation16 + $0x108] sm:$0xff]
        %v1077 = vld [vmem:[#allocation16 + $0x110] sm:$0xff]
        %v1078 = vld [vmem:[#allocation16 + $0x118] sm:$0xff]
        %v1079 = vld [vmem:[#allocation16 + $0x120] sm:$0xff]
        %v1080 = vld [vmem:[#allocation16 + $0x128] sm:$0xff]
        %v1081 = vld [vmem:[#allocation16 + $0x130] sm:$0xff]
        %v1082 = vld [vmem:[#allocation16 + $0x138] sm:$0xff]
        %v1083 = vld [vmem:[#allocation16 + $0x140] sm:$0xff]
        %v1084 = vld [vmem:[#allocation16 + $0x148] sm:$0xff]
        %v1085 = vld [vmem:[#allocation16 + $0x150] sm:$0xff]
        %v1086 = vld [vmem:[#allocation16 + $0x158] sm:$0xff]
        %v1087 = vld [vmem:[#allocation16 + $0x160] sm:$0xff]
        %v1088 = vld [vmem:[#allocation16 + $0x168] sm:$0xff]
        %v1089 = vld [vmem:[#allocation16 + $0x170] sm:$0xff]
        %v1090 = vld [vmem:[#allocation16 + $0x178] sm:$0xff]
        %v1091 = vld [vmem:[#allocation16 + $0x180] sm:$0xff]
        %v1092 = vld [vmem:[#allocation16 + $0x188] sm:$0xff]
        %v1093 = vld [vmem:[#allocation16 + $0x190] sm:$0xff]
        %v1094 = vld [vmem:[#allocation16 + $0x198] sm:$0xff]
        %v1095 = vld [vmem:[#allocation16 + $0x1a0] sm:$0xff]
        %v1096 = vld [vmem:[#allocation16 + $0x1a8] sm:$0xff]
        %v1097 = vld [vmem:[#allocation16 + $0x1b0] sm:$0xff]
        %v1098 = vld [vmem:[#allocation16 + $0x1b8] sm:$0xff]
        %v1099 = vld [vmem:[#allocation16 + $0x1c0] sm:$0xff]
        %v1100 = vld [vmem:[#allocation16 + $0x1c8] sm:$0xff]
        %v1101 = vld [vmem:[#allocation16 + $0x1d0] sm:$0xff]
        %v1102 = vld [vmem:[#allocation16 + $0x1d8] sm:$0xff]
        %v1103 = vld [vmem:[#allocation16 + $0x1e0] sm:$0xff]
        %v1104 = vld [vmem:[#allocation16 + $0x1e8] sm:$0xff]
        %v1105 = vld [vmem:[#allocation16 + $0x1f0] sm:$0xff]
        %v1106 = vld [vmem:[#allocation16 + $0x1f8] sm:$0xff]
        %v1107 = vld [vmem:[#allocation18] sm:$0xff]
        %v1109 = vlaneseq
        %v1110 = vshrl.u32 %v1109, 7
        %v1111 = vsub.s32 0, %v1110
        %v1112 = vrot.slane %v1107, %v1111
        %v1113 = vlaneseq
        %v1114 = vshrl.u32 %v1113, 7
        %v1115 = vsub.s32 1, %v1114
        %v1116 = vrot.slane %v1107, %v1115
        %v1117 = vlaneseq
        %v1118 = vshrl.u32 %v1117, 7
        %v1119 = vsub.s32 2, %v1118
        %v1120 = vrot.slane %v1107, %v1119
        %v1121 = vlaneseq
        %v1122 = vshrl.u32 %v1121, 7
        %v1123 = vsub.s32 3, %v1122
        %v1124 = vrot.slane %v1107, %v1123
        %v1125 = vlaneseq
        %v1126 = vshrl.u32 %v1125, 7
        %v1127 = vsub.s32 4, %v1126
        %v1128 = vrot.slane %v1107, %v1127
        %v1129 = vlaneseq
        %v1130 = vshrl.u32 %v1129, 7
        %v1131 = vsub.s32 5, %v1130
        %v1132 = vrot.slane %v1107, %v1131
        %v1133 = vlaneseq
        %v1134 = vshrl.u32 %v1133, 7
        %v1135 = vsub.s32 6, %v1134
        %v1136 = vrot.slane %v1107, %v1135
        %v1137 = vlaneseq
        %v1138 = vshrl.u32 %v1137, 7
        %v1139 = vsub.s32 7, %v1138
        %v1140 = vrot.slane %v1107, %v1139
        %v1213 = vunpack.c.l.b16 %v1043
        %v1214 = vunpack.c.h.b16 %v1043
        %v1215 = vunpack.c.l.b16 %v1044
        %v1216 = vunpack.c.h.b16 %v1044
        %v1217 = vunpack.c.l.b16 %v1045
        %v1218 = vunpack.c.h.b16 %v1045
        %v1219 = vunpack.c.l.b16 %v1046
        %v1220 = vunpack.c.h.b16 %v1046
        %v1221 = vunpack.c.l.b16 %v1047
        %v1222 = vunpack.c.h.b16 %v1047
        %v1223 = vunpack.c.l.b16 %v1048
        %v1224 = vunpack.c.h.b16 %v1048
        %v1225 = vunpack.c.l.b16 %v1049
        %v1226 = vunpack.c.h.b16 %v1049
        %v1227 = vunpack.c.l.b16 %v1050
        %v1228 = vunpack.c.h.b16 %v1050
        %v1229 = vunpack.c.l.b16 %v1051
        %v1230 = vunpack.c.h.b16 %v1051
        %v1231 = vunpack.c.l.b16 %v1052
        %v1232 = vunpack.c.h.b16 %v1052
        %v1233 = vunpack.c.l.b16 %v1053
        %v1234 = vunpack.c.h.b16 %v1053
        %v1235 = vunpack.c.l.b16 %v1054
        %v1236 = vunpack.c.h.b16 %v1054
        %v1237 = vunpack.c.l.b16 %v1055
        %v1238 = vunpack.c.h.b16 %v1055
        %v1239 = vunpack.c.l.b16 %v1056
        %v1240 = vunpack.c.h.b16 %v1056
        %v1241 = vunpack.c.l.b16 %v1057
        %v1242 = vunpack.c.h.b16 %v1057
        %v1243 = vunpack.c.l.b16 %v1058
        %v1244 = vunpack.c.h.b16 %v1058
        %v1245 = vunpack.c.l.b16 %v1059
        %v1246 = vunpack.c.h.b16 %v1059
        %v1247 = vunpack.c.l.b16 %v1060
        %v1248 = vunpack.c.h.b16 %v1060
        %v1249 = vunpack.c.l.b16 %v1061
        %v1250 = vunpack.c.h.b16 %v1061
        %v1251 = vunpack.c.l.b16 %v1062
        %v1252 = vunpack.c.h.b16 %v1062
        %v1253 = vunpack.c.l.b16 %v1063
        %v1254 = vunpack.c.h.b16 %v1063
        %v1255 = vunpack.c.l.b16 %v1064
        %v1256 = vunpack.c.h.b16 %v1064
        %v1257 = vunpack.c.l.b16 %v1065
        %v1258 = vunpack.c.h.b16 %v1065
        %v1259 = vunpack.c.l.b16 %v1066
        %v1260 = vunpack.c.h.b16 %v1066
        %v1261 = vunpack.c.l.b16 %v1067
        %v1262 = vunpack.c.h.b16 %v1067
        %v1263 = vunpack.c.l.b16 %v1068
        %v1264 = vunpack.c.h.b16 %v1068
        %v1265 = vunpack.c.l.b16 %v1069
        %v1266 = vunpack.c.h.b16 %v1069
        %v1267 = vunpack.c.l.b16 %v1070
        %v1268 = vunpack.c.h.b16 %v1070
        %v1269 = vunpack.c.l.b16 %v1071
        %v1270 = vunpack.c.h.b16 %v1071
        %v1271 = vunpack.c.l.b16 %v1072
        %v1272 = vunpack.c.h.b16 %v1072
        %v1273 = vunpack.c.l.b16 %v1073
        %v1274 = vunpack.c.h.b16 %v1073
        %v1275 = vunpack.c.l.b16 %v1074
        %v1276 = vunpack.c.h.b16 %v1074
        %v1277 = vunpack.c.l.b16 %v1075
        %v1278 = vunpack.c.h.b16 %v1075
        %v1279 = vunpack.c.l.b16 %v1076
        %v1280 = vunpack.c.h.b16 %v1076
        %v1281 = vunpack.c.l.b16 %v1077
        %v1282 = vunpack.c.h.b16 %v1077
        %v1283 = vunpack.c.l.b16 %v1078
        %v1284 = vunpack.c.h.b16 %v1078
        %v1285 = vunpack.c.l.b16 %v1079
        %v1286 = vunpack.c.h.b16 %v1079
        %v1287 = vunpack.c.l.b16 %v1080
        %v1288 = vunpack.c.h.b16 %v1080
        %v1289 = vunpack.c.l.b16 %v1081
        %v1290 = vunpack.c.h.b16 %v1081
        %v1291 = vunpack.c.l.b16 %v1082
        %v1292 = vunpack.c.h.b16 %v1082
        %v1293 = vunpack.c.l.b16 %v1083
        %v1294 = vunpack.c.h.b16 %v1083
        %v1295 = vunpack.c.l.b16 %v1084
        %v1296 = vunpack.c.h.b16 %v1084
        %v1297 = vunpack.c.l.b16 %v1085
        %v1298 = vunpack.c.h.b16 %v1085
        %v1299 = vunpack.c.l.b16 %v1086
        %v1300 = vunpack.c.h.b16 %v1086
        %v1301 = vunpack.c.l.b16 %v1087
        %v1302 = vunpack.c.h.b16 %v1087
        %v1303 = vunpack.c.l.b16 %v1088
        %v1304 = vunpack.c.h.b16 %v1088
        %v1305 = vunpack.c.l.b16 %v1089
        %v1306 = vunpack.c.h.b16 %v1089
        %v1307 = vunpack.c.l.b16 %v1090
        %v1308 = vunpack.c.h.b16 %v1090
        %v1309 = vunpack.c.l.b16 %v1091
        %v1310 = vunpack.c.h.b16 %v1091
        %v1311 = vunpack.c.l.b16 %v1092
        %v1312 = vunpack.c.h.b16 %v1092
        %v1313 = vunpack.c.l.b16 %v1093
        %v1314 = vunpack.c.h.b16 %v1093
        %v1315 = vunpack.c.l.b16 %v1094
        %v1316 = vunpack.c.h.b16 %v1094
        %v1317 = vunpack.c.l.b16 %v1095
        %v1318 = vunpack.c.h.b16 %v1095
        %v1319 = vunpack.c.l.b16 %v1096
        %v1320 = vunpack.c.h.b16 %v1096
        %v1321 = vunpack.c.l.b16 %v1097
        %v1322 = vunpack.c.h.b16 %v1097
        %v1323 = vunpack.c.l.b16 %v1098
        %v1324 = vunpack.c.h.b16 %v1098
        %v1325 = vunpack.c.l.b16 %v1099
        %v1326 = vunpack.c.h.b16 %v1099
        %v1327 = vunpack.c.l.b16 %v1100
        %v1328 = vunpack.c.h.b16 %v1100
        %v1329 = vunpack.c.l.b16 %v1101
        %v1330 = vunpack.c.h.b16 %v1101
        %v1331 = vunpack.c.l.b16 %v1102
        %v1332 = vunpack.c.h.b16 %v1102
        %v1333 = vunpack.c.l.b16 %v1103
        %v1334 = vunpack.c.h.b16 %v1103
        %v1335 = vunpack.c.l.b16 %v1104
        %v1336 = vunpack.c.h.b16 %v1104
        %v1337 = vunpack.c.l.b16 %v1105
        %v1338 = vunpack.c.h.b16 %v1105
        %v1339 = vunpack.c.l.b16 %v1106
        %v1340 = vunpack.c.h.b16 %v1106
        %v1341 = vpack.c.b16 %v1221, %v1213
        %v1342 = vpack.c.b16 %v1222, %v1214
        %v1343 = vpack.c.b16 %v1223, %v1215
        %v1344 = vpack.c.b16 %v1224, %v1216
        %v1345 = vpack.c.b16 %v1225, %v1217
        %v1346 = vpack.c.b16 %v1226, %v1218
        %v1347 = vpack.c.b16 %v1227, %v1219
        %v1348 = vpack.c.b16 %v1228, %v1220
        %v1349 = vpack.c.b16 %v1237, %v1229
        %v1350 = vpack.c.b16 %v1238, %v1230
        %v1351 = vpack.c.b16 %v1239, %v1231
        %v1352 = vpack.c.b16 %v1240, %v1232
        %v1353 = vpack.c.b16 %v1241, %v1233
        %v1354 = vpack.c.b16 %v1242, %v1234
        %v1355 = vpack.c.b16 %v1243, %v1235
        %v1356 = vpack.c.b16 %v1244, %v1236
        %v1357 = vpack.c.b16 %v1253, %v1245
        %v1358 = vpack.c.b16 %v1254, %v1246
        %v1359 = vpack.c.b16 %v1255, %v1247
        %v1360 = vpack.c.b16 %v1256, %v1248
        %v1361 = vpack.c.b16 %v1257, %v1249
        %v1362 = vpack.c.b16 %v1258, %v1250
        %v1363 = vpack.c.b16 %v1259, %v1251
        %v1364 = vpack.c.b16 %v1260, %v1252
        %v1365 = vpack.c.b16 %v1269, %v1261
        %v1366 = vpack.c.b16 %v1270, %v1262
        %v1367 = vpack.c.b16 %v1271, %v1263
        %v1368 = vpack.c.b16 %v1272, %v1264
        %v1369 = vpack.c.b16 %v1273, %v1265
        %v1370 = vpack.c.b16 %v1274, %v1266
        %v1371 = vpack.c.b16 %v1275, %v1267
        %v1372 = vpack.c.b16 %v1276, %v1268
        %v1373 = vpack.c.b16 %v1285, %v1277
        %v1374 = vpack.c.b16 %v1286, %v1278
        %v1375 = vpack.c.b16 %v1287, %v1279
        %v1376 = vpack.c.b16 %v1288, %v1280
        %v1377 = vpack.c.b16 %v1289, %v1281
        %v1378 = vpack.c.b16 %v1290, %v1282
        %v1379 = vpack.c.b16 %v1291, %v1283
        %v1380 = vpack.c.b16 %v1292, %v1284
        %v1381 = vpack.c.b16 %v1301, %v1293
        %v1382 = vpack.c.b16 %v1302, %v1294
        %v1383 = vpack.c.b16 %v1303, %v1295
        %v1384 = vpack.c.b16 %v1304, %v1296
        %v1385 = vpack.c.b16 %v1305, %v1297
        %v1386 = vpack.c.b16 %v1306, %v1298
        %v1387 = vpack.c.b16 %v1307, %v1299
        %v1388 = vpack.c.b16 %v1308, %v1300
        %v1389 = vpack.c.b16 %v1317, %v1309
        %v1390 = vpack.c.b16 %v1318, %v1310
        %v1391 = vpack.c.b16 %v1319, %v1311
        %v1392 = vpack.c.b16 %v1320, %v1312
        %v1393 = vpack.c.b16 %v1321, %v1313
        %v1394 = vpack.c.b16 %v1322, %v1314
        %v1395 = vpack.c.b16 %v1323, %v1315
        %v1396 = vpack.c.b16 %v1324, %v1316
        %v1397 = vpack.c.b16 %v1333, %v1325
        %v1398 = vpack.c.b16 %v1334, %v1326
        %v1399 = vpack.c.b16 %v1335, %v1327
        %v1400 = vpack.c.b16 %v1336, %v1328
        %v1401 = vpack.c.b16 %v1337, %v1329
        %v1402 = vpack.c.b16 %v1338, %v1330
        %v1403 = vpack.c.b16 %v1339, %v1331
        %v1404 = vpack.c.b16 %v1340, %v1332
        %1469 = vmatprep.subr.bf16.mxu0 %v1342
        %1470 = vmatpush1.bf16.msra.mxu0 %v1341
        %1471 = vmatprep.subr.bf16.mxu0 %v1350
        %1472 = vmatpush1.bf16.msra.mxu0 %v1349
        %1473 = vmatprep.subr.bf16.mxu0 %v1358
        %1474 = vmatpush1.bf16.msra.mxu0 %v1357
        %1475 = vmatprep.subr.bf16.mxu0 %v1366
        %1476 = vmatpush1.bf16.msra.mxu0 %v1365
        %1477 = vmatprep.subr.bf16.mxu0 %v1374
        %1478 = vmatpush1.bf16.msra.mxu0 %v1373
        %1479 = vmatprep.subr.bf16.mxu0 %v1382
        %1480 = vmatpush1.bf16.msra.mxu0 %v1381
        %1481 = vmatprep.subr.bf16.mxu0 %v1390
        %1482 = vmatpush1.bf16.msra.mxu0 %v1389
        %1483 = vmatprep.subr.bf16.mxu0 %v1398
        %1484 = vmatpush1.bf16.msra.mxu0 %v1397
        %1485 = vmatprep.subr.bf16.mxu0 0
        %1486 = vmatpush1.bf16.msra.mxu0 0
        %1487 = vmatprep.subr.bf16.mxu0 0
        %1488 = vmatpush1.bf16.msra.mxu0 0
        %1489 = vmatprep.subr.bf16.mxu0 0
        %1490 = vmatpush1.bf16.msra.mxu0 0
        %1491 = vmatprep.subr.bf16.mxu0 0
        %1492 = vmatpush1.bf16.msra.mxu0 0
        %1493 = vmatprep.subr.bf16.mxu0 0
        %1494 = vmatpush1.bf16.msra.mxu0 0
        %1495 = vmatprep.subr.bf16.mxu0 0
        %1496 = vmatpush1.bf16.msra.mxu0 0
        %1497 = vmatprep.subr.bf16.mxu0 0
        %1498 = vmatpush1.bf16.msra.mxu0 0
        %1499 = vmatprep.subr.bf16.mxu0 0
        %1500 = vmatpush1.bf16.msra.mxu0 0
        %1501 = vmatprep.mubr.bf16.mxu0 0
        %1502 = vmatmul.mubr.bf16.gmra.mrb[0].mxu0 %v1035
        %v1503 = vpop.f32.mrb[0].mxu0
        %v1504 = vadd.f32 %v1112, %v1503
        %v1505 = vpop.f32.mrb[0].mxu0
        %v1506 = vadd.f32 %v1116, %v1505
        %v1507 = vpop.f32.mrb[0].mxu0
        %v1508 = vadd.f32 %v1112, %v1507
        %v1509 = vpop.f32.mrb[0].mxu0
        %v1510 = vadd.f32 %v1116, %v1509
        %1511 = vmatprep.mubr.bf16.mxu0 0
        %1512 = vmatmul.mubr.bf16.gmra.mrb[0].mxu0 %v1036
        %v1513 = vpop.f32.mrb[0].mxu0
        %v1514 = vadd.f32 %v1112, %v1513
        %v1515 = vpop.f32.mrb[0].mxu0
        %v1516 = vadd.f32 %v1116, %v1515
        %v1517 = vpop.f32.mrb[0].mxu0
        %v1518 = vadd.f32 %v1112, %v1517
        %v1519 = vpop.f32.mrb[0].mxu0
        %v1520 = vadd.f32 %v1116, %v1519
        %1521 = vmatprep.mubr.bf16.mxu0 0
        %1522 = vmatmul.mubr.bf16.gmra.mrb[0].mxu0 %v1037
        %v1523 = vpop.f32.mrb[0].mxu0
        %v1524 = vadd.f32 %v1112, %v1523
        %v1525 = vpop.f32.mrb[0].mxu0
        %v1526 = vadd.f32 %v1116, %v1525
        %v1527 = vpop.f32.mrb[0].mxu0
        %v1528 = vadd.f32 %v1112, %v1527
        %v1529 = vpop.f32.mrb[0].mxu0
        %v1530 = vadd.f32 %v1116, %v1529
        %1531 = vmatprep.mubr.bf16.mxu0 0
        %1532 = vmatmul.mubr.bf16.gmra.mrb[0].mxu0 %v1038
        %v1533 = vpop.f32.mrb[0].mxu0
        %v1534 = vadd.f32 %v1112, %v1533
        %v1535 = vpop.f32.mrb[0].mxu0
        %v1536 = vadd.f32 %v1116, %v1535
        %v1537 = vpop.f32.mrb[0].mxu0
        %v1538 = vadd.f32 %v1112, %v1537
        %v1539 = vpop.f32.mrb[0].mxu0
        %v1540 = vadd.f32 %v1116, %v1539
        %1541 = vmatprep.mubr.bf16.mxu0 0
        %1542 = vmatmul.mubr.bf16.gmra.mrb[0].mxu0 %v1039
        %v1543 = vpop.f32.mrb[0].mxu0
        %v1544 = vadd.f32 %v1112, %v1543
        %v1545 = vpop.f32.mrb[0].mxu0
        %v1546 = vadd.f32 %v1116, %v1545
        %v1547 = vpop.f32.mrb[0].mxu0
        %v1548 = vadd.f32 %v1112, %v1547
        %v1549 = vpop.f32.mrb[0].mxu0
        %v1550 = vadd.f32 %v1116, %v1549
        %1551 = vmatprep.mubr.bf16.mxu0 0
        %1552 = vmatmul.mubr.bf16.gmra.mrb[0].mxu0 %v1040
        %v1553 = vpop.f32.mrb[0].mxu0
        %v1554 = vadd.f32 %v1112, %v1553
        %v1555 = vpop.f32.mrb[0].mxu0
        %v1556 = vadd.f32 %v1116, %v1555
        %v1557 = vpop.f32.mrb[0].mxu0
        %v1558 = vadd.f32 %v1112, %v1557
        %v1559 = vpop.f32.mrb[0].mxu0
        %v1560 = vadd.f32 %v1116, %v1559
        %1561 = vmatprep.mubr.bf16.mxu0 0
        %1562 = vmatmul.mubr.bf16.gmra.mrb[0].mxu0 %v1041
        %v1563 = vpop.f32.mrb[0].mxu0
        %v1564 = vadd.f32 %v1112, %v1563
        %v1565 = vpop.f32.mrb[0].mxu0
        %v1566 = vadd.f32 %v1116, %v1565
        %v1567 = vpop.f32.mrb[0].mxu0
        %v1568 = vadd.f32 %v1112, %v1567
        %v1569 = vpop.f32.mrb[0].mxu0
        %v1570 = vadd.f32 %v1116, %v1569
        %1571 = vmatprep.mubr.bf16.mxu0 0
        %1572 = vmatmul.mubr.bf16.gmra.mrb[0].mxu0 %v1042
        %v1573 = vpop.f32.mrb[0].mxu0
        %v1574 = vadd.f32 %v1112, %v1573
        %v1575 = vpop.f32.mrb[0].mxu0
        %v1576 = vadd.f32 %v1116, %v1575
        %v1577 = vpop.f32.mrb[0].mxu0
        %v1578 = vadd.f32 %v1112, %v1577
        %v1579 = vpop.f32.mrb[0].mxu0
        %v1580 = vadd.f32 %v1116, %v1579
        %1581 = vdwg.mxu0
        %1582 = vmatprep.subr.bf16.mxu0 %v1344
        %1583 = vmatpush1.bf16.msra.mxu0 %v1343
        %1584 = vmatprep.subr.bf16.mxu0 %v1352
        %1585 = vmatpush1.bf16.msra.mxu0 %v1351
        %1586 = vmatprep.subr.bf16.mxu0 %v1360
        %1587 = vmatpush1.bf16.msra.mxu0 %v1359
        %1588 = vmatprep.subr.bf16.mxu0 %v1368
        %1589 = vmatpush1.bf16.msra.mxu0 %v1367
        %1590 = vmatprep.subr.bf16.mxu0 %v1376
        %1591 = vmatpush1.bf16.msra.mxu0 %v1375
        %1592 = vmatprep.subr.bf16.mxu0 %v1384
        %1593 = vmatpush1.bf16.msra.mxu0 %v1383
        %1594 = vmatprep.subr.bf16.mxu0 %v1392
        %1595 = vmatpush1.bf16.msra.mxu0 %v1391
        %1596 = vmatprep.subr.bf16.mxu0 %v1400
        %1597 = vmatpush1.bf16.msra.mxu0 %v1399
        %1598 = vmatprep.subr.bf16.mxu0 0
        %1599 = vmatpush1.bf16.msra.mxu0 0
        %1600 = vmatprep.subr.bf16.mxu0 0
        %1601 = vmatpush1.bf16.msra.mxu0 0
        %1602 = vmatprep.subr.bf16.mxu0 0
        %1603 = vmatpush1.bf16.msra.mxu0 0
        %1604 = vmatprep.subr.bf16.mxu0 0
        %1605 = vmatpush1.bf16.msra.mxu0 0
        %1606 = vmatprep.subr.bf16.mxu0 0
        %1607 = vmatpush1.bf16.msra.mxu0 0
        %1608 = vmatprep.subr.bf16.mxu0 0
        %1609 = vmatpush1.bf16.msra.mxu0 0
        %1610 = vmatprep.subr.bf16.mxu0 0
        %1611 = vmatpush1.bf16.msra.mxu0 0
        %1612 = vmatprep.subr.bf16.mxu0 0
        %1613 = vmatpush1.bf16.msra.mxu0 0
        %1614 = vmatprep.mubr.bf16.mxu0 0
        %1615 = vmatmul.mubr.bf16.gmra.mrb[0].mxu0 %v1035
        %v1616 = vpop.f32.mrb[0].mxu0
        %v1617 = vadd.f32 %v1120, %v1616
        %v1618 = vpop.f32.mrb[0].mxu0
        %v1619 = vadd.f32 %v1124, %v1618
        %v1620 = vpop.f32.mrb[0].mxu0
        %v1621 = vadd.f32 %v1120, %v1620
        %v1622 = vpop.f32.mrb[0].mxu0
        %v1623 = vadd.f32 %v1124, %v1622
        %1624 = vmatprep.mubr.bf16.mxu0 0
        %1625 = vmatmul.mubr.bf16.gmra.mrb[0].mxu0 %v1036
        %v1626 = vpop.f32.mrb[0].mxu0
        %v1627 = vadd.f32 %v1120, %v1626
        %v1628 = vpop.f32.mrb[0].mxu0
        %v1629 = vadd.f32 %v1124, %v1628
        %v1630 = vpop.f32.mrb[0].mxu0
        %v1631 = vadd.f32 %v1120, %v1630
        %v1632 = vpop.f32.mrb[0].mxu0
        %v1633 = vadd.f32 %v1124, %v1632
        %1634 = vmatprep.mubr.bf16.mxu0 0
        %1635 = vmatmul.mubr.bf16.gmra.mrb[0].mxu0 %v1037
        %v1636 = vpop.f32.mrb[0].mxu0
        %v1637 = vadd.f32 %v1120, %v1636
        %v1638 = vpop.f32.mrb[0].mxu0
        %v1639 = vadd.f32 %v1124, %v1638
        %v1640 = vpop.f32.mrb[0].mxu0
        %v1641 = vadd.f32 %v1120, %v1640
        %v1642 = vpop.f32.mrb[0].mxu0
        %v1643 = vadd.f32 %v1124, %v1642
        %1644 = vmatprep.mubr.bf16.mxu0 0
        %1645 = vmatmul.mubr.bf16.gmra.mrb[0].mxu0 %v1038
        %v1646 = vpop.f32.mrb[0].mxu0
        %v1647 = vadd.f32 %v1120, %v1646
        %v1648 = vpop.f32.mrb[0].mxu0
        %v1649 = vadd.f32 %v1124, %v1648
        %v1650 = vpop.f32.mrb[0].mxu0
        %v1651 = vadd.f32 %v1120, %v1650
        %v1652 = vpop.f32.mrb[0].mxu0
        %v1653 = vadd.f32 %v1124, %v1652
        %1654 = vmatprep.mubr.bf16.mxu0 0
        %1655 = vmatmul.mubr.bf16.gmra.mrb[0].mxu0 %v1039
        %v1656 = vpop.f32.mrb[0].mxu0
        %v1657 = vadd.f32 %v1120, %v1656
        %v1658 = vpop.f32.mrb[0].mxu0
        %v1659 = vadd.f32 %v1124, %v1658
        %v1660 = vpop.f32.mrb[0].mxu0
        %v1661 = vadd.f32 %v1120, %v1660
        %v1662 = vpop.f32.mrb[0].mxu0
        %v1663 = vadd.f32 %v1124, %v1662
        %1664 = vmatprep.mubr.bf16.mxu0 0
        %1665 = vmatmul.mubr.bf16.gmra.mrb[0].mxu0 %v1040
        %v1666 = vpop.f32.mrb[0].mxu0
        %v1667 = vadd.f32 %v1120, %v1666
        %v1668 = vpop.f32.mrb[0].mxu0
        %v1669 = vadd.f32 %v1124, %v1668
        %v1670 = vpop.f32.mrb[0].mxu0
        %v1671 = vadd.f32 %v1120, %v1670
        %v1672 = vpop.f32.mrb[0].mxu0
        %v1673 = vadd.f32 %v1124, %v1672
        %1674 = vmatprep.mubr.bf16.mxu0 0
        %1675 = vmatmul.mubr.bf16.gmra.mrb[0].mxu0 %v1041
        %v1676 = vpop.f32.mrb[0].mxu0
        %v1677 = vadd.f32 %v1120, %v1676
        %v1678 = vpop.f32.mrb[0].mxu0
        %v1679 = vadd.f32 %v1124, %v1678
        %v1680 = vpop.f32.mrb[0].mxu0
        %v1681 = vadd.f32 %v1120, %v1680
        %v1682 = vpop.f32.mrb[0].mxu0
        %v1683 = vadd.f32 %v1124, %v1682
        %1684 = vmatprep.mubr.bf16.mxu0 0
        %1685 = vmatmul.mubr.bf16.gmra.mrb[0].mxu0 %v1042
        %v1686 = vpop.f32.mrb[0].mxu0
        %v1687 = vadd.f32 %v1120, %v1686
        %v1688 = vpop.f32.mrb[0].mxu0
        %v1689 = vadd.f32 %v1124, %v1688
        %v1690 = vpop.f32.mrb[0].mxu0
        %v1691 = vadd.f32 %v1120, %v1690
        %v1692 = vpop.f32.mrb[0].mxu0
        %v1693 = vadd.f32 %v1124, %v1692
        %1694 = vdwg.mxu0
        %1695 = vmatprep.subr.bf16.mxu0 %v1346
        %1696 = vmatpush1.bf16.msra.mxu0 %v1345
        %1697 = vmatprep.subr.bf16.mxu0 %v1354
        %1698 = vmatpush1.bf16.msra.mxu0 %v1353
        %1699 = vmatprep.subr.bf16.mxu0 %v1362
        %1700 = vmatpush1.bf16.msra.mxu0 %v1361
        %1701 = vmatprep.subr.bf16.mxu0 %v1370
        %1702 = vmatpush1.bf16.msra.mxu0 %v1369
        %1703 = vmatprep.subr.bf16.mxu0 %v1378
        %1704 = vmatpush1.bf16.msra.mxu0 %v1377
        %1705 = vmatprep.subr.bf16.mxu0 %v1386
        %1706 = vmatpush1.bf16.msra.mxu0 %v1385
        %1707 = vmatprep.subr.bf16.mxu0 %v1394
        %1708 = vmatpush1.bf16.msra.mxu0 %v1393
        %1709 = vmatprep.subr.bf16.mxu0 %v1402
        %1710 = vmatpush1.bf16.msra.mxu0 %v1401
        %1711 = vmatprep.subr.bf16.mxu0 0
        %1712 = vmatpush1.bf16.msra.mxu0 0
        %1713 = vmatprep.subr.bf16.mxu0 0
        %1714 = vmatpush1.bf16.msra.mxu0 0
        %1715 = vmatprep.subr.bf16.mxu0 0
        %1716 = vmatpush1.bf16.msra.mxu0 0
        %1717 = vmatprep.subr.bf16.mxu0 0
        %1718 = vmatpush1.bf16.msra.mxu0 0
        %1719 = vmatprep.subr.bf16.mxu0 0
        %1720 = vmatpush1.bf16.msra.mxu0 0
        %1721 = vmatprep.subr.bf16.mxu0 0
        %1722 = vmatpush1.bf16.msra.mxu0 0
        %1723 = vmatprep.subr.bf16.mxu0 0
        %1724 = vmatpush1.bf16.msra.mxu0 0
        %1725 = vmatprep.subr.bf16.mxu0 0
        %1726 = vmatpush1.bf16.msra.mxu0 0
        %1727 = vmatprep.mubr.bf16.mxu0 0
        %1728 = vmatmul.mubr.bf16.gmra.mrb[0].mxu0 %v1035
        %v1729 = vpop.f32.mrb[0].mxu0
        %v1730 = vadd.f32 %v1128, %v1729
        %v1731 = vpop.f32.mrb[0].mxu0
        %v1732 = vadd.f32 %v1132, %v1731
        %v1733 = vpop.f32.mrb[0].mxu0
        %v1734 = vadd.f32 %v1128, %v1733
        %v1735 = vpop.f32.mrb[0].mxu0
        %v1736 = vadd.f32 %v1132, %v1735
        %1737 = vmatprep.mubr.bf16.mxu0 0
        %1738 = vmatmul.mubr.bf16.gmra.mrb[0].mxu0 %v1036
        %v1739 = vpop.f32.mrb[0].mxu0
        %v1740 = vadd.f32 %v1128, %v1739
        %v1741 = vpop.f32.mrb[0].mxu0
        %v1742 = vadd.f32 %v1132, %v1741
        %v1743 = vpop.f32.mrb[0].mxu0
        %v1744 = vadd.f32 %v1128, %v1743
        %v1745 = vpop.f32.mrb[0].mxu0
        %v1746 = vadd.f32 %v1132, %v1745
        %1747 = vmatprep.mubr.bf16.mxu0 0
        %1748 = vmatmul.mubr.bf16.gmra.mrb[0].mxu0 %v1037
        %v1749 = vpop.f32.mrb[0].mxu0
        %v1750 = vadd.f32 %v1128, %v1749
        %v1751 = vpop.f32.mrb[0].mxu0
        %v1752 = vadd.f32 %v1132, %v1751
        %v1753 = vpop.f32.mrb[0].mxu0
        %v1754 = vadd.f32 %v1128, %v1753
        %v1755 = vpop.f32.mrb[0].mxu0
        %v1756 = vadd.f32 %v1132, %v1755
        %1757 = vmatprep.mubr.bf16.mxu0 0
        %1758 = vmatmul.mubr.bf16.gmra.mrb[0].mxu0 %v1038
        %v1759 = vpop.f32.mrb[0].mxu0
        %v1760 = vadd.f32 %v1128, %v1759
        %v1761 = vpop.f32.mrb[0].mxu0
        %v1762 = vadd.f32 %v1132, %v1761
        %v1763 = vpop.f32.mrb[0].mxu0
        %v1764 = vadd.f32 %v1128, %v1763
        %v1765 = vpop.f32.mrb[0].mxu0
        %v1766 = vadd.f32 %v1132, %v1765
        %1767 = vmatprep.mubr.bf16.mxu0 0
        %1768 = vmatmul.mubr.bf16.gmra.mrb[0].mxu0 %v1039
        %v1769 = vpop.f32.mrb[0].mxu0
        %v1770 = vadd.f32 %v1128, %v1769
        %v1771 = vpop.f32.mrb[0].mxu0
        %v1772 = vadd.f32 %v1132, %v1771
        %v1773 = vpop.f32.mrb[0].mxu0
        %v1774 = vadd.f32 %v1128, %v1773
        %v1775 = vpop.f32.mrb[0].mxu0
        %v1776 = vadd.f32 %v1132, %v1775
        %1777 = vmatprep.mubr.bf16.mxu0 0
        %1778 = vmatmul.mubr.bf16.gmra.mrb[0].mxu0 %v1040
        %v1779 = vpop.f32.mrb[0].mxu0
        %v1780 = vadd.f32 %v1128, %v1779
        %v1781 = vpop.f32.mrb[0].mxu0
        %v1782 = vadd.f32 %v1132, %v1781
        %v1783 = vpop.f32.mrb[0].mxu0
        %v1784 = vadd.f32 %v1128, %v1783
        %v1785 = vpop.f32.mrb[0].mxu0
        %v1786 = vadd.f32 %v1132, %v1785
        %1787 = vmatprep.mubr.bf16.mxu0 0
        %1788 = vmatmul.mubr.bf16.gmra.mrb[0].mxu0 %v1041
        %v1789 = vpop.f32.mrb[0].mxu0
        %v1790 = vadd.f32 %v1128, %v1789
        %v1791 = vpop.f32.mrb[0].mxu0
        %v1792 = vadd.f32 %v1132, %v1791
        %v1793 = vpop.f32.mrb[0].mxu0
        %v1794 = vadd.f32 %v1128, %v1793
        %v1795 = vpop.f32.mrb[0].mxu0
        %v1796 = vadd.f32 %v1132, %v1795
        %1797 = vmatprep.mubr.bf16.mxu0 0
        %1798 = vmatmul.mubr.bf16.gmra.mrb[0].mxu0 %v1042
        %v1799 = vpop.f32.mrb[0].mxu0
        %v1800 = vadd.f32 %v1128, %v1799
        %v1801 = vpop.f32.mrb[0].mxu0
        %v1802 = vadd.f32 %v1132, %v1801
        %v1803 = vpop.f32.mrb[0].mxu0
        %v1804 = vadd.f32 %v1128, %v1803
        %v1805 = vpop.f32.mrb[0].mxu0
        %v1806 = vadd.f32 %v1132, %v1805
        %1807 = vdwg.mxu0
        %1808 = vmatprep.subr.bf16.mxu0 %v1348
        %1809 = vmatpush1.bf16.msra.mxu0 %v1347
        %1810 = vmatprep.subr.bf16.mxu0 %v1356
        %1811 = vmatpush1.bf16.msra.mxu0 %v1355
        %1812 = vmatprep.subr.bf16.mxu0 %v1364
        %1813 = vmatpush1.bf16.msra.mxu0 %v1363
        %1814 = vmatprep.subr.bf16.mxu0 %v1372
        %1815 = vmatpush1.bf16.msra.mxu0 %v1371
        %1816 = vmatprep.subr.bf16.mxu0 %v1380
        %1817 = vmatpush1.bf16.msra.mxu0 %v1379
        %1818 = vmatprep.subr.bf16.mxu0 %v1388
        %1819 = vmatpush1.bf16.msra.mxu0 %v1387
        %1820 = vmatprep.subr.bf16.mxu0 %v1396
        %1821 = vmatpush1.bf16.msra.mxu0 %v1395
        %1822 = vmatprep.subr.bf16.mxu0 %v1404
        %1823 = vmatpush1.bf16.msra.mxu0 %v1403
        %1824 = vmatprep.subr.bf16.mxu0 0
        %1825 = vmatpush1.bf16.msra.mxu0 0
        %1826 = vmatprep.subr.bf16.mxu0 0
        %1827 = vmatpush1.bf16.msra.mxu0 0
        %1828 = vmatprep.subr.bf16.mxu0 0
        %1829 = vmatpush1.bf16.msra.mxu0 0
        %1830 = vmatprep.subr.bf16.mxu0 0
        %1831 = vmatpush1.bf16.msra.mxu0 0
        %1832 = vmatprep.subr.bf16.mxu0 0
        %1833 = vmatpush1.bf16.msra.mxu0 0
        %1834 = vmatprep.subr.bf16.mxu0 0
        %1835 = vmatpush1.bf16.msra.mxu0 0
        %1836 = vmatprep.subr.bf16.mxu0 0
        %1837 = vmatpush1.bf16.msra.mxu0 0
        %1838 = vmatprep.subr.bf16.mxu0 0
        %1839 = vmatpush1.bf16.msra.mxu0 0
        %1840 = vmatprep.mubr.bf16.mxu0 0
        %1841 = vmatmul.mubr.bf16.gmra.mrb[0].mxu0 %v1035
        %v1842 = vpop.f32.mrb[0].mxu0
        %v1843 = vadd.f32 %v1136, %v1842
        %v1844 = vpop.f32.mrb[0].mxu0
        %v1845 = vadd.f32 %v1140, %v1844
        %v1846 = vpop.f32.mrb[0].mxu0
        %v1847 = vadd.f32 %v1136, %v1846
        %v1848 = vpop.f32.mrb[0].mxu0
        %v1849 = vadd.f32 %v1140, %v1848
        %1850 = vmatprep.mubr.bf16.mxu0 0
        %1851 = vmatmul.mubr.bf16.gmra.mrb[0].mxu0 %v1036
        %v1852 = vpop.f32.mrb[0].mxu0
        %v1853 = vadd.f32 %v1136, %v1852
        %v1854 = vpop.f32.mrb[0].mxu0
        %v1855 = vadd.f32 %v1140, %v1854
        %v1856 = vpop.f32.mrb[0].mxu0
        %v1857 = vadd.f32 %v1136, %v1856
        %v1858 = vpop.f32.mrb[0].mxu0
        %v1859 = vadd.f32 %v1140, %v1858
        %1860 = vmatprep.mubr.bf16.mxu0 0
        %1861 = vmatmul.mubr.bf16.gmra.mrb[0].mxu0 %v1037
        %v1862 = vpop.f32.mrb[0].mxu0
        %v1863 = vadd.f32 %v1136, %v1862
        %v1864 = vpop.f32.mrb[0].mxu0
        %v1865 = vadd.f32 %v1140, %v1864
        %v1866 = vpop.f32.mrb[0].mxu0
        %v1867 = vadd.f32 %v1136, %v1866
        %v1868 = vpop.f32.mrb[0].mxu0
        %v1869 = vadd.f32 %v1140, %v1868
        %1870 = vmatprep.mubr.bf16.mxu0 0
        %1871 = vmatmul.mubr.bf16.gmra.mrb[0].mxu0 %v1038
        %v1872 = vpop.f32.mrb[0].mxu0
        %v1873 = vadd.f32 %v1136, %v1872
        %v1874 = vpop.f32.mrb[0].mxu0
        %v1875 = vadd.f32 %v1140, %v1874
        %v1876 = vpop.f32.mrb[0].mxu0
        %v1877 = vadd.f32 %v1136, %v1876
        %v1878 = vpop.f32.mrb[0].mxu0
        %v1879 = vadd.f32 %v1140, %v1878
        %1880 = vmatprep.mubr.bf16.mxu0 0
        %1881 = vmatmul.mubr.bf16.gmra.mrb[0].mxu0 %v1039
        %v1882 = vpop.f32.mrb[0].mxu0
        %v1883 = vadd.f32 %v1136, %v1882
        %v1884 = vpop.f32.mrb[0].mxu0
        %v1885 = vadd.f32 %v1140, %v1884
        %v1886 = vpop.f32.mrb[0].mxu0
        %v1887 = vadd.f32 %v1136, %v1886
        %v1888 = vpop.f32.mrb[0].mxu0
        %v1889 = vadd.f32 %v1140, %v1888
        %1890 = vmatprep.mubr.bf16.mxu0 0
        %1891 = vmatmul.mubr.bf16.gmra.mrb[0].mxu0 %v1040
        %v1892 = vpop.f32.mrb[0].mxu0
        %v1893 = vadd.f32 %v1136, %v1892
        %v1894 = vpop.f32.mrb[0].mxu0
        %v1895 = vadd.f32 %v1140, %v1894
        %v1896 = vpop.f32.mrb[0].mxu0
        %v1897 = vadd.f32 %v1136, %v1896
        %v1898 = vpop.f32.mrb[0].mxu0
        %v1899 = vadd.f32 %v1140, %v1898
        %1900 = vmatprep.mubr.bf16.mxu0 0
        %1901 = vmatmul.mubr.bf16.gmra.mrb[0].mxu0 %v1041
        %v1902 = vpop.f32.mrb[0].mxu0
        %v1903 = vadd.f32 %v1136, %v1902
        %v1904 = vpop.f32.mrb[0].mxu0
        %v1905 = vadd.f32 %v1140, %v1904
        %v1906 = vpop.f32.mrb[0].mxu0
        %v1907 = vadd.f32 %v1136, %v1906
        %v1908 = vpop.f32.mrb[0].mxu0
        %v1909 = vadd.f32 %v1140, %v1908
        %1910 = vmatprep.mubr.bf16.mxu0 0
        %1911 = vmatmul.mubr.bf16.gmra.mrb[0].mxu0 %v1042
        %v1912 = vpop.f32.mrb[0].mxu0
        %v1913 = vadd.f32 %v1136, %v1912
        %v1914 = vpop.f32.mrb[0].mxu0
        %v1915 = vadd.f32 %v1140, %v1914
        %v1916 = vpop.f32.mrb[0].mxu0
        %v1917 = vadd.f32 %v1136, %v1916
        %v1918 = vpop.f32.mrb[0].mxu0
        %v1919 = vadd.f32 %v1140, %v1918
        %1920 = vdwg.mxu0
        %v1921 = vmax.f32 %v1504, 0.0
        %v1922 = vmax.f32 %v1506, 0.0
        %v1923 = vmax.f32 %v1617, 0.0
        %v1924 = vmax.f32 %v1619, 0.0
        %v1925 = vmax.f32 %v1730, 0.0
        %v1926 = vmax.f32 %v1732, 0.0
        %v1927 = vmax.f32 %v1843, 0.0
        %v1928 = vmax.f32 %v1845, 0.0
        %v1929 = vmax.f32 %v1508, 0.0
        %v1930 = vmax.f32 %v1510, 0.0
        %v1931 = vmax.f32 %v1621, 0.0
        %v1932 = vmax.f32 %v1623, 0.0
        %v1933 = vmax.f32 %v1734, 0.0
        %v1934 = vmax.f32 %v1736, 0.0
        %v1935 = vmax.f32 %v1847, 0.0
        %v1936 = vmax.f32 %v1849, 0.0
        %v1937 = vmax.f32 %v1514, 0.0
        %v1938 = vmax.f32 %v1516, 0.0
        %v1939 = vmax.f32 %v1627, 0.0
        %v1940 = vmax.f32 %v1629, 0.0
        %v1941 = vmax.f32 %v1740, 0.0
        %v1942 = vmax.f32 %v1742, 0.0
        %v1943 = vmax.f32 %v1853, 0.0
        %v1944 = vmax.f32 %v1855, 0.0
        %v1945 = vmax.f32 %v1518, 0.0
        %v1946 = vmax.f32 %v1520, 0.0
        %v1947 = vmax.f32 %v1631, 0.0
        %v1948 = vmax.f32 %v1633, 0.0
        %v1949 = vmax.f32 %v1744, 0.0
        %v1950 = vmax.f32 %v1746, 0.0
        %v1951 = vmax.f32 %v1857, 0.0
        %v1952 = vmax.f32 %v1859, 0.0
        %v1953 = vmax.f32 %v1524, 0.0
        %v1954 = vmax.f32 %v1526, 0.0
        %v1955 = vmax.f32 %v1637, 0.0
        %v1956 = vmax.f32 %v1639, 0.0
        %v1957 = vmax.f32 %v1750, 0.0
        %v1958 = vmax.f32 %v1752, 0.0
        %v1959 = vmax.f32 %v1863, 0.0
        %v1960 = vmax.f32 %v1865, 0.0
        %v1961 = vmax.f32 %v1528, 0.0
        %v1962 = vmax.f32 %v1530, 0.0
        %v1963 = vmax.f32 %v1641, 0.0
        %v1964 = vmax.f32 %v1643, 0.0
        %v1965 = vmax.f32 %v1754, 0.0
        %v1966 = vmax.f32 %v1756, 0.0
        %v1967 = vmax.f32 %v1867, 0.0
        %v1968 = vmax.f32 %v1869, 0.0
        %v1969 = vmax.f32 %v1534, 0.0
        %v1970 = vmax.f32 %v1536, 0.0
        %v1971 = vmax.f32 %v1647, 0.0
        %v1972 = vmax.f32 %v1649, 0.0
        %v1973 = vmax.f32 %v1760, 0.0
        %v1974 = vmax.f32 %v1762, 0.0
        %v1975 = vmax.f32 %v1873, 0.0
        %v1976 = vmax.f32 %v1875, 0.0
        %v1977 = vmax.f32 %v1538, 0.0
        %v1978 = vmax.f32 %v1540, 0.0
        %v1979 = vmax.f32 %v1651, 0.0
        %v1980 = vmax.f32 %v1653, 0.0
        %v1981 = vmax.f32 %v1764, 0.0
        %v1982 = vmax.f32 %v1766, 0.0
        %v1983 = vmax.f32 %v1877, 0.0
        %v1984 = vmax.f32 %v1879, 0.0
        %v1985 = vmax.f32 %v1544, 0.0
        %v1986 = vmax.f32 %v1546, 0.0
        %v1987 = vmax.f32 %v1657, 0.0
        %v1988 = vmax.f32 %v1659, 0.0
        %v1989 = vmax.f32 %v1770, 0.0
        %v1990 = vmax.f32 %v1772, 0.0
        %v1991 = vmax.f32 %v1883, 0.0
        %v1992 = vmax.f32 %v1885, 0.0
        %v1993 = vmax.f32 %v1548, 0.0
        %v1994 = vmax.f32 %v1550, 0.0
        %v1995 = vmax.f32 %v1661, 0.0
        %v1996 = vmax.f32 %v1663, 0.0
        %v1997 = vmax.f32 %v1774, 0.0
        %v1998 = vmax.f32 %v1776, 0.0
        %v1999 = vmax.f32 %v1887, 0.0
        %v2000 = vmax.f32 %v1889, 0.0
        %v2001 = vmax.f32 %v1554, 0.0
        %v2002 = vmax.f32 %v1556, 0.0
        %v2003 = vmax.f32 %v1667, 0.0
        %v2004 = vmax.f32 %v1669, 0.0
        %v2005 = vmax.f32 %v1780, 0.0
        %v2006 = vmax.f32 %v1782, 0.0
        %v2007 = vmax.f32 %v1893, 0.0
        %v2008 = vmax.f32 %v1895, 0.0
        %v2009 = vmax.f32 %v1558, 0.0
        %v2010 = vmax.f32 %v1560, 0.0
        %v2011 = vmax.f32 %v1671, 0.0
        %v2012 = vmax.f32 %v1673, 0.0
        %v2013 = vmax.f32 %v1784, 0.0
        %v2014 = vmax.f32 %v1786, 0.0
        %v2015 = vmax.f32 %v1897, 0.0
        %v2016 = vmax.f32 %v1899, 0.0
        %v2017 = vmax.f32 %v1564, 0.0
        %v2018 = vmax.f32 %v1566, 0.0
        %v2019 = vmax.f32 %v1677, 0.0
        %v2020 = vmax.f32 %v1679, 0.0
        %v2021 = vmax.f32 %v1790, 0.0
        %v2022 = vmax.f32 %v1792, 0.0
        %v2023 = vmax.f32 %v1903, 0.0
        %v2024 = vmax.f32 %v1905, 0.0
        %v2025 = vmax.f32 %v1568, 0.0
        %v2026 = vmax.f32 %v1570, 0.0
        %v2027 = vmax.f32 %v1681, 0.0
        %v2028 = vmax.f32 %v1683, 0.0
        %v2029 = vmax.f32 %v1794, 0.0
        %v2030 = vmax.f32 %v1796, 0.0
        %v2031 = vmax.f32 %v1907, 0.0
        %v2032 = vmax.f32 %v1909, 0.0
        %v2033 = vmax.f32 %v1574, 0.0
        %v2034 = vmax.f32 %v1576, 0.0
        %v2035 = vmax.f32 %v1687, 0.0
        %v2036 = vmax.f32 %v1689, 0.0
        %v2037 = vmax.f32 %v1800, 0.0
        %v2038 = vmax.f32 %v1802, 0.0
        %v2039 = vmax.f32 %v1913, 0.0
        %v2040 = vmax.f32 %v1915, 0.0
        %v2041 = vmax.f32 %v1578, 0.0
        %v2042 = vmax.f32 %v1580, 0.0
        %v2043 = vmax.f32 %v1691, 0.0
        %v2044 = vmax.f32 %v1693, 0.0
        %v2045 = vmax.f32 %v1804, 0.0
        %v2046 = vmax.f32 %v1806, 0.0
        %v2047 = vmax.f32 %v1917, 0.0
        %v2048 = vmax.f32 %v1919, 0.0
        %v2049 = vld [vmem:[#allocation2] sm:$0xff]
        %v2050 = vmax.f32 %v1921, %v1929
        %v2051 = vmax.f32 %v2050, %v1937
        %v2052 = vmax.f32 %v2051, %v1945
        %v2053 = vmax.f32 %v2052, %v1953
        %v2054 = vmax.f32 %v2053, %v1961
        %v2055 = vmax.f32 %v2054, %v1969
        %v2056 = vmax.f32 %v2055, %v1977
        %v2057 = vmax.f32 %v2056, %v1985
        %v2058 = vmax.f32 %v2057, %v1993
        %v2059 = vmax.f32 %v2058, %v2001
        %v2060 = vmax.f32 %v2059, %v2009
        %v2061 = vmax.f32 %v2060, %v2017
        %v2062 = vmax.f32 %v2061, %v2025
        %v2063 = vmax.f32 %v2062, %v2033
        %v2064 = vmax.f32 %v2063, %v2041
        %v2065 = vrot.slane %v2064, 4
        %v2066 = vmax.f32 %v2064, %v2065
        %v2067 = vrot.slane %v2066, 2
        %v2068 = vmax.f32 %v2066, %v2067
        %v2069 = vrot.slane %v2068, 1
        %v2070 = vmax.f32 %v2068, %v2069
        %v2071 = vmax.f32 %v1922, %v1930
        %v2072 = vmax.f32 %v2071, %v1938
        %v2073 = vmax.f32 %v2072, %v1946
        %v2074 = vmax.f32 %v2073, %v1954
        %v2075 = vmax.f32 %v2074, %v1962
        %v2076 = vmax.f32 %v2075, %v1970
        %v2077 = vmax.f32 %v2076, %v1978
        %v2078 = vmax.f32 %v2077, %v1986
        %v2079 = vmax.f32 %v2078, %v1994
        %v2080 = vmax.f32 %v2079, %v2002
        %v2081 = vmax.f32 %v2080, %v2010
        %v2082 = vmax.f32 %v2081, %v2018
        %v2083 = vmax.f32 %v2082, %v2026
        %v2084 = vmax.f32 %v2083, %v2034
        %v2085 = vmax.f32 %v2084, %v2042
        %v2086 = vrot.slane %v2085, 4
        %v2087 = vmax.f32 %v2085, %v2086
        %v2088 = vrot.slane %v2087, 2
        %v2089 = vmax.f32 %v2087, %v2088
        %v2090 = vrot.slane %v2089, 1
        %v2091 = vmax.f32 %v2089, %v2090
        %v2092 = vmax.f32 %v1923, %v1931
        %v2093 = vmax.f32 %v2092, %v1939
        %v2094 = vmax.f32 %v2093, %v1947
        %v2095 = vmax.f32 %v2094, %v1955
        %v2096 = vmax.f32 %v2095, %v1963
        %v2097 = vmax.f32 %v2096, %v1971
        %v2098 = vmax.f32 %v2097, %v1979
        %v2099 = vmax.f32 %v2098, %v1987
        %v2100 = vmax.f32 %v2099, %v1995
        %v2101 = vmax.f32 %v2100, %v2003
        %v2102 = vmax.f32 %v2101, %v2011
        %v2103 = vmax.f32 %v2102, %v2019
        %v2104 = vmax.f32 %v2103, %v2027
        %v2105 = vmax.f32 %v2104, %v2035
        %v2106 = vmax.f32 %v2105, %v2043
        %v2107 = vrot.slane %v2106, 4
        %v2108 = vmax.f32 %v2106, %v2107
        %v2109 = vrot.slane %v2108, 2
        %v2110 = vmax.f32 %v2108, %v2109
        %v2111 = vrot.slane %v2110, 1
        %v2112 = vmax.f32 %v2110, %v2111
        %v2113 = vmax.f32 %v1924, %v1932
        %v2114 = vmax.f32 %v2113, %v1940
        %v2115 = vmax.f32 %v2114, %v1948
        %v2116 = vmax.f32 %v2115, %v1956
        %v2117 = vmax.f32 %v2116, %v1964
        %v2118 = vmax.f32 %v2117, %v1972
        %v2119 = vmax.f32 %v2118, %v1980
        %v2120 = vmax.f32 %v2119, %v1988
        %v2121 = vmax.f32 %v2120, %v1996
        %v2122 = vmax.f32 %v2121, %v2004
        %v2123 = vmax.f32 %v2122, %v2012
        %v2124 = vmax.f32 %v2123, %v2020
        %v2125 = vmax.f32 %v2124, %v2028
        %v2126 = vmax.f32 %v2125, %v2036
        %v2127 = vmax.f32 %v2126, %v2044
        %v2128 = vrot.slane %v2127, 4
        %v2129 = vmax.f32 %v2127, %v2128
        %v2130 = vrot.slane %v2129, 2
        %v2131 = vmax.f32 %v2129, %v2130
        %v2132 = vrot.slane %v2131, 1
        %v2133 = vmax.f32 %v2131, %v2132
        %v2134 = vmax.f32 %v1925, %v1933
        %v2135 = vmax.f32 %v2134, %v1941
        %v2136 = vmax.f32 %v2135, %v1949
        %v2137 = vmax.f32 %v2136, %v1957
        %v2138 = vmax.f32 %v2137, %v1965
        %v2139 = vmax.f32 %v2138, %v1973
        %v2140 = vmax.f32 %v2139, %v1981
        %v2141 = vmax.f32 %v2140, %v1989
        %v2142 = vmax.f32 %v2141, %v1997
        %v2143 = vmax.f32 %v2142, %v2005
        %v2144 = vmax.f32 %v2143, %v2013
        %v2145 = vmax.f32 %v2144, %v2021
        %v2146 = vmax.f32 %v2145, %v2029
        %v2147 = vmax.f32 %v2146, %v2037
        %v2148 = vmax.f32 %v2147, %v2045
        %v2149 = vrot.slane %v2148, 4
        %v2150 = vmax.f32 %v2148, %v2149
        %v2151 = vrot.slane %v2150, 2
        %v2152 = vmax.f32 %v2150, %v2151
        %v2153 = vrot.slane %v2152, 1
        %v2154 = vmax.f32 %v2152, %v2153
        %v2155 = vmax.f32 %v1926, %v1934
        %v2156 = vmax.f32 %v2155, %v1942
        %v2157 = vmax.f32 %v2156, %v1950
        %v2158 = vmax.f32 %v2157, %v1958
        %v2159 = vmax.f32 %v2158, %v1966
        %v2160 = vmax.f32 %v2159, %v1974
        %v2161 = vmax.f32 %v2160, %v1982
        %v2162 = vmax.f32 %v2161, %v1990
        %v2163 = vmax.f32 %v2162, %v1998
        %v2164 = vmax.f32 %v2163, %v2006
        %v2165 = vmax.f32 %v2164, %v2014
        %v2166 = vmax.f32 %v2165, %v2022
        %v2167 = vmax.f32 %v2166, %v2030
        %v2168 = vmax.f32 %v2167, %v2038
        %v2169 = vmax.f32 %v2168, %v2046
        %v2170 = vrot.slane %v2169, 4
        %v2171 = vmax.f32 %v2169, %v2170
        %v2172 = vrot.slane %v2171, 2
        %v2173 = vmax.f32 %v2171, %v2172
        %v2174 = vrot.slane %v2173, 1
        %v2175 = vmax.f32 %v2173, %v2174
        %v2176 = vmax.f32 %v1927, %v1935
        %v2177 = vmax.f32 %v2176, %v1943
        %v2178 = vmax.f32 %v2177, %v1951
        %v2179 = vmax.f32 %v2178, %v1959
        %v2180 = vmax.f32 %v2179, %v1967
        %v2181 = vmax.f32 %v2180, %v1975
        %v2182 = vmax.f32 %v2181, %v1983
        %v2183 = vmax.f32 %v2182, %v1991
        %v2184 = vmax.f32 %v2183, %v1999
        %v2185 = vmax.f32 %v2184, %v2007
        %v2186 = vmax.f32 %v2185, %v2015
        %v2187 = vmax.f32 %v2186, %v2023
        %v2188 = vmax.f32 %v2187, %v2031
        %v2189 = vmax.f32 %v2188, %v2039
        %v2190 = vmax.f32 %v2189, %v2047
        %v2191 = vrot.slane %v2190, 4
        %v2192 = vmax.f32 %v2190, %v2191
        %v2193 = vrot.slane %v2192, 2
        %v2194 = vmax.f32 %v2192, %v2193
        %v2195 = vrot.slane %v2194, 1
        %v2196 = vmax.f32 %v2194, %v2195
        %v2197 = vmax.f32 %v1928, %v1936
        %v2198 = vmax.f32 %v2197, %v1944
        %v2199 = vmax.f32 %v2198, %v1952
        %v2200 = vmax.f32 %v2199, %v1960
        %v2201 = vmax.f32 %v2200, %v1968
        %v2202 = vmax.f32 %v2201, %v1976
        %v2203 = vmax.f32 %v2202, %v1984
        %v2204 = vmax.f32 %v2203, %v1992
        %v2205 = vmax.f32 %v2204, %v2000
        %v2206 = vmax.f32 %v2205, %v2008
        %v2207 = vmax.f32 %v2206, %v2016
        %v2208 = vmax.f32 %v2207, %v2024
        %v2209 = vmax.f32 %v2208, %v2032
        %v2210 = vmax.f32 %v2209, %v2040
        %v2211 = vmax.f32 %v2210, %v2048
        %v2212 = vrot.slane %v2211, 4
        %v2213 = vmax.f32 %v2211, %v2212
        %v2214 = vrot.slane %v2213, 2
        %v2215 = vmax.f32 %v2213, %v2214
        %v2216 = vrot.slane %v2215, 1
        %v2217 = vmax.f32 %v2215, %v2216
        %v2226 = vcombine.low %v2070, %v2091
        %v2227 = vcombine.low %v2112, %v2133
        %v2228 = vcombine.low %v2154, %v2175
        %v2229 = vcombine.low %v2196, %v2217
        %v2231 = vunpack.c.l.s4 1966171168
        %v2232 = vunpack.c.0.s8 %v2231
        %v2233 = vlaneseq
        %v2234 = vshrl.u32 %v2233, 7
        %v2235 = vsub.s32 %v2232, %v2234
        %v2236 = vrot.slane %v2226, %v2235
        %v2238 = vunpack.c.l.s4 1966171168
        %v2239 = vunpack.c.0.s8 %v2238
        %v2240 = vlaneseq
        %v2241 = vshrl.u32 %v2240, 7
        %v2242 = vsub.s32 %v2239, %v2241
        %v2243 = vrot.slane %v2227, %v2242
        %v2245 = vunpack.c.l.s4 1966171168
        %v2246 = vunpack.c.0.s8 %v2245
        %v2247 = vlaneseq
        %v2248 = vshrl.u32 %v2247, 7
        %v2249 = vsub.s32 %v2246, %v2248
        %v2250 = vrot.slane %v2228, %v2249
        %v2252 = vunpack.c.l.s4 1966171168
        %v2253 = vunpack.c.0.s8 %v2252
        %v2254 = vlaneseq
        %v2255 = vshrl.u32 %v2254, 7
        %v2256 = vsub.s32 %v2253, %v2255
        %v2257 = vrot.slane %v2229, %v2256
        %v2258 = vcombine.low %v2236, %v2243
        %v2259 = vcombine.low %v2250, %v2257
        %v2261 = vunpack.c.l.s4 1966171168
        %v2262 = vunpack.c.0.s8 %v2261
        %v2263 = vlaneseq
        %v2264 = vshrl.u32 %v2263, 7
        %v2265 = vsub.s32 %v2262, %v2264
        %v2266 = vrot.slane %v2258, %v2265
        %v2268 = vunpack.c.l.s4 1966171168
        %v2269 = vunpack.c.0.s8 %v2268
        %v2270 = vlaneseq
        %v2271 = vshrl.u32 %v2270, 7
        %v2272 = vsub.s32 %v2269, %v2271
        %v2273 = vrot.slane %v2259, %v2272
        %v2274 = vcombine.low %v2266, %v2273
        %v2276 = vmax.f32 %v2049, %v2274
        %2277 = vst [vmem:[#allocation2] sm:$0xff] %v2276
        %p2278 = scmp.eq.s32.totalorder %s40, 1
        // Predicated region
        $region105: #{tpu_custom_call.1} parent=59 // pred_check
          %p2279 = pneg %p2278
        $region106: #{tpu_custom_call.1} parent=59 // pred_check_branch
          %2281 = sbr.rel (%p2279) target = $region108
        $region107: #{tpu_custom_call.1} parent=59 // pred_region
          %s2282 = smul.u32 4, 128
          %s2283 = smul.u32 %s2282, 4
          %s2284 = sshll.u32 %s2283, 4
          %2285 = dma.done [#allocation6], %s2284
          %s2286 = scalar_lea.sflag [#allocation6], 1
          %s2287 = smul.u32 4, 64
          %s2288 = smul.u32 %s2287, 2
          %s2289 = sshll.u32 %s2288, 4
          %2290 = dma.done %s2286, %s2289
          %s2291 = scalar_lea.sflag [#allocation6], 2
          %s2292 = smul.u32 4, 32
          %s2293 = smul.u32 %s2292, 32
          %s2294 = sshll.u32 %s2293, 4
          %2295 = dma.done %s2291, %s2294
          %v2296 = vld [vmem:[#allocation2] sm:$0xff]
          %v2298 = vlaneseq
          %v2299 = vshrl.u32 %v2298, 7
          %v2300 = vsub.s32 0, %v2299
          %v2301 = vrot.slane %v2296, %v2300
          %v2302 = vlaneseq
          %v2303 = vshrl.u32 %v2302, 7
          %v2304 = vsub.s32 1, %v2303
          %v2305 = vrot.slane %v2296, %v2304
          %v2306 = vlaneseq
          %v2307 = vshrl.u32 %v2306, 7
          %v2308 = vsub.s32 2, %v2307
          %v2309 = vrot.slane %v2296, %v2308
          %v2310 = vlaneseq
          %v2311 = vshrl.u32 %v2310, 7
          %v2312 = vsub.s32 3, %v2311
          %v2313 = vrot.slane %v2296, %v2312
          %v2314 = vlaneseq
          %v2315 = vshrl.u32 %v2314, 7
          %v2316 = vsub.s32 4, %v2315
          %v2317 = vrot.slane %v2296, %v2316
          %v2318 = vlaneseq
          %v2319 = vshrl.u32 %v2318, 7
          %v2320 = vsub.s32 5, %v2319
          %v2321 = vrot.slane %v2296, %v2320
          %v2322 = vlaneseq
          %v2323 = vshrl.u32 %v2322, 7
          %v2324 = vsub.s32 6, %v2323
          %v2325 = vrot.slane %v2296, %v2324
          %v2326 = vlaneseq
          %v2327 = vshrl.u32 %v2326, 7
          %v2328 = vsub.s32 7, %v2327
          %v2329 = vrot.slane %v2296, %v2328
          %v2338 = vpack.c.bf16 %v2301, %v2301
          %v2339 = vpack.c.bf16 %v2305, %v2305
          %v2340 = vpack.c.bf16 %v2309, %v2309
          %v2341 = vpack.c.bf16 %v2313, %v2313
          %v2342 = vpack.c.bf16 %v2317, %v2317
          %v2343 = vpack.c.bf16 %v2321, %v2321
          %v2344 = vpack.c.bf16 %v2325, %v2325
          %v2345 = vpack.c.bf16 %v2329, %v2329
          %v2346 = vld [vmem:[#allocation3] sm:$0xff]
          %v2347 = vld [vmem:[#allocation3 + $0x8] sm:$0xff]
          %v2348 = vld [vmem:[#allocation3 + $0x10] sm:$0xff]
          %v2349 = vld [vmem:[#allocation3 + $0x18] sm:$0xff]
          %v2350 = vld [vmem:[#allocation3 + $0x20] sm:$0xff]
          %v2351 = vld [vmem:[#allocation3 + $0x28] sm:$0xff]
          %v2352 = vld [vmem:[#allocation3 + $0x30] sm:$0xff]
          %v2353 = vld [vmem:[#allocation3 + $0x38] sm:$0xff]
          %v2354 = vld [vmem:[#allocation3 + $0x40] sm:$0xff]
          %v2355 = vld [vmem:[#allocation3 + $0x48] sm:$0xff]
          %v2356 = vld [vmem:[#allocation3 + $0x50] sm:$0xff]
          %v2357 = vld [vmem:[#allocation3 + $0x58] sm:$0xff]
          %v2358 = vld [vmem:[#allocation3 + $0x60] sm:$0xff]
          %v2359 = vld [vmem:[#allocation3 + $0x68] sm:$0xff]
          %v2360 = vld [vmem:[#allocation3 + $0x70] sm:$0xff]
          %v2361 = vld [vmem:[#allocation3 + $0x78] sm:$0xff]
          %v2362 = vld [vmem:[#allocation3 + $0x80] sm:$0xff]
          %v2363 = vld [vmem:[#allocation3 + $0x88] sm:$0xff]
          %v2364 = vld [vmem:[#allocation3 + $0x90] sm:$0xff]
          %v2365 = vld [vmem:[#allocation3 + $0x98] sm:$0xff]
          %v2366 = vld [vmem:[#allocation3 + $0xa0] sm:$0xff]
          %v2367 = vld [vmem:[#allocation3 + $0xa8] sm:$0xff]
          %v2368 = vld [vmem:[#allocation3 + $0xb0] sm:$0xff]
          %v2369 = vld [vmem:[#allocation3 + $0xb8] sm:$0xff]
          %v2370 = vld [vmem:[#allocation3 + $0xc0] sm:$0xff]
          %v2371 = vld [vmem:[#allocation3 + $0xc8] sm:$0xff]
          %v2372 = vld [vmem:[#allocation3 + $0xd0] sm:$0xff]
          %v2373 = vld [vmem:[#allocation3 + $0xd8] sm:$0xff]
          %v2374 = vld [vmem:[#allocation3 + $0xe0] sm:$0xff]
          %v2375 = vld [vmem:[#allocation3 + $0xe8] sm:$0xff]
          %v2376 = vld [vmem:[#allocation3 + $0xf0] sm:$0xff]
          %v2377 = vld [vmem:[#allocation3 + $0xf8] sm:$0xff]
          %v2378 = vld [vmem:[#allocation3 + $0x100] sm:$0xff]
          %v2379 = vld [vmem:[#allocation3 + $0x108] sm:$0xff]
          %v2380 = vld [vmem:[#allocation3 + $0x110] sm:$0xff]
          %v2381 = vld [vmem:[#allocation3 + $0x118] sm:$0xff]
          %v2382 = vld [vmem:[#allocation3 + $0x120] sm:$0xff]
          %v2383 = vld [vmem:[#allocation3 + $0x128] sm:$0xff]
          %v2384 = vld [vmem:[#allocation3 + $0x130] sm:$0xff]
          %v2385 = vld [vmem:[#allocation3 + $0x138] sm:$0xff]
          %v2386 = vld [vmem:[#allocation3 + $0x140] sm:$0xff]
          %v2387 = vld [vmem:[#allocation3 + $0x148] sm:$0xff]
          %v2388 = vld [vmem:[#allocation3 + $0x150] sm:$0xff]
          %v2389 = vld [vmem:[#allocation3 + $0x158] sm:$0xff]
          %v2390 = vld [vmem:[#allocation3 + $0x160] sm:$0xff]
          %v2391 = vld [vmem:[#allocation3 + $0x168] sm:$0xff]
          %v2392 = vld [vmem:[#allocation3 + $0x170] sm:$0xff]
          %v2393 = vld [vmem:[#allocation3 + $0x178] sm:$0xff]
          %v2394 = vld [vmem:[#allocation3 + $0x180] sm:$0xff]
          %v2395 = vld [vmem:[#allocation3 + $0x188] sm:$0xff]
          %v2396 = vld [vmem:[#allocation3 + $0x190] sm:$0xff]
          %v2397 = vld [vmem:[#allocation3 + $0x198] sm:$0xff]
          %v2398 = vld [vmem:[#allocation3 + $0x1a0] sm:$0xff]
          %v2399 = vld [vmem:[#allocation3 + $0x1a8] sm:$0xff]
          %v2400 = vld [vmem:[#allocation3 + $0x1b0] sm:$0xff]
          %v2401 = vld [vmem:[#allocation3 + $0x1b8] sm:$0xff]
          %v2402 = vld [vmem:[#allocation3 + $0x1c0] sm:$0xff]
          %v2403 = vld [vmem:[#allocation3 + $0x1c8] sm:$0xff]
          %v2404 = vld [vmem:[#allocation3 + $0x1d0] sm:$0xff]
          %v2405 = vld [vmem:[#allocation3 + $0x1d8] sm:$0xff]
          %v2406 = vld [vmem:[#allocation3 + $0x1e0] sm:$0xff]
          %v2407 = vld [vmem:[#allocation3 + $0x1e8] sm:$0xff]
          %v2408 = vld [vmem:[#allocation3 + $0x1f0] sm:$0xff]
          %v2409 = vld [vmem:[#allocation3 + $0x1f8] sm:$0xff]
          %v2410 = vld [vmem:[#allocation3 + $0x200] sm:$0xff]
          %v2411 = vld [vmem:[#allocation3 + $0x208] sm:$0xff]
          %v2412 = vld [vmem:[#allocation3 + $0x210] sm:$0xff]
          %v2413 = vld [vmem:[#allocation3 + $0x218] sm:$0xff]
          %v2414 = vld [vmem:[#allocation3 + $0x220] sm:$0xff]
          %v2415 = vld [vmem:[#allocation3 + $0x228] sm:$0xff]
          %v2416 = vld [vmem:[#allocation3 + $0x230] sm:$0xff]
          %v2417 = vld [vmem:[#allocation3 + $0x238] sm:$0xff]
          %v2418 = vld [vmem:[#allocation3 + $0x240] sm:$0xff]
          %v2419 = vld [vmem:[#allocation3 + $0x248] sm:$0xff]
          %v2420 = vld [vmem:[#allocation3 + $0x250] sm:$0xff]
          %v2421 = vld [vmem:[#allocation3 + $0x258] sm:$0xff]
          %v2422 = vld [vmem:[#allocation3 + $0x260] sm:$0xff]
          %v2423 = vld [vmem:[#allocation3 + $0x268] sm:$0xff]
          %v2424 = vld [vmem:[#allocation3 + $0x270] sm:$0xff]
          %v2425 = vld [vmem:[#allocation3 + $0x278] sm:$0xff]
          %v2426 = vld [vmem:[#allocation3 + $0x280] sm:$0xff]
          %v2427 = vld [vmem:[#allocation3 + $0x288] sm:$0xff]
          %v2428 = vld [vmem:[#allocation3 + $0x290] sm:$0xff]
          %v2429 = vld [vmem:[#allocation3 + $0x298] sm:$0xff]
          %v2430 = vld [vmem:[#allocation3 + $0x2a0] sm:$0xff]
          %v2431 = vld [vmem:[#allocation3 + $0x2a8] sm:$0xff]
          %v2432 = vld [vmem:[#allocation3 + $0x2b0] sm:$0xff]
          %v2433 = vld [vmem:[#allocation3 + $0x2b8] sm:$0xff]
          %v2434 = vld [vmem:[#allocation3 + $0x2c0] sm:$0xff]
          %v2435 = vld [vmem:[#allocation3 + $0x2c8] sm:$0xff]
          %v2436 = vld [vmem:[#allocation3 + $0x2d0] sm:$0xff]
          %v2437 = vld [vmem:[#allocation3 + $0x2d8] sm:$0xff]
          %v2438 = vld [vmem:[#allocation3 + $0x2e0] sm:$0xff]
          %v2439 = vld [vmem:[#allocation3 + $0x2e8] sm:$0xff]
          %v2440 = vld [vmem:[#allocation3 + $0x2f0] sm:$0xff]
          %v2441 = vld [vmem:[#allocation3 + $0x2f8] sm:$0xff]
          %v2442 = vld [vmem:[#allocation3 + $0x300] sm:$0xff]
          %v2443 = vld [vmem:[#allocation3 + $0x308] sm:$0xff]
          %v2444 = vld [vmem:[#allocation3 + $0x310] sm:$0xff]
          %v2445 = vld [vmem:[#allocation3 + $0x318] sm:$0xff]
          %v2446 = vld [vmem:[#allocation3 + $0x320] sm:$0xff]
          %v2447 = vld [vmem:[#allocation3 + $0x328] sm:$0xff]
          %v2448 = vld [vmem:[#allocation3 + $0x330] sm:$0xff]
          %v2449 = vld [vmem:[#allocation3 + $0x338] sm:$0xff]
          %v2450 = vld [vmem:[#allocation3 + $0x340] sm:$0xff]
          %v2451 = vld [vmem:[#allocation3 + $0x348] sm:$0xff]
          %v2452 = vld [vmem:[#allocation3 + $0x350] sm:$0xff]
          %v2453 = vld [vmem:[#allocation3 + $0x358] sm:$0xff]
          %v2454 = vld [vmem:[#allocation3 + $0x360] sm:$0xff]
          %v2455 = vld [vmem:[#allocation3 + $0x368] sm:$0xff]
          %v2456 = vld [vmem:[#allocation3 + $0x370] sm:$0xff]
          %v2457 = vld [vmem:[#allocation3 + $0x378] sm:$0xff]
          %v2458 = vld [vmem:[#allocation3 + $0x380] sm:$0xff]
          %v2459 = vld [vmem:[#allocation3 + $0x388] sm:$0xff]
          %v2460 = vld [vmem:[#allocation3 + $0x390] sm:$0xff]
          %v2461 = vld [vmem:[#allocation3 + $0x398] sm:$0xff]
          %v2462 = vld [vmem:[#allocation3 + $0x3a0] sm:$0xff]
          %v2463 = vld [vmem:[#allocation3 + $0x3a8] sm:$0xff]
          %v2464 = vld [vmem:[#allocation3 + $0x3b0] sm:$0xff]
          %v2465 = vld [vmem:[#allocation3 + $0x3b8] sm:$0xff]
          %v2466 = vld [vmem:[#allocation3 + $0x3c0] sm:$0xff]
          %v2467 = vld [vmem:[#allocation3 + $0x3c8] sm:$0xff]
          %v2468 = vld [vmem:[#allocation3 + $0x3d0] sm:$0xff]
          %v2469 = vld [vmem:[#allocation3 + $0x3d8] sm:$0xff]
          %v2470 = vld [vmem:[#allocation3 + $0x3e0] sm:$0xff]
          %v2471 = vld [vmem:[#allocation3 + $0x3e8] sm:$0xff]
          %v2472 = vld [vmem:[#allocation3 + $0x3f0] sm:$0xff]
          %v2473 = vld [vmem:[#allocation3 + $0x3f8] sm:$0xff]
          %v2474 = vld [vmem:[#allocation3 + $0x400] sm:$0xff]
          %v2475 = vld [vmem:[#allocation3 + $0x408] sm:$0xff]
          %v2476 = vld [vmem:[#allocation3 + $0x410] sm:$0xff]
          %v2477 = vld [vmem:[#allocation3 + $0x418] sm:$0xff]
          %v2478 = vld [vmem:[#allocation3 + $0x420] sm:$0xff]
          %v2479 = vld [vmem:[#allocation3 + $0x428] sm:$0xff]
          %v2480 = vld [vmem:[#allocation3 + $0x430] sm:$0xff]
          %v2481 = vld [vmem:[#allocation3 + $0x438] sm:$0xff]
          %v2482 = vld [vmem:[#allocation3 + $0x440] sm:$0xff]
          %v2483 = vld [vmem:[#allocation3 + $0x448] sm:$0xff]
          %v2484 = vld [vmem:[#allocation3 + $0x450] sm:$0xff]
          %v2485 = vld [vmem:[#allocation3 + $0x458] sm:$0xff]
          %v2486 = vld [vmem:[#allocation3 + $0x460] sm:$0xff]
          %v2487 = vld [vmem:[#allocation3 + $0x468] sm:$0xff]
          %v2488 = vld [vmem:[#allocation3 + $0x470] sm:$0xff]
          %v2489 = vld [vmem:[#allocation3 + $0x478] sm:$0xff]
          %v2490 = vld [vmem:[#allocation3 + $0x480] sm:$0xff]
          %v2491 = vld [vmem:[#allocation3 + $0x488] sm:$0xff]
          %v2492 = vld [vmem:[#allocation3 + $0x490] sm:$0xff]
          %v2493 = vld [vmem:[#allocation3 + $0x498] sm:$0xff]
          %v2494 = vld [vmem:[#allocation3 + $0x4a0] sm:$0xff]
          %v2495 = vld [vmem:[#allocation3 + $0x4a8] sm:$0xff]
          %v2496 = vld [vmem:[#allocation3 + $0x4b0] sm:$0xff]
          %v2497 = vld [vmem:[#allocation3 + $0x4b8] sm:$0xff]
          %v2498 = vld [vmem:[#allocation3 + $0x4c0] sm:$0xff]
          %v2499 = vld [vmem:[#allocation3 + $0x4c8] sm:$0xff]
          %v2500 = vld [vmem:[#allocation3 + $0x4d0] sm:$0xff]
          %v2501 = vld [vmem:[#allocation3 + $0x4d8] sm:$0xff]
          %v2502 = vld [vmem:[#allocation3 + $0x4e0] sm:$0xff]
          %v2503 = vld [vmem:[#allocation3 + $0x4e8] sm:$0xff]
          %v2504 = vld [vmem:[#allocation3 + $0x4f0] sm:$0xff]
          %v2505 = vld [vmem:[#allocation3 + $0x4f8] sm:$0xff]
          %v2506 = vld [vmem:[#allocation3 + $0x500] sm:$0xff]
          %v2507 = vld [vmem:[#allocation3 + $0x508] sm:$0xff]
          %v2508 = vld [vmem:[#allocation3 + $0x510] sm:$0xff]
          %v2509 = vld [vmem:[#allocation3 + $0x518] sm:$0xff]
          %v2510 = vld [vmem:[#allocation3 + $0x520] sm:$0xff]
          %v2511 = vld [vmem:[#allocation3 + $0x528] sm:$0xff]
          %v2512 = vld [vmem:[#allocation3 + $0x530] sm:$0xff]
          %v2513 = vld [vmem:[#allocation3 + $0x538] sm:$0xff]
          %v2514 = vld [vmem:[#allocation3 + $0x540] sm:$0xff]
          %v2515 = vld [vmem:[#allocation3 + $0x548] sm:$0xff]
          %v2516 = vld [vmem:[#allocation3 + $0x550] sm:$0xff]
          %v2517 = vld [vmem:[#allocation3 + $0x558] sm:$0xff]
          %v2518 = vld [vmem:[#allocation3 + $0x560] sm:$0xff]
          %v2519 = vld [vmem:[#allocation3 + $0x568] sm:$0xff]
          %v2520 = vld [vmem:[#allocation3 + $0x570] sm:$0xff]
          %v2521 = vld [vmem:[#allocation3 + $0x578] sm:$0xff]
          %v2522 = vld [vmem:[#allocation3 + $0x580] sm:$0xff]
          %v2523 = vld [vmem:[#allocation3 + $0x588] sm:$0xff]
          %v2524 = vld [vmem:[#allocation3 + $0x590] sm:$0xff]
          %v2525 = vld [vmem:[#allocation3 + $0x598] sm:$0xff]
          %v2526 = vld [vmem:[#allocation3 + $0x5a0] sm:$0xff]
          %v2527 = vld [vmem:[#allocation3 + $0x5a8] sm:$0xff]
          %v2528 = vld [vmem:[#allocation3 + $0x5b0] sm:$0xff]
          %v2529 = vld [vmem:[#allocation3 + $0x5b8] sm:$0xff]
          %v2530 = vld [vmem:[#allocation3 + $0x5c0] sm:$0xff]
          %v2531 = vld [vmem:[#allocation3 + $0x5c8] sm:$0xff]
          %v2532 = vld [vmem:[#allocation3 + $0x5d0] sm:$0xff]
          %v2533 = vld [vmem:[#allocation3 + $0x5d8] sm:$0xff]
          %v2534 = vld [vmem:[#allocation3 + $0x5e0] sm:$0xff]
          %v2535 = vld [vmem:[#allocation3 + $0x5e8] sm:$0xff]
          %v2536 = vld [vmem:[#allocation3 + $0x5f0] sm:$0xff]
          %v2537 = vld [vmem:[#allocation3 + $0x5f8] sm:$0xff]
          %v2538 = vld [vmem:[#allocation3 + $0x600] sm:$0xff]
          %v2539 = vld [vmem:[#allocation3 + $0x608] sm:$0xff]
          %v2540 = vld [vmem:[#allocation3 + $0x610] sm:$0xff]
          %v2541 = vld [vmem:[#allocation3 + $0x618] sm:$0xff]
          %v2542 = vld [vmem:[#allocation3 + $0x620] sm:$0xff]
          %v2543 = vld [vmem:[#allocation3 + $0x628] sm:$0xff]
          %v2544 = vld [vmem:[#allocation3 + $0x630] sm:$0xff]
          %v2545 = vld [vmem:[#allocation3 + $0x638] sm:$0xff]
          %v2546 = vld [vmem:[#allocation3 + $0x640] sm:$0xff]
          %v2547 = vld [vmem:[#allocation3 + $0x648] sm:$0xff]
          %v2548 = vld [vmem:[#allocation3 + $0x650] sm:$0xff]
          %v2549 = vld [vmem:[#allocation3 + $0x658] sm:$0xff]
          %v2550 = vld [vmem:[#allocation3 + $0x660] sm:$0xff]
          %v2551 = vld [vmem:[#allocation3 + $0x668] sm:$0xff]
          %v2552 = vld [vmem:[#allocation3 + $0x670] sm:$0xff]
          %v2553 = vld [vmem:[#allocation3 + $0x678] sm:$0xff]
          %v2554 = vld [vmem:[#allocation3 + $0x680] sm:$0xff]
          %v2555 = vld [vmem:[#allocation3 + $0x688] sm:$0xff]
          %v2556 = vld [vmem:[#allocation3 + $0x690] sm:$0xff]
          %v2557 = vld [vmem:[#allocation3 + $0x698] sm:$0xff]
          %v2558 = vld [vmem:[#allocation3 + $0x6a0] sm:$0xff]
          %v2559 = vld [vmem:[#allocation3 + $0x6a8] sm:$0xff]
          %v2560 = vld [vmem:[#allocation3 + $0x6b0] sm:$0xff]
          %v2561 = vld [vmem:[#allocation3 + $0x6b8] sm:$0xff]
          %v2562 = vld [vmem:[#allocation3 + $0x6c0] sm:$0xff]
          %v2563 = vld [vmem:[#allocation3 + $0x6c8] sm:$0xff]
          %v2564 = vld [vmem:[#allocation3 + $0x6d0] sm:$0xff]
          %v2565 = vld [vmem:[#allocation3 + $0x6d8] sm:$0xff]
          %v2566 = vld [vmem:[#allocation3 + $0x6e0] sm:$0xff]
          %v2567 = vld [vmem:[#allocation3 + $0x6e8] sm:$0xff]
          %v2568 = vld [vmem:[#allocation3 + $0x6f0] sm:$0xff]
          %v2569 = vld [vmem:[#allocation3 + $0x6f8] sm:$0xff]
          %v2570 = vld [vmem:[#allocation3 + $0x700] sm:$0xff]
          %v2571 = vld [vmem:[#allocation3 + $0x708] sm:$0xff]
          %v2572 = vld [vmem:[#allocation3 + $0x710] sm:$0xff]
          %v2573 = vld [vmem:[#allocation3 + $0x718] sm:$0xff]
          %v2574 = vld [vmem:[#allocation3 + $0x720] sm:$0xff]
          %v2575 = vld [vmem:[#allocation3 + $0x728] sm:$0xff]
          %v2576 = vld [vmem:[#allocation3 + $0x730] sm:$0xff]
          %v2577 = vld [vmem:[#allocation3 + $0x738] sm:$0xff]
          %v2578 = vld [vmem:[#allocation3 + $0x740] sm:$0xff]
          %v2579 = vld [vmem:[#allocation3 + $0x748] sm:$0xff]
          %v2580 = vld [vmem:[#allocation3 + $0x750] sm:$0xff]
          %v2581 = vld [vmem:[#allocation3 + $0x758] sm:$0xff]
          %v2582 = vld [vmem:[#allocation3 + $0x760] sm:$0xff]
          %v2583 = vld [vmem:[#allocation3 + $0x768] sm:$0xff]
          %v2584 = vld [vmem:[#allocation3 + $0x770] sm:$0xff]
          %v2585 = vld [vmem:[#allocation3 + $0x778] sm:$0xff]
          %v2586 = vld [vmem:[#allocation3 + $0x780] sm:$0xff]
          %v2587 = vld [vmem:[#allocation3 + $0x788] sm:$0xff]
          %v2588 = vld [vmem:[#allocation3 + $0x790] sm:$0xff]
          %v2589 = vld [vmem:[#allocation3 + $0x798] sm:$0xff]
          %v2590 = vld [vmem:[#allocation3 + $0x7a0] sm:$0xff]
          %v2591 = vld [vmem:[#allocation3 + $0x7a8] sm:$0xff]
          %v2592 = vld [vmem:[#allocation3 + $0x7b0] sm:$0xff]
          %v2593 = vld [vmem:[#allocation3 + $0x7b8] sm:$0xff]
          %v2594 = vld [vmem:[#allocation3 + $0x7c0] sm:$0xff]
          %v2595 = vld [vmem:[#allocation3 + $0x7c8] sm:$0xff]
          %v2596 = vld [vmem:[#allocation3 + $0x7d0] sm:$0xff]
          %v2597 = vld [vmem:[#allocation3 + $0x7d8] sm:$0xff]
          %v2598 = vld [vmem:[#allocation3 + $0x7e0] sm:$0xff]
          %v2599 = vld [vmem:[#allocation3 + $0x7e8] sm:$0xff]
          %v2600 = vld [vmem:[#allocation3 + $0x7f0] sm:$0xff]
          %v2601 = vld [vmem:[#allocation3 + $0x7f8] sm:$0xff]
          %v2602 = vld [vmem:[#allocation19] sm:$0xf]
          %v2604 = vlaneseq
          %v2605 = vshrl.u32 %v2604, 7
          %v2606 = vsub.s32 0, %v2605
          %v2607 = vrot.slane %v2602, %v2606
          %v2608 = vlaneseq
          %v2609 = vshrl.u32 %v2608, 7
          %v2610 = vsub.s32 1, %v2609
          %v2611 = vrot.slane %v2602, %v2610
          %v2612 = vlaneseq
          %v2613 = vshrl.u32 %v2612, 7
          %v2614 = vsub.s32 2, %v2613
          %v2615 = vrot.slane %v2602, %v2614
          %v2616 = vlaneseq
          %v2617 = vshrl.u32 %v2616, 7
          %v2618 = vsub.s32 3, %v2617
          %v2619 = vrot.slane %v2602, %v2618
          %2624 = vmatprep.subr.bf16.mxu0 %v2347
          %2625 = vmatpush1.bf16.msra.mxu0 %v2346
          %2626 = vmatprep.subr.bf16.mxu0 %v2351
          %2627 = vmatpush1.bf16.msra.mxu0 %v2350
          %2628 = vmatprep.subr.bf16.mxu0 %v2355
          %2629 = vmatpush1.bf16.msra.mxu0 %v2354
          %2630 = vmatprep.subr.bf16.mxu0 %v2359
          %2631 = vmatpush1.bf16.msra.mxu0 %v2358
          %2632 = vmatprep.subr.bf16.mxu0 %v2363
          %2633 = vmatpush1.bf16.msra.mxu0 %v2362
          %2634 = vmatprep.subr.bf16.mxu0 %v2367
          %2635 = vmatpush1.bf16.msra.mxu0 %v2366
          %2636 = vmatprep.subr.bf16.mxu0 %v2371
          %2637 = vmatpush1.bf16.msra.mxu0 %v2370
          %2638 = vmatprep.subr.bf16.mxu0 %v2375
          %2639 = vmatpush1.bf16.msra.mxu0 %v2374
          %2640 = vmatprep.subr.bf16.mxu0 %v2379
          %2641 = vmatpush1.bf16.msra.mxu0 %v2378
          %2642 = vmatprep.subr.bf16.mxu0 %v2383
          %2643 = vmatpush1.bf16.msra.mxu0 %v2382
          %2644 = vmatprep.subr.bf16.mxu0 %v2387
          %2645 = vmatpush1.bf16.msra.mxu0 %v2386
          %2646 = vmatprep.subr.bf16.mxu0 %v2391
          %2647 = vmatpush1.bf16.msra.mxu0 %v2390
          %2648 = vmatprep.subr.bf16.mxu0 %v2395
          %2649 = vmatpush1.bf16.msra.mxu0 %v2394
          %2650 = vmatprep.subr.bf16.mxu0 %v2399
          %2651 = vmatpush1.bf16.msra.mxu0 %v2398
          %2652 = vmatprep.subr.bf16.mxu0 %v2403
          %2653 = vmatpush1.bf16.msra.mxu0 %v2402
          %2654 = vmatprep.subr.bf16.mxu0 %v2407
          %2655 = vmatpush1.bf16.msra.mxu0 %v2406
          %2656 = vmatprep.mubr.bf16.mxu0 %v2339
          %2657 = vmatmul.mubr.bf16.gmra.mrb[0].mxu0 %v2338
          %v2658 = vpop.f32.mrb[0].mxu0
          %v2659 = vadd.f32 %v2607, %v2658
          %v2660 = vpop.f32.mrb[0].mxu0
          %v2661 = vadd.f32 %v2611, %v2660
          %v2662 = vpop.f32.mrb[0].mxu0
          %v2663 = vpop.f32.mrb[0].mxu0
          %2664 = vdwg.mxu0
          %2665 = vmatprep.subr.bf16.mxu0 %v2411
          %2666 = vmatpush1.bf16.msra.mxu0 %v2410
          %2667 = vmatprep.subr.bf16.mxu0 %v2415
          %2668 = vmatpush1.bf16.msra.mxu0 %v2414
          %2669 = vmatprep.subr.bf16.mxu0 %v2419
          %2670 = vmatpush1.bf16.msra.mxu0 %v2418
          %2671 = vmatprep.subr.bf16.mxu0 %v2423
          %2672 = vmatpush1.bf16.msra.mxu0 %v2422
          %2673 = vmatprep.subr.bf16.mxu0 %v2427
          %2674 = vmatpush1.bf16.msra.mxu0 %v2426
          %2675 = vmatprep.subr.bf16.mxu0 %v2431
          %2676 = vmatpush1.bf16.msra.mxu0 %v2430
          %2677 = vmatprep.subr.bf16.mxu0 %v2435
          %2678 = vmatpush1.bf16.msra.mxu0 %v2434
          %2679 = vmatprep.subr.bf16.mxu0 %v2439
          %2680 = vmatpush1.bf16.msra.mxu0 %v2438
          %2681 = vmatprep.subr.bf16.mxu0 %v2443
          %2682 = vmatpush1.bf16.msra.mxu0 %v2442
          %2683 = vmatprep.subr.bf16.mxu0 %v2447
          %2684 = vmatpush1.bf16.msra.mxu0 %v2446
          %2685 = vmatprep.subr.bf16.mxu0 %v2451
          %2686 = vmatpush1.bf16.msra.mxu0 %v2450
          %2687 = vmatprep.subr.bf16.mxu0 %v2455
          %2688 = vmatpush1.bf16.msra.mxu0 %v2454
          %2689 = vmatprep.subr.bf16.mxu0 %v2459
          %2690 = vmatpush1.bf16.msra.mxu0 %v2458
          %2691 = vmatprep.subr.bf16.mxu0 %v2463
          %2692 = vmatpush1.bf16.msra.mxu0 %v2462
          %2693 = vmatprep.subr.bf16.mxu0 %v2467
          %2694 = vmatpush1.bf16.msra.mxu0 %v2466
          %2695 = vmatprep.subr.bf16.mxu0 %v2471
          %2696 = vmatpush1.bf16.msra.mxu0 %v2470
          %2697 = vmatprep.mubr.bf16.mxu0 %v2341
          %2698 = vmatmul.mubr.bf16.gmra.mrb[0].mxu0 %v2340
          %v2699 = vpop.f32.mrb[0].mxu0
          %v2700 = vadd.f32 %v2659, %v2699
          %v2701 = vpop.f32.mrb[0].mxu0
          %v2702 = vadd.f32 %v2661, %v2701
          %v2703 = vpop.f32.mrb[0].mxu0
          %v2704 = vpop.f32.mrb[0].mxu0
          %2705 = vdwg.mxu0
          %2706 = vmatprep.subr.bf16.mxu0 %v2475
          %2707 = vmatpush1.bf16.msra.mxu0 %v2474
          %2708 = vmatprep.subr.bf16.mxu0 %v2479
          %2709 = vmatpush1.bf16.msra.mxu0 %v2478
          %2710 = vmatprep.subr.bf16.mxu0 %v2483
          %2711 = vmatpush1.bf16.msra.mxu0 %v2482
          %2712 = vmatprep.subr.bf16.mxu0 %v2487
          %2713 = vmatpush1.bf16.msra.mxu0 %v2486
          %2714 = vmatprep.subr.bf16.mxu0 %v2491
          %2715 = vmatpush1.bf16.msra.mxu0 %v2490
          %2716 = vmatprep.subr.bf16.mxu0 %v2495
          %2717 = vmatpush1.bf16.msra.mxu0 %v2494
          %2718 = vmatprep.subr.bf16.mxu0 %v2499
          %2719 = vmatpush1.bf16.msra.mxu0 %v2498
          %2720 = vmatprep.subr.bf16.mxu0 %v2503
          %2721 = vmatpush1.bf16.msra.mxu0 %v2502
          %2722 = vmatprep.subr.bf16.mxu0 %v2507
          %2723 = vmatpush1.bf16.msra.mxu0 %v2506
          %2724 = vmatprep.subr.bf16.mxu0 %v2511
          %2725 = vmatpush1.bf16.msra.mxu0 %v2510
          %2726 = vmatprep.subr.bf16.mxu0 %v2515
          %2727 = vmatpush1.bf16.msra.mxu0 %v2514
          %2728 = vmatprep.subr.bf16.mxu0 %v2519
          %2729 = vmatpush1.bf16.msra.mxu0 %v2518
          %2730 = vmatprep.subr.bf16.mxu0 %v2523
          %2731 = vmatpush1.bf16.msra.mxu0 %v2522
          %2732 = vmatprep.subr.bf16.mxu0 %v2527
          %2733 = vmatpush1.bf16.msra.mxu0 %v2526
          %2734 = vmatprep.subr.bf16.mxu0 %v2531
          %2735 = vmatpush1.bf16.msra.mxu0 %v2530
          %2736 = vmatprep.subr.bf16.mxu0 %v2535
          %2737 = vmatpush1.bf16.msra.mxu0 %v2534
          %2738 = vmatprep.mubr.bf16.mxu0 %v2343
          %2739 = vmatmul.mubr.bf16.gmra.mrb[0].mxu0 %v2342
          %v2740 = vpop.f32.mrb[0].mxu0
          %v2741 = vadd.f32 %v2700, %v2740
          %v2742 = vpop.f32.mrb[0].mxu0
          %v2743 = vadd.f32 %v2702, %v2742
          %v2744 = vpop.f32.mrb[0].mxu0
          %v2745 = vpop.f32.mrb[0].mxu0
          %2746 = vdwg.mxu0
          %2747 = vmatprep.subr.bf16.mxu0 %v2539
          %2748 = vmatpush1.bf16.msra.mxu0 %v2538
          %2749 = vmatprep.subr.bf16.mxu0 %v2543
          %2750 = vmatpush1.bf16.msra.mxu0 %v2542
          %2751 = vmatprep.subr.bf16.mxu0 %v2547
          %2752 = vmatpush1.bf16.msra.mxu0 %v2546
          %2753 = vmatprep.subr.bf16.mxu0 %v2551
          %2754 = vmatpush1.bf16.msra.mxu0 %v2550
          %2755 = vmatprep.subr.bf16.mxu0 %v2555
          %2756 = vmatpush1.bf16.msra.mxu0 %v2554
          %2757 = vmatprep.subr.bf16.mxu0 %v2559
          %2758 = vmatpush1.bf16.msra.mxu0 %v2558
          %2759 = vmatprep.subr.bf16.mxu0 %v2563
          %2760 = vmatpush1.bf16.msra.mxu0 %v2562
          %2761 = vmatprep.subr.bf16.mxu0 %v2567
          %2762 = vmatpush1.bf16.msra.mxu0 %v2566
          %2763 = vmatprep.subr.bf16.mxu0 %v2571
          %2764 = vmatpush1.bf16.msra.mxu0 %v2570
          %2765 = vmatprep.subr.bf16.mxu0 %v2575
          %2766 = vmatpush1.bf16.msra.mxu0 %v2574
          %2767 = vmatprep.subr.bf16.mxu0 %v2579
          %2768 = vmatpush1.bf16.msra.mxu0 %v2578
          %2769 = vmatprep.subr.bf16.mxu0 %v2583
          %2770 = vmatpush1.bf16.msra.mxu0 %v2582
          %2771 = vmatprep.subr.bf16.mxu0 %v2587
          %2772 = vmatpush1.bf16.msra.mxu0 %v2586
          %2773 = vmatprep.subr.bf16.mxu0 %v2591
          %2774 = vmatpush1.bf16.msra.mxu0 %v2590
          %2775 = vmatprep.subr.bf16.mxu0 %v2595
          %2776 = vmatpush1.bf16.msra.mxu0 %v2594
          %2777 = vmatprep.subr.bf16.mxu0 %v2599
          %2778 = vmatpush1.bf16.msra.mxu0 %v2598
          %2779 = vmatprep.mubr.bf16.mxu0 %v2345
          %2780 = vmatmul.mubr.bf16.gmra.mrb[0].mxu0 %v2344
          %v2781 = vpop.f32.mrb[0].mxu0
          %v2782 = vadd.f32 %v2741, %v2781
          %v2783 = vpop.f32.mrb[0].mxu0
          %v2784 = vadd.f32 %v2743, %v2783
          %v2785 = vpop.f32.mrb[0].mxu0
          %v2786 = vpop.f32.mrb[0].mxu0
          %2787 = vdwg.mxu0
          %2788 = vmatprep.subr.bf16.mxu0 %v2349
          %2789 = vmatpush1.bf16.msra.mxu0 %v2348
          %2790 = vmatprep.subr.bf16.mxu0 %v2353
          %2791 = vmatpush1.bf16.msra.mxu0 %v2352
          %2792 = vmatprep.subr.bf16.mxu0 %v2357
          %2793 = vmatpush1.bf16.msra.mxu0 %v2356
          %2794 = vmatprep.subr.bf16.mxu0 %v2361
          %2795 = vmatpush1.bf16.msra.mxu0 %v2360
          %2796 = vmatprep.subr.bf16.mxu0 %v2365
          %2797 = vmatpush1.bf16.msra.mxu0 %v2364
          %2798 = vmatprep.subr.bf16.mxu0 %v2369
          %2799 = vmatpush1.bf16.msra.mxu0 %v2368
          %2800 = vmatprep.subr.bf16.mxu0 %v2373
          %2801 = vmatpush1.bf16.msra.mxu0 %v2372
          %2802 = vmatprep.subr.bf16.mxu0 %v2377
          %2803 = vmatpush1.bf16.msra.mxu0 %v2376
          %2804 = vmatprep.subr.bf16.mxu0 %v2381
          %2805 = vmatpush1.bf16.msra.mxu0 %v2380
          %2806 = vmatprep.subr.bf16.mxu0 %v2385
          %2807 = vmatpush1.bf16.msra.mxu0 %v2384
          %2808 = vmatprep.subr.bf16.mxu0 %v2389
          %2809 = vmatpush1.bf16.msra.mxu0 %v2388
          %2810 = vmatprep.subr.bf16.mxu0 %v2393
          %2811 = vmatpush1.bf16.msra.mxu0 %v2392
          %2812 = vmatprep.subr.bf16.mxu0 %v2397
          %2813 = vmatpush1.bf16.msra.mxu0 %v2396
          %2814 = vmatprep.subr.bf16.mxu0 %v2401
          %2815 = vmatpush1.bf16.msra.mxu0 %v2400
          %2816 = vmatprep.subr.bf16.mxu0 %v2405
          %2817 = vmatpush1.bf16.msra.mxu0 %v2404
          %2818 = vmatprep.subr.bf16.mxu0 %v2409
          %2819 = vmatpush1.bf16.msra.mxu0 %v2408
          %2820 = vmatprep.mubr.bf16.mxu0 %v2339
          %2821 = vmatmul.mubr.bf16.gmra.mrb[0].mxu0 %v2338
          %v2822 = vpop.f32.mrb[0].mxu0
          %v2823 = vadd.f32 %v2615, %v2822
          %v2824 = vpop.f32.mrb[0].mxu0
          %v2825 = vadd.f32 %v2619, %v2824
          %v2826 = vpop.f32.mrb[0].mxu0
          %v2827 = vpop.f32.mrb[0].mxu0
          %2828 = vdwg.mxu0
          %2829 = vmatprep.subr.bf16.mxu0 %v2413
          %2830 = vmatpush1.bf16.msra.mxu0 %v2412
          %2831 = vmatprep.subr.bf16.mxu0 %v2417
          %2832 = vmatpush1.bf16.msra.mxu0 %v2416
          %2833 = vmatprep.subr.bf16.mxu0 %v2421
          %2834 = vmatpush1.bf16.msra.mxu0 %v2420
          %2835 = vmatprep.subr.bf16.mxu0 %v2425
          %2836 = vmatpush1.bf16.msra.mxu0 %v2424
          %2837 = vmatprep.subr.bf16.mxu0 %v2429
          %2838 = vmatpush1.bf16.msra.mxu0 %v2428
          %2839 = vmatprep.subr.bf16.mxu0 %v2433
          %2840 = vmatpush1.bf16.msra.mxu0 %v2432
          %2841 = vmatprep.subr.bf16.mxu0 %v2437
          %2842 = vmatpush1.bf16.msra.mxu0 %v2436
          %2843 = vmatprep.subr.bf16.mxu0 %v2441
          %2844 = vmatpush1.bf16.msra.mxu0 %v2440
          %2845 = vmatprep.subr.bf16.mxu0 %v2445
          %2846 = vmatpush1.bf16.msra.mxu0 %v2444
          %2847 = vmatprep.subr.bf16.mxu0 %v2449
          %2848 = vmatpush1.bf16.msra.mxu0 %v2448
          %2849 = vmatprep.subr.bf16.mxu0 %v2453
          %2850 = vmatpush1.bf16.msra.mxu0 %v2452
          %2851 = vmatprep.subr.bf16.mxu0 %v2457
          %2852 = vmatpush1.bf16.msra.mxu0 %v2456
          %2853 = vmatprep.subr.bf16.mxu0 %v2461
          %2854 = vmatpush1.bf16.msra.mxu0 %v2460
          %2855 = vmatprep.subr.bf16.mxu0 %v2465
          %2856 = vmatpush1.bf16.msra.mxu0 %v2464
          %2857 = vmatprep.subr.bf16.mxu0 %v2469
          %2858 = vmatpush1.bf16.msra.mxu0 %v2468
          %2859 = vmatprep.subr.bf16.mxu0 %v2473
          %2860 = vmatpush1.bf16.msra.mxu0 %v2472
          %2861 = vmatprep.mubr.bf16.mxu0 %v2341
          %2862 = vmatmul.mubr.bf16.gmra.mrb[0].mxu0 %v2340
          %v2863 = vpop.f32.mrb[0].mxu0
          %v2864 = vadd.f32 %v2823, %v2863
          %v2865 = vpop.f32.mrb[0].mxu0
          %v2866 = vadd.f32 %v2825, %v2865
          %v2867 = vpop.f32.mrb[0].mxu0
          %v2868 = vpop.f32.mrb[0].mxu0
          %2869 = vdwg.mxu0
          %2870 = vmatprep.subr.bf16.mxu0 %v2477
          %2871 = vmatpush1.bf16.msra.mxu0 %v2476
          %2872 = vmatprep.subr.bf16.mxu0 %v2481
          %2873 = vmatpush1.bf16.msra.mxu0 %v2480
          %2874 = vmatprep.subr.bf16.mxu0 %v2485
          %2875 = vmatpush1.bf16.msra.mxu0 %v2484
          %2876 = vmatprep.subr.bf16.mxu0 %v2489
          %2877 = vmatpush1.bf16.msra.mxu0 %v2488
          %2878 = vmatprep.subr.bf16.mxu0 %v2493
          %2879 = vmatpush1.bf16.msra.mxu0 %v2492
          %2880 = vmatprep.subr.bf16.mxu0 %v2497
          %2881 = vmatpush1.bf16.msra.mxu0 %v2496
          %2882 = vmatprep.subr.bf16.mxu0 %v2501
          %2883 = vmatpush1.bf16.msra.mxu0 %v2500
          %2884 = vmatprep.subr.bf16.mxu0 %v2505
          %2885 = vmatpush1.bf16.msra.mxu0 %v2504
          %2886 = vmatprep.subr.bf16.mxu0 %v2509
          %2887 = vmatpush1.bf16.msra.mxu0 %v2508
          %2888 = vmatprep.subr.bf16.mxu0 %v2513
          %2889 = vmatpush1.bf16.msra.mxu0 %v2512
          %2890 = vmatprep.subr.bf16.mxu0 %v2517
          %2891 = vmatpush1.bf16.msra.mxu0 %v2516
          %2892 = vmatprep.subr.bf16.mxu0 %v2521
          %2893 = vmatpush1.bf16.msra.mxu0 %v2520
          %2894 = vmatprep.subr.bf16.mxu0 %v2525
          %2895 = vmatpush1.bf16.msra.mxu0 %v2524
          %2896 = vmatprep.subr.bf16.mxu0 %v2529
          %2897 = vmatpush1.bf16.msra.mxu0 %v2528
          %2898 = vmatprep.subr.bf16.mxu0 %v2533
          %2899 = vmatpush1.bf16.msra.mxu0 %v2532
          %2900 = vmatprep.subr.bf16.mxu0 %v2537
          %2901 = vmatpush1.bf16.msra.mxu0 %v2536
          %2902 = vmatprep.mubr.bf16.mxu0 %v2343
          %2903 = vmatmul.mubr.bf16.gmra.mrb[0].mxu0 %v2342
          %v2904 = vpop.f32.mrb[0].mxu0
          %v2905 = vadd.f32 %v2864, %v2904
          %v2906 = vpop.f32.mrb[0].mxu0
          %v2907 = vadd.f32 %v2866, %v2906
          %v2908 = vpop.f32.mrb[0].mxu0
          %v2909 = vpop.f32.mrb[0].mxu0
          %2910 = vdwg.mxu0
          %2911 = vmatprep.subr.bf16.mxu0 %v2541
          %2912 = vmatpush1.bf16.msra.mxu0 %v2540
          %2913 = vmatprep.subr.bf16.mxu0 %v2545
          %2914 = vmatpush1.bf16.msra.mxu0 %v2544
          %2915 = vmatprep.subr.bf16.mxu0 %v2549
          %2916 = vmatpush1.bf16.msra.mxu0 %v2548
          %2917 = vmatprep.subr.bf16.mxu0 %v2553
          %2918 = vmatpush1.bf16.msra.mxu0 %v2552
          %2919 = vmatprep.subr.bf16.mxu0 %v2557
          %2920 = vmatpush1.bf16.msra.mxu0 %v2556
          %2921 = vmatprep.subr.bf16.mxu0 %v2561
          %2922 = vmatpush1.bf16.msra.mxu0 %v2560
          %2923 = vmatprep.subr.bf16.mxu0 %v2565
          %2924 = vmatpush1.bf16.msra.mxu0 %v2564
          %2925 = vmatprep.subr.bf16.mxu0 %v2569
          %2926 = vmatpush1.bf16.msra.mxu0 %v2568
          %2927 = vmatprep.subr.bf16.mxu0 %v2573
          %2928 = vmatpush1.bf16.msra.mxu0 %v2572
          %2929 = vmatprep.subr.bf16.mxu0 %v2577
          %2930 = vmatpush1.bf16.msra.mxu0 %v2576
          %2931 = vmatprep.subr.bf16.mxu0 %v2581
          %2932 = vmatpush1.bf16.msra.mxu0 %v2580
          %2933 = vmatprep.subr.bf16.mxu0 %v2585
          %2934 = vmatpush1.bf16.msra.mxu0 %v2584
          %2935 = vmatprep.subr.bf16.mxu0 %v2589
          %2936 = vmatpush1.bf16.msra.mxu0 %v2588
          %2937 = vmatprep.subr.bf16.mxu0 %v2593
          %2938 = vmatpush1.bf16.msra.mxu0 %v2592
          %2939 = vmatprep.subr.bf16.mxu0 %v2597
          %2940 = vmatpush1.bf16.msra.mxu0 %v2596
          %2941 = vmatprep.subr.bf16.mxu0 %v2601
          %2942 = vmatpush1.bf16.msra.mxu0 %v2600
          %2943 = vmatprep.mubr.bf16.mxu0 %v2345
          %2944 = vmatmul.mubr.bf16.gmra.mrb[0].mxu0 %v2344
          %v2945 = vpop.f32.mrb[0].mxu0
          %v2946 = vadd.f32 %v2905, %v2945
          %v2947 = vpop.f32.mrb[0].mxu0
          %v2948 = vadd.f32 %v2907, %v2947
          %v2949 = vpop.f32.mrb[0].mxu0
          %v2950 = vpop.f32.mrb[0].mxu0
          %2951 = vdwg.mxu0
          %v2952 = vmax.f32 %v2782, 0.0
          %v2953 = vmax.f32 %v2784, 0.0
          %v2954 = vmax.f32 %v2946, 0.0
          %v2955 = vmax.f32 %v2948, 0.0
          %v2956 = vpack.c.bf16 %v2952, %v2952
          %v2957 = vpack.c.bf16 %v2953, %v2953
          %v2958 = vpack.c.bf16 %v2954, %v2954
          %v2959 = vpack.c.bf16 %v2955, %v2955
          %v2960 = vld [vmem:[#allocation4] sm:$0xff]
          %v2961 = vld [vmem:[#allocation4 + $0x8] sm:$0xff]
          %v2962 = vld [vmem:[#allocation4 + $0x10] sm:$0xff]
          %v2963 = vld [vmem:[#allocation4 + $0x18] sm:$0xff]
          %v2964 = vld [vmem:[#allocation4 + $0x20] sm:$0xff]
          %v2965 = vld [vmem:[#allocation4 + $0x28] sm:$0xff]
          %v2966 = vld [vmem:[#allocation4 + $0x30] sm:$0xff]
          %v2967 = vld [vmem:[#allocation4 + $0x38] sm:$0xff]
          %v2968 = vld [vmem:[#allocation4 + $0x40] sm:$0xff]
          %v2969 = vld [vmem:[#allocation4 + $0x48] sm:$0xff]
          %v2970 = vld [vmem:[#allocation4 + $0x50] sm:$0xff]
          %v2971 = vld [vmem:[#allocation4 + $0x58] sm:$0xff]
          %v2972 = vld [vmem:[#allocation4 + $0x60] sm:$0xff]
          %v2973 = vld [vmem:[#allocation4 + $0x68] sm:$0xff]
          %v2974 = vld [vmem:[#allocation4 + $0x70] sm:$0xff]
          %v2975 = vld [vmem:[#allocation4 + $0x78] sm:$0xff]
          %v2976 = vld [vmem:[#allocation4 + $0x80] sm:$0xff]
          %v2977 = vld [vmem:[#allocation4 + $0x88] sm:$0xff]
          %v2978 = vld [vmem:[#allocation4 + $0x90] sm:$0xff]
          %v2979 = vld [vmem:[#allocation4 + $0x98] sm:$0xff]
          %v2980 = vld [vmem:[#allocation4 + $0xa0] sm:$0xff]
          %v2981 = vld [vmem:[#allocation4 + $0xa8] sm:$0xff]
          %v2982 = vld [vmem:[#allocation4 + $0xb0] sm:$0xff]
          %v2983 = vld [vmem:[#allocation4 + $0xb8] sm:$0xff]
          %v2984 = vld [vmem:[#allocation4 + $0xc0] sm:$0xff]
          %v2985 = vld [vmem:[#allocation4 + $0xc8] sm:$0xff]
          %v2986 = vld [vmem:[#allocation4 + $0xd0] sm:$0xff]
          %v2987 = vld [vmem:[#allocation4 + $0xd8] sm:$0xff]
          %v2988 = vld [vmem:[#allocation4 + $0xe0] sm:$0xff]
          %v2989 = vld [vmem:[#allocation4 + $0xe8] sm:$0xff]
          %v2990 = vld [vmem:[#allocation4 + $0xf0] sm:$0xff]
          %v2991 = vld [vmem:[#allocation4 + $0xf8] sm:$0xff]
          %v2992 = vld [vmem:[#allocation4 + $0x100] sm:$0xff]
          %v2993 = vld [vmem:[#allocation4 + $0x108] sm:$0xff]
          %v2994 = vld [vmem:[#allocation4 + $0x110] sm:$0xff]
          %v2995 = vld [vmem:[#allocation4 + $0x118] sm:$0xff]
          %v2996 = vld [vmem:[#allocation4 + $0x120] sm:$0xff]
          %v2997 = vld [vmem:[#allocation4 + $0x128] sm:$0xff]
          %v2998 = vld [vmem:[#allocation4 + $0x130] sm:$0xff]
          %v2999 = vld [vmem:[#allocation4 + $0x138] sm:$0xff]
          %v3000 = vld [vmem:[#allocation4 + $0x140] sm:$0xff]
          %v3001 = vld [vmem:[#allocation4 + $0x148] sm:$0xff]
          %v3002 = vld [vmem:[#allocation4 + $0x150] sm:$0xff]
          %v3003 = vld [vmem:[#allocation4 + $0x158] sm:$0xff]
          %v3004 = vld [vmem:[#allocation4 + $0x160] sm:$0xff]
          %v3005 = vld [vmem:[#allocation4 + $0x168] sm:$0xff]
          %v3006 = vld [vmem:[#allocation4 + $0x170] sm:$0xff]
          %v3007 = vld [vmem:[#allocation4 + $0x178] sm:$0xff]
          %v3008 = vld [vmem:[#allocation4 + $0x180] sm:$0xff]
          %v3009 = vld [vmem:[#allocation4 + $0x188] sm:$0xff]
          %v3010 = vld [vmem:[#allocation4 + $0x190] sm:$0xff]
          %v3011 = vld [vmem:[#allocation4 + $0x198] sm:$0xff]
          %v3012 = vld [vmem:[#allocation4 + $0x1a0] sm:$0xff]
          %v3013 = vld [vmem:[#allocation4 + $0x1a8] sm:$0xff]
          %v3014 = vld [vmem:[#allocation4 + $0x1b0] sm:$0xff]
          %v3015 = vld [vmem:[#allocation4 + $0x1b8] sm:$0xff]
          %v3016 = vld [vmem:[#allocation4 + $0x1c0] sm:$0xff]
          %v3017 = vld [vmem:[#allocation4 + $0x1c8] sm:$0xff]
          %v3018 = vld [vmem:[#allocation4 + $0x1d0] sm:$0xff]
          %v3019 = vld [vmem:[#allocation4 + $0x1d8] sm:$0xff]
          %v3020 = vld [vmem:[#allocation4 + $0x1e0] sm:$0xff]
          %v3021 = vld [vmem:[#allocation4 + $0x1e8] sm:$0xff]
          %v3022 = vld [vmem:[#allocation4 + $0x1f0] sm:$0xff]
          %v3023 = vld [vmem:[#allocation4 + $0x1f8] sm:$0xff]
          %v3024 = vld [vmem:[#allocation21] sm:$0x3]
          %v3026 = vlaneseq
          %v3027 = vshrl.u32 %v3026, 7
          %v3028 = vsub.s32 0, %v3027
          %v3029 = vrot.slane %v3024, %v3028
          %v3030 = vlaneseq
          %v3031 = vshrl.u32 %v3030, 7
          %v3032 = vsub.s32 1, %v3031
          %v3033 = vrot.slane %v3024, %v3032
          %3036 = vmatprep.subr.bf16.mxu0 %v2961
          %3037 = vmatpush1.bf16.msra.mxu0 %v2960
          %3038 = vmatprep.subr.bf16.mxu0 %v2963
          %3039 = vmatpush1.bf16.msra.mxu0 %v2962
          %3040 = vmatprep.subr.bf16.mxu0 %v2965
          %3041 = vmatpush1.bf16.msra.mxu0 %v2964
          %3042 = vmatprep.subr.bf16.mxu0 %v2967
          %3043 = vmatpush1.bf16.msra.mxu0 %v2966
          %3044 = vmatprep.subr.bf16.mxu0 %v2969
          %3045 = vmatpush1.bf16.msra.mxu0 %v2968
          %3046 = vmatprep.subr.bf16.mxu0 %v2971
          %3047 = vmatpush1.bf16.msra.mxu0 %v2970
          %3048 = vmatprep.subr.bf16.mxu0 %v2973
          %3049 = vmatpush1.bf16.msra.mxu0 %v2972
          %3050 = vmatprep.subr.bf16.mxu0 %v2975
          %3051 = vmatpush1.bf16.msra.mxu0 %v2974
          %3052 = vmatprep.subr.bf16.mxu0 %v2977
          %3053 = vmatpush1.bf16.msra.mxu0 %v2976
          %3054 = vmatprep.subr.bf16.mxu0 %v2979
          %3055 = vmatpush1.bf16.msra.mxu0 %v2978
          %3056 = vmatprep.subr.bf16.mxu0 %v2981
          %3057 = vmatpush1.bf16.msra.mxu0 %v2980
          %3058 = vmatprep.subr.bf16.mxu0 %v2983
          %3059 = vmatpush1.bf16.msra.mxu0 %v2982
          %3060 = vmatprep.subr.bf16.mxu0 %v2985
          %3061 = vmatpush1.bf16.msra.mxu0 %v2984
          %3062 = vmatprep.subr.bf16.mxu0 %v2987
          %3063 = vmatpush1.bf16.msra.mxu0 %v2986
          %3064 = vmatprep.subr.bf16.mxu0 %v2989
          %3065 = vmatpush1.bf16.msra.mxu0 %v2988
          %3066 = vmatprep.subr.bf16.mxu0 %v2991
          %3067 = vmatpush1.bf16.msra.mxu0 %v2990
          %3068 = vmatprep.mubr.bf16.mxu0 %v2957
          %3069 = vmatmul.mubr.bf16.gmra.mrb[0].mxu0 %v2956
          %v3070 = vpop.f32.mrb[0].mxu0
          %v3071 = vadd.f32 %v3029, %v3070
          %v3072 = vpop.f32.mrb[0].mxu0
          %v3073 = vadd.f32 %v3033, %v3072
          %v3074 = vpop.f32.mrb[0].mxu0
          %v3075 = vpop.f32.mrb[0].mxu0
          %3076 = vdwg.mxu0
          %3077 = vmatprep.subr.bf16.mxu0 %v2993
          %3078 = vmatpush1.bf16.msra.mxu0 %v2992
          %3079 = vmatprep.subr.bf16.mxu0 %v2995
          %3080 = vmatpush1.bf16.msra.mxu0 %v2994
          %3081 = vmatprep.subr.bf16.mxu0 %v2997
          %3082 = vmatpush1.bf16.msra.mxu0 %v2996
          %3083 = vmatprep.subr.bf16.mxu0 %v2999
          %3084 = vmatpush1.bf16.msra.mxu0 %v2998
          %3085 = vmatprep.subr.bf16.mxu0 %v3001
          %3086 = vmatpush1.bf16.msra.mxu0 %v3000
          %3087 = vmatprep.subr.bf16.mxu0 %v3003
          %3088 = vmatpush1.bf16.msra.mxu0 %v3002
          %3089 = vmatprep.subr.bf16.mxu0 %v3005
          %3090 = vmatpush1.bf16.msra.mxu0 %v3004
          %3091 = vmatprep.subr.bf16.mxu0 %v3007
          %3092 = vmatpush1.bf16.msra.mxu0 %v3006
          %3093 = vmatprep.subr.bf16.mxu0 %v3009
          %3094 = vmatpush1.bf16.msra.mxu0 %v3008
          %3095 = vmatprep.subr.bf16.mxu0 %v3011
          %3096 = vmatpush1.bf16.msra.mxu0 %v3010
          %3097 = vmatprep.subr.bf16.mxu0 %v3013
          %3098 = vmatpush1.bf16.msra.mxu0 %v3012
          %3099 = vmatprep.subr.bf16.mxu0 %v3015
          %3100 = vmatpush1.bf16.msra.mxu0 %v3014
          %3101 = vmatprep.subr.bf16.mxu0 %v3017
          %3102 = vmatpush1.bf16.msra.mxu0 %v3016
          %3103 = vmatprep.subr.bf16.mxu0 %v3019
          %3104 = vmatpush1.bf16.msra.mxu0 %v3018
          %3105 = vmatprep.subr.bf16.mxu0 %v3021
          %3106 = vmatpush1.bf16.msra.mxu0 %v3020
          %3107 = vmatprep.subr.bf16.mxu0 %v3023
          %3108 = vmatpush1.bf16.msra.mxu0 %v3022
          %3109 = vmatprep.mubr.bf16.mxu0 %v2959
          %3110 = vmatmul.mubr.bf16.gmra.mrb[0].mxu0 %v2958
          %v3111 = vpop.f32.mrb[0].mxu0
          %v3112 = vadd.f32 %v3071, %v3111
          %v3113 = vpop.f32.mrb[0].mxu0
          %v3114 = vadd.f32 %v3073, %v3113
          %v3115 = vpop.f32.mrb[0].mxu0
          %v3116 = vpop.f32.mrb[0].mxu0
          %3117 = vdwg.mxu0
          %v3118 = vmax.f32 %v3112, 0.0
          %v3119 = vmax.f32 %v3114, 0.0
          %v3120 = vpack.c.bf16 %v3118, %v3118
          %v3121 = vpack.c.bf16 %v3119, %v3119
          %v3122 = vld [vmem:[#allocation5] sm:$0xff]
          %v3123 = vld [vmem:[#allocation5 + $0x8] sm:$0xff]
          %v3124 = vld [vmem:[#allocation5 + $0x10] sm:$0xff]
          %v3125 = vld [vmem:[#allocation5 + $0x18] sm:$0xff]
          %v3126 = vld [vmem:[#allocation5 + $0x20] sm:$0xff]
          %v3127 = vld [vmem:[#allocation5 + $0x28] sm:$0xff]
          %v3128 = vld [vmem:[#allocation5 + $0x30] sm:$0xff]
          %v3129 = vld [vmem:[#allocation5 + $0x38] sm:$0xff]
          %v3130 = vld [vmem:[#allocation5 + $0x40] sm:$0xff]
          %v3131 = vld [vmem:[#allocation5 + $0x48] sm:$0xff]
          %v3132 = vld [vmem:[#allocation5 + $0x50] sm:$0xff]
          %v3133 = vld [vmem:[#allocation5 + $0x58] sm:$0xff]
          %v3134 = vld [vmem:[#allocation5 + $0x60] sm:$0xff]
          %v3135 = vld [vmem:[#allocation5 + $0x68] sm:$0xff]
          %v3136 = vld [vmem:[#allocation5 + $0x70] sm:$0xff]
          %v3137 = vld [vmem:[#allocation5 + $0x78] sm:$0xff]
          %v3138 = vld [vmem:[#allocation5 + $0x80] sm:$0xff]
          %v3139 = vld [vmem:[#allocation5 + $0x88] sm:$0xff]
          %v3140 = vld [vmem:[#allocation5 + $0x90] sm:$0xff]
          %v3141 = vld [vmem:[#allocation5 + $0x98] sm:$0xff]
          %v3142 = vld [vmem:[#allocation5 + $0xa0] sm:$0xff]
          %v3143 = vld [vmem:[#allocation5 + $0xa8] sm:$0xff]
          %v3144 = vld [vmem:[#allocation5 + $0xb0] sm:$0xff]
          %v3145 = vld [vmem:[#allocation5 + $0xb8] sm:$0xff]
          %v3146 = vld [vmem:[#allocation5 + $0xc0] sm:$0xff]
          %v3147 = vld [vmem:[#allocation5 + $0xc8] sm:$0xff]
          %v3148 = vld [vmem:[#allocation5 + $0xd0] sm:$0xff]
          %v3149 = vld [vmem:[#allocation5 + $0xd8] sm:$0xff]
          %v3150 = vld [vmem:[#allocation5 + $0xe0] sm:$0xff]
          %v3151 = vld [vmem:[#allocation5 + $0xe8] sm:$0xff]
          %v3152 = vld [vmem:[#allocation5 + $0xf0] sm:$0xff]
          %v3153 = vld [vmem:[#allocation5 + $0xf8] sm:$0xff]
          %v3154 = vld [vmem:[#allocation5 + $0x100] sm:$0xff]
          %v3155 = vld [vmem:[#allocation5 + $0x108] sm:$0xff]
          %v3156 = vld [vmem:[#allocation5 + $0x110] sm:$0xff]
          %v3157 = vld [vmem:[#allocation5 + $0x118] sm:$0xff]
          %v3158 = vld [vmem:[#allocation5 + $0x120] sm:$0xff]
          %v3159 = vld [vmem:[#allocation5 + $0x128] sm:$0xff]
          %v3160 = vld [vmem:[#allocation5 + $0x130] sm:$0xff]
          %v3161 = vld [vmem:[#allocation5 + $0x138] sm:$0xff]
          %v3162 = vld [vmem:[#allocation5 + $0x140] sm:$0xff]
          %v3163 = vld [vmem:[#allocation5 + $0x148] sm:$0xff]
          %v3164 = vld [vmem:[#allocation5 + $0x150] sm:$0xff]
          %v3165 = vld [vmem:[#allocation5 + $0x158] sm:$0xff]
          %v3166 = vld [vmem:[#allocation5 + $0x160] sm:$0xff]
          %v3167 = vld [vmem:[#allocation5 + $0x168] sm:$0xff]
          %v3168 = vld [vmem:[#allocation5 + $0x170] sm:$0xff]
          %v3169 = vld [vmem:[#allocation5 + $0x178] sm:$0xff]
          %v3170 = vld [vmem:[#allocation5 + $0x180] sm:$0xff]
          %v3171 = vld [vmem:[#allocation5 + $0x188] sm:$0xff]
          %v3172 = vld [vmem:[#allocation5 + $0x190] sm:$0xff]
          %v3173 = vld [vmem:[#allocation5 + $0x198] sm:$0xff]
          %v3174 = vld [vmem:[#allocation5 + $0x1a0] sm:$0xff]
          %v3175 = vld [vmem:[#allocation5 + $0x1a8] sm:$0xff]
          %v3176 = vld [vmem:[#allocation5 + $0x1b0] sm:$0xff]
          %v3177 = vld [vmem:[#allocation5 + $0x1b8] sm:$0xff]
          %v3178 = vld [vmem:[#allocation5 + $0x1c0] sm:$0xff]
          %v3179 = vld [vmem:[#allocation5 + $0x1c8] sm:$0xff]
          %v3180 = vld [vmem:[#allocation5 + $0x1d0] sm:$0xff]
          %v3181 = vld [vmem:[#allocation5 + $0x1d8] sm:$0xff]
          %v3182 = vld [vmem:[#allocation5 + $0x1e0] sm:$0xff]
          %v3183 = vld [vmem:[#allocation5 + $0x1e8] sm:$0xff]
          %v3184 = vld [vmem:[#allocation5 + $0x1f0] sm:$0xff]
          %v3185 = vld [vmem:[#allocation5 + $0x1f8] sm:$0xff]
          %v3186 = vld [vmem:[#allocation5 + $0x200] sm:$0xff]
          %v3187 = vld [vmem:[#allocation5 + $0x208] sm:$0xff]
          %v3188 = vld [vmem:[#allocation5 + $0x210] sm:$0xff]
          %v3189 = vld [vmem:[#allocation5 + $0x218] sm:$0xff]
          %v3190 = vld [vmem:[#allocation5 + $0x220] sm:$0xff]
          %v3191 = vld [vmem:[#allocation5 + $0x228] sm:$0xff]
          %v3192 = vld [vmem:[#allocation5 + $0x230] sm:$0xff]
          %v3193 = vld [vmem:[#allocation5 + $0x238] sm:$0xff]
          %v3194 = vld [vmem:[#allocation5 + $0x240] sm:$0xff]
          %v3195 = vld [vmem:[#allocation5 + $0x248] sm:$0xff]
          %v3196 = vld [vmem:[#allocation5 + $0x250] sm:$0xff]
          %v3197 = vld [vmem:[#allocation5 + $0x258] sm:$0xff]
          %v3198 = vld [vmem:[#allocation5 + $0x260] sm:$0xff]
          %v3199 = vld [vmem:[#allocation5 + $0x268] sm:$0xff]
          %v3200 = vld [vmem:[#allocation5 + $0x270] sm:$0xff]
          %v3201 = vld [vmem:[#allocation5 + $0x278] sm:$0xff]
          %v3202 = vld [vmem:[#allocation5 + $0x280] sm:$0xff]
          %v3203 = vld [vmem:[#allocation5 + $0x288] sm:$0xff]
          %v3204 = vld [vmem:[#allocation5 + $0x290] sm:$0xff]
          %v3205 = vld [vmem:[#allocation5 + $0x298] sm:$0xff]
          %v3206 = vld [vmem:[#allocation5 + $0x2a0] sm:$0xff]
          %v3207 = vld [vmem:[#allocation5 + $0x2a8] sm:$0xff]
          %v3208 = vld [vmem:[#allocation5 + $0x2b0] sm:$0xff]
          %v3209 = vld [vmem:[#allocation5 + $0x2b8] sm:$0xff]
          %v3210 = vld [vmem:[#allocation5 + $0x2c0] sm:$0xff]
          %v3211 = vld [vmem:[#allocation5 + $0x2c8] sm:$0xff]
          %v3212 = vld [vmem:[#allocation5 + $0x2d0] sm:$0xff]
          %v3213 = vld [vmem:[#allocation5 + $0x2d8] sm:$0xff]
          %v3214 = vld [vmem:[#allocation5 + $0x2e0] sm:$0xff]
          %v3215 = vld [vmem:[#allocation5 + $0x2e8] sm:$0xff]
          %v3216 = vld [vmem:[#allocation5 + $0x2f0] sm:$0xff]
          %v3217 = vld [vmem:[#allocation5 + $0x2f8] sm:$0xff]
          %v3218 = vld [vmem:[#allocation5 + $0x300] sm:$0xff]
          %v3219 = vld [vmem:[#allocation5 + $0x308] sm:$0xff]
          %v3220 = vld [vmem:[#allocation5 + $0x310] sm:$0xff]
          %v3221 = vld [vmem:[#allocation5 + $0x318] sm:$0xff]
          %v3222 = vld [vmem:[#allocation5 + $0x320] sm:$0xff]
          %v3223 = vld [vmem:[#allocation5 + $0x328] sm:$0xff]
          %v3224 = vld [vmem:[#allocation5 + $0x330] sm:$0xff]
          %v3225 = vld [vmem:[#allocation5 + $0x338] sm:$0xff]
          %v3226 = vld [vmem:[#allocation5 + $0x340] sm:$0xff]
          %v3227 = vld [vmem:[#allocation5 + $0x348] sm:$0xff]
          %v3228 = vld [vmem:[#allocation5 + $0x350] sm:$0xff]
          %v3229 = vld [vmem:[#allocation5 + $0x358] sm:$0xff]
          %v3230 = vld [vmem:[#allocation5 + $0x360] sm:$0xff]
          %v3231 = vld [vmem:[#allocation5 + $0x368] sm:$0xff]
          %v3232 = vld [vmem:[#allocation5 + $0x370] sm:$0xff]
          %v3233 = vld [vmem:[#allocation5 + $0x378] sm:$0xff]
          %v3234 = vld [vmem:[#allocation5 + $0x380] sm:$0xff]
          %v3235 = vld [vmem:[#allocation5 + $0x388] sm:$0xff]
          %v3236 = vld [vmem:[#allocation5 + $0x390] sm:$0xff]
          %v3237 = vld [vmem:[#allocation5 + $0x398] sm:$0xff]
          %v3238 = vld [vmem:[#allocation5 + $0x3a0] sm:$0xff]
          %v3239 = vld [vmem:[#allocation5 + $0x3a8] sm:$0xff]
          %v3240 = vld [vmem:[#allocation5 + $0x3b0] sm:$0xff]
          %v3241 = vld [vmem:[#allocation5 + $0x3b8] sm:$0xff]
          %v3242 = vld [vmem:[#allocation5 + $0x3c0] sm:$0xff]
          %v3243 = vld [vmem:[#allocation5 + $0x3c8] sm:$0xff]
          %v3244 = vld [vmem:[#allocation5 + $0x3d0] sm:$0xff]
          %v3245 = vld [vmem:[#allocation5 + $0x3d8] sm:$0xff]
          %v3246 = vld [vmem:[#allocation5 + $0x3e0] sm:$0xff]
          %v3247 = vld [vmem:[#allocation5 + $0x3e8] sm:$0xff]
          %v3248 = vld [vmem:[#allocation5 + $0x3f0] sm:$0xff]
          %v3249 = vld [vmem:[#allocation5 + $0x3f8] sm:$0xff]
          %v3250 = vld [vmem:[#allocation5 + $0x400] sm:$0xff]
          %v3251 = vld [vmem:[#allocation5 + $0x408] sm:$0xff]
          %v3252 = vld [vmem:[#allocation5 + $0x410] sm:$0xff]
          %v3253 = vld [vmem:[#allocation5 + $0x418] sm:$0xff]
          %v3254 = vld [vmem:[#allocation5 + $0x420] sm:$0xff]
          %v3255 = vld [vmem:[#allocation5 + $0x428] sm:$0xff]
          %v3256 = vld [vmem:[#allocation5 + $0x430] sm:$0xff]
          %v3257 = vld [vmem:[#allocation5 + $0x438] sm:$0xff]
          %v3258 = vld [vmem:[#allocation5 + $0x440] sm:$0xff]
          %v3259 = vld [vmem:[#allocation5 + $0x448] sm:$0xff]
          %v3260 = vld [vmem:[#allocation5 + $0x450] sm:$0xff]
          %v3261 = vld [vmem:[#allocation5 + $0x458] sm:$0xff]
          %v3262 = vld [vmem:[#allocation5 + $0x460] sm:$0xff]
          %v3263 = vld [vmem:[#allocation5 + $0x468] sm:$0xff]
          %v3264 = vld [vmem:[#allocation5 + $0x470] sm:$0xff]
          %v3265 = vld [vmem:[#allocation5 + $0x478] sm:$0xff]
          %v3266 = vld [vmem:[#allocation5 + $0x480] sm:$0xff]
          %v3267 = vld [vmem:[#allocation5 + $0x488] sm:$0xff]
          %v3268 = vld [vmem:[#allocation5 + $0x490] sm:$0xff]
          %v3269 = vld [vmem:[#allocation5 + $0x498] sm:$0xff]
          %v3270 = vld [vmem:[#allocation5 + $0x4a0] sm:$0xff]
          %v3271 = vld [vmem:[#allocation5 + $0x4a8] sm:$0xff]
          %v3272 = vld [vmem:[#allocation5 + $0x4b0] sm:$0xff]
          %v3273 = vld [vmem:[#allocation5 + $0x4b8] sm:$0xff]
          %v3274 = vld [vmem:[#allocation5 + $0x4c0] sm:$0xff]
          %v3275 = vld [vmem:[#allocation5 + $0x4c8] sm:$0xff]
          %v3276 = vld [vmem:[#allocation5 + $0x4d0] sm:$0xff]
          %v3277 = vld [vmem:[#allocation5 + $0x4d8] sm:$0xff]
          %v3278 = vld [vmem:[#allocation5 + $0x4e0] sm:$0xff]
          %v3279 = vld [vmem:[#allocation5 + $0x4e8] sm:$0xff]
          %v3280 = vld [vmem:[#allocation5 + $0x4f0] sm:$0xff]
          %v3281 = vld [vmem:[#allocation5 + $0x4f8] sm:$0xff]
          %v3282 = vld [vmem:[#allocation5 + $0x500] sm:$0xff]
          %v3283 = vld [vmem:[#allocation5 + $0x508] sm:$0xff]
          %v3284 = vld [vmem:[#allocation5 + $0x510] sm:$0xff]
          %v3285 = vld [vmem:[#allocation5 + $0x518] sm:$0xff]
          %v3286 = vld [vmem:[#allocation5 + $0x520] sm:$0xff]
          %v3287 = vld [vmem:[#allocation5 + $0x528] sm:$0xff]
          %v3288 = vld [vmem:[#allocation5 + $0x530] sm:$0xff]
          %v3289 = vld [vmem:[#allocation5 + $0x538] sm:$0xff]
          %v3290 = vld [vmem:[#allocation5 + $0x540] sm:$0xff]
          %v3291 = vld [vmem:[#allocation5 + $0x548] sm:$0xff]
          %v3292 = vld [vmem:[#allocation5 + $0x550] sm:$0xff]
          %v3293 = vld [vmem:[#allocation5 + $0x558] sm:$0xff]
          %v3294 = vld [vmem:[#allocation5 + $0x560] sm:$0xff]
          %v3295 = vld [vmem:[#allocation5 + $0x568] sm:$0xff]
          %v3296 = vld [vmem:[#allocation5 + $0x570] sm:$0xff]
          %v3297 = vld [vmem:[#allocation5 + $0x578] sm:$0xff]
          %v3298 = vld [vmem:[#allocation5 + $0x580] sm:$0xff]
          %v3299 = vld [vmem:[#allocation5 + $0x588] sm:$0xff]
          %v3300 = vld [vmem:[#allocation5 + $0x590] sm:$0xff]
          %v3301 = vld [vmem:[#allocation5 + $0x598] sm:$0xff]
          %v3302 = vld [vmem:[#allocation5 + $0x5a0] sm:$0xff]
          %v3303 = vld [vmem:[#allocation5 + $0x5a8] sm:$0xff]
          %v3304 = vld [vmem:[#allocation5 + $0x5b0] sm:$0xff]
          %v3305 = vld [vmem:[#allocation5 + $0x5b8] sm:$0xff]
          %v3306 = vld [vmem:[#allocation5 + $0x5c0] sm:$0xff]
          %v3307 = vld [vmem:[#allocation5 + $0x5c8] sm:$0xff]
          %v3308 = vld [vmem:[#allocation5 + $0x5d0] sm:$0xff]
          %v3309 = vld [vmem:[#allocation5 + $0x5d8] sm:$0xff]
          %v3310 = vld [vmem:[#allocation5 + $0x5e0] sm:$0xff]
          %v3311 = vld [vmem:[#allocation5 + $0x5e8] sm:$0xff]
          %v3312 = vld [vmem:[#allocation5 + $0x5f0] sm:$0xff]
          %v3313 = vld [vmem:[#allocation5 + $0x5f8] sm:$0xff]
          %v3314 = vld [vmem:[#allocation5 + $0x600] sm:$0xff]
          %v3315 = vld [vmem:[#allocation5 + $0x608] sm:$0xff]
          %v3316 = vld [vmem:[#allocation5 + $0x610] sm:$0xff]
          %v3317 = vld [vmem:[#allocation5 + $0x618] sm:$0xff]
          %v3318 = vld [vmem:[#allocation5 + $0x620] sm:$0xff]
          %v3319 = vld [vmem:[#allocation5 + $0x628] sm:$0xff]
          %v3320 = vld [vmem:[#allocation5 + $0x630] sm:$0xff]
          %v3321 = vld [vmem:[#allocation5 + $0x638] sm:$0xff]
          %v3322 = vld [vmem:[#allocation5 + $0x640] sm:$0xff]
          %v3323 = vld [vmem:[#allocation5 + $0x648] sm:$0xff]
          %v3324 = vld [vmem:[#allocation5 + $0x650] sm:$0xff]
          %v3325 = vld [vmem:[#allocation5 + $0x658] sm:$0xff]
          %v3326 = vld [vmem:[#allocation5 + $0x660] sm:$0xff]
          %v3327 = vld [vmem:[#allocation5 + $0x668] sm:$0xff]
          %v3328 = vld [vmem:[#allocation5 + $0x670] sm:$0xff]
          %v3329 = vld [vmem:[#allocation5 + $0x678] sm:$0xff]
          %v3330 = vld [vmem:[#allocation5 + $0x680] sm:$0xff]
          %v3331 = vld [vmem:[#allocation5 + $0x688] sm:$0xff]
          %v3332 = vld [vmem:[#allocation5 + $0x690] sm:$0xff]
          %v3333 = vld [vmem:[#allocation5 + $0x698] sm:$0xff]
          %v3334 = vld [vmem:[#allocation5 + $0x6a0] sm:$0xff]
          %v3335 = vld [vmem:[#allocation5 + $0x6a8] sm:$0xff]
          %v3336 = vld [vmem:[#allocation5 + $0x6b0] sm:$0xff]
          %v3337 = vld [vmem:[#allocation5 + $0x6b8] sm:$0xff]
          %v3338 = vld [vmem:[#allocation5 + $0x6c0] sm:$0xff]
          %v3339 = vld [vmem:[#allocation5 + $0x6c8] sm:$0xff]
          %v3340 = vld [vmem:[#allocation5 + $0x6d0] sm:$0xff]
          %v3341 = vld [vmem:[#allocation5 + $0x6d8] sm:$0xff]
          %v3342 = vld [vmem:[#allocation5 + $0x6e0] sm:$0xff]
          %v3343 = vld [vmem:[#allocation5 + $0x6e8] sm:$0xff]
          %v3344 = vld [vmem:[#allocation5 + $0x6f0] sm:$0xff]
          %v3345 = vld [vmem:[#allocation5 + $0x6f8] sm:$0xff]
          %v3346 = vld [vmem:[#allocation5 + $0x700] sm:$0xff]
          %v3347 = vld [vmem:[#allocation5 + $0x708] sm:$0xff]
          %v3348 = vld [vmem:[#allocation5 + $0x710] sm:$0xff]
          %v3349 = vld [vmem:[#allocation5 + $0x718] sm:$0xff]
          %v3350 = vld [vmem:[#allocation5 + $0x720] sm:$0xff]
          %v3351 = vld [vmem:[#allocation5 + $0x728] sm:$0xff]
          %v3352 = vld [vmem:[#allocation5 + $0x730] sm:$0xff]
          %v3353 = vld [vmem:[#allocation5 + $0x738] sm:$0xff]
          %v3354 = vld [vmem:[#allocation5 + $0x740] sm:$0xff]
          %v3355 = vld [vmem:[#allocation5 + $0x748] sm:$0xff]
          %v3356 = vld [vmem:[#allocation5 + $0x750] sm:$0xff]
          %v3357 = vld [vmem:[#allocation5 + $0x758] sm:$0xff]
          %v3358 = vld [vmem:[#allocation5 + $0x760] sm:$0xff]
          %v3359 = vld [vmem:[#allocation5 + $0x768] sm:$0xff]
          %v3360 = vld [vmem:[#allocation5 + $0x770] sm:$0xff]
          %v3361 = vld [vmem:[#allocation5 + $0x778] sm:$0xff]
          %v3362 = vld [vmem:[#allocation5 + $0x780] sm:$0xff]
          %v3363 = vld [vmem:[#allocation5 + $0x788] sm:$0xff]
          %v3364 = vld [vmem:[#allocation5 + $0x790] sm:$0xff]
          %v3365 = vld [vmem:[#allocation5 + $0x798] sm:$0xff]
          %v3366 = vld [vmem:[#allocation5 + $0x7a0] sm:$0xff]
          %v3367 = vld [vmem:[#allocation5 + $0x7a8] sm:$0xff]
          %v3368 = vld [vmem:[#allocation5 + $0x7b0] sm:$0xff]
          %v3369 = vld [vmem:[#allocation5 + $0x7b8] sm:$0xff]
          %v3370 = vld [vmem:[#allocation5 + $0x7c0] sm:$0xff]
          %v3371 = vld [vmem:[#allocation5 + $0x7c8] sm:$0xff]
          %v3372 = vld [vmem:[#allocation5 + $0x7d0] sm:$0xff]
          %v3373 = vld [vmem:[#allocation5 + $0x7d8] sm:$0xff]
          %v3374 = vld [vmem:[#allocation5 + $0x7e0] sm:$0xff]
          %v3375 = vld [vmem:[#allocation5 + $0x7e8] sm:$0xff]
          %v3376 = vld [vmem:[#allocation5 + $0x7f0] sm:$0xff]
          %v3377 = vld [vmem:[#allocation5 + $0x7f8] sm:$0xff]
          %v3378 = vld [vmem:[#allocation5 + $0x800] sm:$0xff]
          %v3379 = vld [vmem:[#allocation5 + $0x808] sm:$0xff]
          %v3380 = vld [vmem:[#allocation5 + $0x810] sm:$0xff]
          %v3381 = vld [vmem:[#allocation5 + $0x818] sm:$0xff]
          %v3382 = vld [vmem:[#allocation5 + $0x820] sm:$0xff]
          %v3383 = vld [vmem:[#allocation5 + $0x828] sm:$0xff]
          %v3384 = vld [vmem:[#allocation5 + $0x830] sm:$0xff]
          %v3385 = vld [vmem:[#allocation5 + $0x838] sm:$0xff]
          %v3386 = vld [vmem:[#allocation5 + $0x840] sm:$0xff]
          %v3387 = vld [vmem:[#allocation5 + $0x848] sm:$0xff]
          %v3388 = vld [vmem:[#allocation5 + $0x850] sm:$0xff]
          %v3389 = vld [vmem:[#allocation5 + $0x858] sm:$0xff]
          %v3390 = vld [vmem:[#allocation5 + $0x860] sm:$0xff]
          %v3391 = vld [vmem:[#allocation5 + $0x868] sm:$0xff]
          %v3392 = vld [vmem:[#allocation5 + $0x870] sm:$0xff]
          %v3393 = vld [vmem:[#allocation5 + $0x878] sm:$0xff]
          %v3394 = vld [vmem:[#allocation5 + $0x880] sm:$0xff]
          %v3395 = vld [vmem:[#allocation5 + $0x888] sm:$0xff]
          %v3396 = vld [vmem:[#allocation5 + $0x890] sm:$0xff]
          %v3397 = vld [vmem:[#allocation5 + $0x898] sm:$0xff]
          %v3398 = vld [vmem:[#allocation5 + $0x8a0] sm:$0xff]
          %v3399 = vld [vmem:[#allocation5 + $0x8a8] sm:$0xff]
          %v3400 = vld [vmem:[#allocation5 + $0x8b0] sm:$0xff]
          %v3401 = vld [vmem:[#allocation5 + $0x8b8] sm:$0xff]
          %v3402 = vld [vmem:[#allocation5 + $0x8c0] sm:$0xff]
          %v3403 = vld [vmem:[#allocation5 + $0x8c8] sm:$0xff]
          %v3404 = vld [vmem:[#allocation5 + $0x8d0] sm:$0xff]
          %v3405 = vld [vmem:[#allocation5 + $0x8d8] sm:$0xff]
          %v3406 = vld [vmem:[#allocation5 + $0x8e0] sm:$0xff]
          %v3407 = vld [vmem:[#allocation5 + $0x8e8] sm:$0xff]
          %v3408 = vld [vmem:[#allocation5 + $0x8f0] sm:$0xff]
          %v3409 = vld [vmem:[#allocation5 + $0x8f8] sm:$0xff]
          %v3410 = vld [vmem:[#allocation5 + $0x900] sm:$0xff]
          %v3411 = vld [vmem:[#allocation5 + $0x908] sm:$0xff]
          %v3412 = vld [vmem:[#allocation5 + $0x910] sm:$0xff]
          %v3413 = vld [vmem:[#allocation5 + $0x918] sm:$0xff]
          %v3414 = vld [vmem:[#allocation5 + $0x920] sm:$0xff]
          %v3415 = vld [vmem:[#allocation5 + $0x928] sm:$0xff]
          %v3416 = vld [vmem:[#allocation5 + $0x930] sm:$0xff]
          %v3417 = vld [vmem:[#allocation5 + $0x938] sm:$0xff]
          %v3418 = vld [vmem:[#allocation5 + $0x940] sm:$0xff]
          %v3419 = vld [vmem:[#allocation5 + $0x948] sm:$0xff]
          %v3420 = vld [vmem:[#allocation5 + $0x950] sm:$0xff]
          %v3421 = vld [vmem:[#allocation5 + $0x958] sm:$0xff]
          %v3422 = vld [vmem:[#allocation5 + $0x960] sm:$0xff]
          %v3423 = vld [vmem:[#allocation5 + $0x968] sm:$0xff]
          %v3424 = vld [vmem:[#allocation5 + $0x970] sm:$0xff]
          %v3425 = vld [vmem:[#allocation5 + $0x978] sm:$0xff]
          %v3426 = vld [vmem:[#allocation5 + $0x980] sm:$0xff]
          %v3427 = vld [vmem:[#allocation5 + $0x988] sm:$0xff]
          %v3428 = vld [vmem:[#allocation5 + $0x990] sm:$0xff]
          %v3429 = vld [vmem:[#allocation5 + $0x998] sm:$0xff]
          %v3430 = vld [vmem:[#allocation5 + $0x9a0] sm:$0xff]
          %v3431 = vld [vmem:[#allocation5 + $0x9a8] sm:$0xff]
          %v3432 = vld [vmem:[#allocation5 + $0x9b0] sm:$0xff]
          %v3433 = vld [vmem:[#allocation5 + $0x9b8] sm:$0xff]
          %v3434 = vld [vmem:[#allocation5 + $0x9c0] sm:$0xff]
          %v3435 = vld [vmem:[#allocation5 + $0x9c8] sm:$0xff]
          %v3436 = vld [vmem:[#allocation5 + $0x9d0] sm:$0xff]
          %v3437 = vld [vmem:[#allocation5 + $0x9d8] sm:$0xff]
          %v3438 = vld [vmem:[#allocation5 + $0x9e0] sm:$0xff]
          %v3439 = vld [vmem:[#allocation5 + $0x9e8] sm:$0xff]
          %v3440 = vld [vmem:[#allocation5 + $0x9f0] sm:$0xff]
          %v3441 = vld [vmem:[#allocation5 + $0x9f8] sm:$0xff]
          %v3442 = vld [vmem:[#allocation5 + $0xa00] sm:$0xff]
          %v3443 = vld [vmem:[#allocation5 + $0xa08] sm:$0xff]
          %v3444 = vld [vmem:[#allocation5 + $0xa10] sm:$0xff]
          %v3445 = vld [vmem:[#allocation5 + $0xa18] sm:$0xff]
          %v3446 = vld [vmem:[#allocation5 + $0xa20] sm:$0xff]
          %v3447 = vld [vmem:[#allocation5 + $0xa28] sm:$0xff]
          %v3448 = vld [vmem:[#allocation5 + $0xa30] sm:$0xff]
          %v3449 = vld [vmem:[#allocation5 + $0xa38] sm:$0xff]
          %v3450 = vld [vmem:[#allocation5 + $0xa40] sm:$0xff]
          %v3451 = vld [vmem:[#allocation5 + $0xa48] sm:$0xff]
          %v3452 = vld [vmem:[#allocation5 + $0xa50] sm:$0xff]
          %v3453 = vld [vmem:[#allocation5 + $0xa58] sm:$0xff]
          %v3454 = vld [vmem:[#allocation5 + $0xa60] sm:$0xff]
          %v3455 = vld [vmem:[#allocation5 + $0xa68] sm:$0xff]
          %v3456 = vld [vmem:[#allocation5 + $0xa70] sm:$0xff]
          %v3457 = vld [vmem:[#allocation5 + $0xa78] sm:$0xff]
          %v3458 = vld [vmem:[#allocation5 + $0xa80] sm:$0xff]
          %v3459 = vld [vmem:[#allocation5 + $0xa88] sm:$0xff]
          %v3460 = vld [vmem:[#allocation5 + $0xa90] sm:$0xff]
          %v3461 = vld [vmem:[#allocation5 + $0xa98] sm:$0xff]
          %v3462 = vld [vmem:[#allocation5 + $0xaa0] sm:$0xff]
          %v3463 = vld [vmem:[#allocation5 + $0xaa8] sm:$0xff]
          %v3464 = vld [vmem:[#allocation5 + $0xab0] sm:$0xff]
          %v3465 = vld [vmem:[#allocation5 + $0xab8] sm:$0xff]
          %v3466 = vld [vmem:[#allocation5 + $0xac0] sm:$0xff]
          %v3467 = vld [vmem:[#allocation5 + $0xac8] sm:$0xff]
          %v3468 = vld [vmem:[#allocation5 + $0xad0] sm:$0xff]
          %v3469 = vld [vmem:[#allocation5 + $0xad8] sm:$0xff]
          %v3470 = vld [vmem:[#allocation5 + $0xae0] sm:$0xff]
          %v3471 = vld [vmem:[#allocation5 + $0xae8] sm:$0xff]
          %v3472 = vld [vmem:[#allocation5 + $0xaf0] sm:$0xff]
          %v3473 = vld [vmem:[#allocation5 + $0xaf8] sm:$0xff]
          %v3474 = vld [vmem:[#allocation5 + $0xb00] sm:$0xff]
          %v3475 = vld [vmem:[#allocation5 + $0xb08] sm:$0xff]
          %v3476 = vld [vmem:[#allocation5 + $0xb10] sm:$0xff]
          %v3477 = vld [vmem:[#allocation5 + $0xb18] sm:$0xff]
          %v3478 = vld [vmem:[#allocation5 + $0xb20] sm:$0xff]
          %v3479 = vld [vmem:[#allocation5 + $0xb28] sm:$0xff]
          %v3480 = vld [vmem:[#allocation5 + $0xb30] sm:$0xff]
          %v3481 = vld [vmem:[#allocation5 + $0xb38] sm:$0xff]
          %v3482 = vld [vmem:[#allocation5 + $0xb40] sm:$0xff]
          %v3483 = vld [vmem:[#allocation5 + $0xb48] sm:$0xff]
          %v3484 = vld [vmem:[#allocation5 + $0xb50] sm:$0xff]
          %v3485 = vld [vmem:[#allocation5 + $0xb58] sm:$0xff]
          %v3486 = vld [vmem:[#allocation5 + $0xb60] sm:$0xff]
          %v3487 = vld [vmem:[#allocation5 + $0xb68] sm:$0xff]
          %v3488 = vld [vmem:[#allocation5 + $0xb70] sm:$0xff]
          %v3489 = vld [vmem:[#allocation5 + $0xb78] sm:$0xff]
          %v3490 = vld [vmem:[#allocation5 + $0xb80] sm:$0xff]
          %v3491 = vld [vmem:[#allocation5 + $0xb88] sm:$0xff]
          %v3492 = vld [vmem:[#allocation5 + $0xb90] sm:$0xff]
          %v3493 = vld [vmem:[#allocation5 + $0xb98] sm:$0xff]
          %v3494 = vld [vmem:[#allocation5 + $0xba0] sm:$0xff]
          %v3495 = vld [vmem:[#allocation5 + $0xba8] sm:$0xff]
          %v3496 = vld [vmem:[#allocation5 + $0xbb0] sm:$0xff]
          %v3497 = vld [vmem:[#allocation5 + $0xbb8] sm:$0xff]
          %v3498 = vld [vmem:[#allocation5 + $0xbc0] sm:$0xff]
          %v3499 = vld [vmem:[#allocation5 + $0xbc8] sm:$0xff]
          %v3500 = vld [vmem:[#allocation5 + $0xbd0] sm:$0xff]
          %v3501 = vld [vmem:[#allocation5 + $0xbd8] sm:$0xff]
          %v3502 = vld [vmem:[#allocation5 + $0xbe0] sm:$0xff]
          %v3503 = vld [vmem:[#allocation5 + $0xbe8] sm:$0xff]
          %v3504 = vld [vmem:[#allocation5 + $0xbf0] sm:$0xff]
          %v3505 = vld [vmem:[#allocation5 + $0xbf8] sm:$0xff]
          %v3506 = vld [vmem:[#allocation5 + $0xc00] sm:$0xff]
          %v3507 = vld [vmem:[#allocation5 + $0xc08] sm:$0xff]
          %v3508 = vld [vmem:[#allocation5 + $0xc10] sm:$0xff]
          %v3509 = vld [vmem:[#allocation5 + $0xc18] sm:$0xff]
          %v3510 = vld [vmem:[#allocation5 + $0xc20] sm:$0xff]
          %v3511 = vld [vmem:[#allocation5 + $0xc28] sm:$0xff]
          %v3512 = vld [vmem:[#allocation5 + $0xc30] sm:$0xff]
          %v3513 = vld [vmem:[#allocation5 + $0xc38] sm:$0xff]
          %v3514 = vld [vmem:[#allocation5 + $0xc40] sm:$0xff]
          %v3515 = vld [vmem:[#allocation5 + $0xc48] sm:$0xff]
          %v3516 = vld [vmem:[#allocation5 + $0xc50] sm:$0xff]
          %v3517 = vld [vmem:[#allocation5 + $0xc58] sm:$0xff]
          %v3518 = vld [vmem:[#allocation5 + $0xc60] sm:$0xff]
          %v3519 = vld [vmem:[#allocation5 + $0xc68] sm:$0xff]
          %v3520 = vld [vmem:[#allocation5 + $0xc70] sm:$0xff]
          %v3521 = vld [vmem:[#allocation5 + $0xc78] sm:$0xff]
          %v3522 = vld [vmem:[#allocation5 + $0xc80] sm:$0xff]
          %v3523 = vld [vmem:[#allocation5 + $0xc88] sm:$0xff]
          %v3524 = vld [vmem:[#allocation5 + $0xc90] sm:$0xff]
          %v3525 = vld [vmem:[#allocation5 + $0xc98] sm:$0xff]
          %v3526 = vld [vmem:[#allocation5 + $0xca0] sm:$0xff]
          %v3527 = vld [vmem:[#allocation5 + $0xca8] sm:$0xff]
          %v3528 = vld [vmem:[#allocation5 + $0xcb0] sm:$0xff]
          %v3529 = vld [vmem:[#allocation5 + $0xcb8] sm:$0xff]
          %v3530 = vld [vmem:[#allocation5 + $0xcc0] sm:$0xff]
          %v3531 = vld [vmem:[#allocation5 + $0xcc8] sm:$0xff]
          %v3532 = vld [vmem:[#allocation5 + $0xcd0] sm:$0xff]
          %v3533 = vld [vmem:[#allocation5 + $0xcd8] sm:$0xff]
          %v3534 = vld [vmem:[#allocation5 + $0xce0] sm:$0xff]
          %v3535 = vld [vmem:[#allocation5 + $0xce8] sm:$0xff]
          %v3536 = vld [vmem:[#allocation5 + $0xcf0] sm:$0xff]
          %v3537 = vld [vmem:[#allocation5 + $0xcf8] sm:$0xff]
          %v3538 = vld [vmem:[#allocation5 + $0xd00] sm:$0xff]
          %v3539 = vld [vmem:[#allocation5 + $0xd08] sm:$0xff]
          %v3540 = vld [vmem:[#allocation5 + $0xd10] sm:$0xff]
          %v3541 = vld [vmem:[#allocation5 + $0xd18] sm:$0xff]
          %v3542 = vld [vmem:[#allocation5 + $0xd20] sm:$0xff]
          %v3543 = vld [vmem:[#allocation5 + $0xd28] sm:$0xff]
          %v3544 = vld [vmem:[#allocation5 + $0xd30] sm:$0xff]
          %v3545 = vld [vmem:[#allocation5 + $0xd38] sm:$0xff]
          %v3546 = vld [vmem:[#allocation5 + $0xd40] sm:$0xff]
          %v3547 = vld [vmem:[#allocation5 + $0xd48] sm:$0xff]
          %v3548 = vld [vmem:[#allocation5 + $0xd50] sm:$0xff]
          %v3549 = vld [vmem:[#allocation5 + $0xd58] sm:$0xff]
          %v3550 = vld [vmem:[#allocation5 + $0xd60] sm:$0xff]
          %v3551 = vld [vmem:[#allocation5 + $0xd68] sm:$0xff]
          %v3552 = vld [vmem:[#allocation5 + $0xd70] sm:$0xff]
          %v3553 = vld [vmem:[#allocation5 + $0xd78] sm:$0xff]
          %v3554 = vld [vmem:[#allocation5 + $0xd80] sm:$0xff]
          %v3555 = vld [vmem:[#allocation5 + $0xd88] sm:$0xff]
          %v3556 = vld [vmem:[#allocation5 + $0xd90] sm:$0xff]
          %v3557 = vld [vmem:[#allocation5 + $0xd98] sm:$0xff]
          %v3558 = vld [vmem:[#allocation5 + $0xda0] sm:$0xff]
          %v3559 = vld [vmem:[#allocation5 + $0xda8] sm:$0xff]
          %v3560 = vld [vmem:[#allocation5 + $0xdb0] sm:$0xff]
          %v3561 = vld [vmem:[#allocation5 + $0xdb8] sm:$0xff]
          %v3562 = vld [vmem:[#allocation5 + $0xdc0] sm:$0xff]
          %v3563 = vld [vmem:[#allocation5 + $0xdc8] sm:$0xff]
          %v3564 = vld [vmem:[#allocation5 + $0xdd0] sm:$0xff]
          %v3565 = vld [vmem:[#allocation5 + $0xdd8] sm:$0xff]
          %v3566 = vld [vmem:[#allocation5 + $0xde0] sm:$0xff]
          %v3567 = vld [vmem:[#allocation5 + $0xde8] sm:$0xff]
          %v3568 = vld [vmem:[#allocation5 + $0xdf0] sm:$0xff]
          %v3569 = vld [vmem:[#allocation5 + $0xdf8] sm:$0xff]
          %v3570 = vld [vmem:[#allocation5 + $0xe00] sm:$0xff]
          %v3571 = vld [vmem:[#allocation5 + $0xe08] sm:$0xff]
          %v3572 = vld [vmem:[#allocation5 + $0xe10] sm:$0xff]
          %v3573 = vld [vmem:[#allocation5 + $0xe18] sm:$0xff]
          %v3574 = vld [vmem:[#allocation5 + $0xe20] sm:$0xff]
          %v3575 = vld [vmem:[#allocation5 + $0xe28] sm:$0xff]
          %v3576 = vld [vmem:[#allocation5 + $0xe30] sm:$0xff]
          %v3577 = vld [vmem:[#allocation5 + $0xe38] sm:$0xff]
          %v3578 = vld [vmem:[#allocation5 + $0xe40] sm:$0xff]
          %v3579 = vld [vmem:[#allocation5 + $0xe48] sm:$0xff]
          %v3580 = vld [vmem:[#allocation5 + $0xe50] sm:$0xff]
          %v3581 = vld [vmem:[#allocation5 + $0xe58] sm:$0xff]
          %v3582 = vld [vmem:[#allocation5 + $0xe60] sm:$0xff]
          %v3583 = vld [vmem:[#allocation5 + $0xe68] sm:$0xff]
          %v3584 = vld [vmem:[#allocation5 + $0xe70] sm:$0xff]
          %v3585 = vld [vmem:[#allocation5 + $0xe78] sm:$0xff]
          %v3586 = vld [vmem:[#allocation5 + $0xe80] sm:$0xff]
          %v3587 = vld [vmem:[#allocation5 + $0xe88] sm:$0xff]
          %v3588 = vld [vmem:[#allocation5 + $0xe90] sm:$0xff]
          %v3589 = vld [vmem:[#allocation5 + $0xe98] sm:$0xff]
          %v3590 = vld [vmem:[#allocation5 + $0xea0] sm:$0xff]
          %v3591 = vld [vmem:[#allocation5 + $0xea8] sm:$0xff]
          %v3592 = vld [vmem:[#allocation5 + $0xeb0] sm:$0xff]
          %v3593 = vld [vmem:[#allocation5 + $0xeb8] sm:$0xff]
          %v3594 = vld [vmem:[#allocation5 + $0xec0] sm:$0xff]
          %v3595 = vld [vmem:[#allocation5 + $0xec8] sm:$0xff]
          %v3596 = vld [vmem:[#allocation5 + $0xed0] sm:$0xff]
          %v3597 = vld [vmem:[#allocation5 + $0xed8] sm:$0xff]
          %v3598 = vld [vmem:[#allocation5 + $0xee0] sm:$0xff]
          %v3599 = vld [vmem:[#allocation5 + $0xee8] sm:$0xff]
          %v3600 = vld [vmem:[#allocation5 + $0xef0] sm:$0xff]
          %v3601 = vld [vmem:[#allocation5 + $0xef8] sm:$0xff]
          %v3602 = vld [vmem:[#allocation5 + $0xf00] sm:$0xff]
          %v3603 = vld [vmem:[#allocation5 + $0xf08] sm:$0xff]
          %v3604 = vld [vmem:[#allocation5 + $0xf10] sm:$0xff]
          %v3605 = vld [vmem:[#allocation5 + $0xf18] sm:$0xff]
          %v3606 = vld [vmem:[#allocation5 + $0xf20] sm:$0xff]
          %v3607 = vld [vmem:[#allocation5 + $0xf28] sm:$0xff]
          %v3608 = vld [vmem:[#allocation5 + $0xf30] sm:$0xff]
          %v3609 = vld [vmem:[#allocation5 + $0xf38] sm:$0xff]
          %v3610 = vld [vmem:[#allocation5 + $0xf40] sm:$0xff]
          %v3611 = vld [vmem:[#allocation5 + $0xf48] sm:$0xff]
          %v3612 = vld [vmem:[#allocation5 + $0xf50] sm:$0xff]
          %v3613 = vld [vmem:[#allocation5 + $0xf58] sm:$0xff]
          %v3614 = vld [vmem:[#allocation5 + $0xf60] sm:$0xff]
          %v3615 = vld [vmem:[#allocation5 + $0xf68] sm:$0xff]
          %v3616 = vld [vmem:[#allocation5 + $0xf70] sm:$0xff]
          %v3617 = vld [vmem:[#allocation5 + $0xf78] sm:$0xff]
          %v3618 = vld [vmem:[#allocation5 + $0xf80] sm:$0xff]
          %v3619 = vld [vmem:[#allocation5 + $0xf88] sm:$0xff]
          %v3620 = vld [vmem:[#allocation5 + $0xf90] sm:$0xff]
          %v3621 = vld [vmem:[#allocation5 + $0xf98] sm:$0xff]
          %v3622 = vld [vmem:[#allocation5 + $0xfa0] sm:$0xff]
          %v3623 = vld [vmem:[#allocation5 + $0xfa8] sm:$0xff]
          %v3624 = vld [vmem:[#allocation5 + $0xfb0] sm:$0xff]
          %v3625 = vld [vmem:[#allocation5 + $0xfb8] sm:$0xff]
          %v3626 = vld [vmem:[#allocation5 + $0xfc0] sm:$0xff]
          %v3627 = vld [vmem:[#allocation5 + $0xfc8] sm:$0xff]
          %v3628 = vld [vmem:[#allocation5 + $0xfd0] sm:$0xff]
          %v3629 = vld [vmem:[#allocation5 + $0xfd8] sm:$0xff]
          %v3630 = vld [vmem:[#allocation5 + $0xfe0] sm:$0xff]
          %v3631 = vld [vmem:[#allocation5 + $0xfe8] sm:$0xff]
          %v3632 = vld [vmem:[#allocation5 + $0xff0] sm:$0xff]
          %v3633 = vld [vmem:[#allocation5 + $0xff8] sm:$0xff]
          %v3634 = vld [vmem:[#allocation22] sm:$0xff]
          %v3635 = vld [vmem:[#allocation22 + $0x8] sm:$0xff]
          %v3636 = vld [vmem:[#allocation22 + $0x10] sm:$0xff]
          %v3637 = vld [vmem:[#allocation22 + $0x18] sm:$0xff]
          %v3642 = vlaneseq
          %v3643 = vshrl.u32 %v3642, 7
          %v3644 = vsub.s32 0, %v3643
          %v3645 = vrot.slane %v3634, %v3644
          %v3646 = vlaneseq
          %v3647 = vshrl.u32 %v3646, 7
          %v3648 = vsub.s32 1, %v3647
          %v3649 = vrot.slane %v3634, %v3648
          %v3650 = vlaneseq
          %v3651 = vshrl.u32 %v3650, 7
          %v3652 = vsub.s32 2, %v3651
          %v3653 = vrot.slane %v3634, %v3652
          %v3654 = vlaneseq
          %v3655 = vshrl.u32 %v3654, 7
          %v3656 = vsub.s32 3, %v3655
          %v3657 = vrot.slane %v3634, %v3656
          %v3658 = vlaneseq
          %v3659 = vshrl.u32 %v3658, 7
          %v3660 = vsub.s32 4, %v3659
          %v3661 = vrot.slane %v3634, %v3660
          %v3662 = vlaneseq
          %v3663 = vshrl.u32 %v3662, 7
          %v3664 = vsub.s32 5, %v3663
          %v3665 = vrot.slane %v3634, %v3664
          %v3666 = vlaneseq
          %v3667 = vshrl.u32 %v3666, 7
          %v3668 = vsub.s32 6, %v3667
          %v3669 = vrot.slane %v3634, %v3668
          %v3670 = vlaneseq
          %v3671 = vshrl.u32 %v3670, 7
          %v3672 = vsub.s32 7, %v3671
          %v3673 = vrot.slane %v3634, %v3672
          %v3674 = vlaneseq
          %v3675 = vshrl.u32 %v3674, 7
          %v3676 = vsub.s32 0, %v3675
          %v3677 = vrot.slane %v3635, %v3676
          %v3678 = vlaneseq
          %v3679 = vshrl.u32 %v3678, 7
          %v3680 = vsub.s32 1, %v3679
          %v3681 = vrot.slane %v3635, %v3680
          %v3682 = vlaneseq
          %v3683 = vshrl.u32 %v3682, 7
          %v3684 = vsub.s32 2, %v3683
          %v3685 = vrot.slane %v3635, %v3684
          %v3686 = vlaneseq
          %v3687 = vshrl.u32 %v3686, 7
          %v3688 = vsub.s32 3, %v3687
          %v3689 = vrot.slane %v3635, %v3688
          %v3690 = vlaneseq
          %v3691 = vshrl.u32 %v3690, 7
          %v3692 = vsub.s32 4, %v3691
          %v3693 = vrot.slane %v3635, %v3692
          %v3694 = vlaneseq
          %v3695 = vshrl.u32 %v3694, 7
          %v3696 = vsub.s32 5, %v3695
          %v3697 = vrot.slane %v3635, %v3696
          %v3698 = vlaneseq
          %v3699 = vshrl.u32 %v3698, 7
          %v3700 = vsub.s32 6, %v3699
          %v3701 = vrot.slane %v3635, %v3700
          %v3702 = vlaneseq
          %v3703 = vshrl.u32 %v3702, 7
          %v3704 = vsub.s32 7, %v3703
          %v3705 = vrot.slane %v3635, %v3704
          %v3706 = vlaneseq
          %v3707 = vshrl.u32 %v3706, 7
          %v3708 = vsub.s32 0, %v3707
          %v3709 = vrot.slane %v3636, %v3708
          %v3710 = vlaneseq
          %v3711 = vshrl.u32 %v3710, 7
          %v3712 = vsub.s32 1, %v3711
          %v3713 = vrot.slane %v3636, %v3712
          %v3714 = vlaneseq
          %v3715 = vshrl.u32 %v3714, 7
          %v3716 = vsub.s32 2, %v3715
          %v3717 = vrot.slane %v3636, %v3716
          %v3718 = vlaneseq
          %v3719 = vshrl.u32 %v3718, 7
          %v3720 = vsub.s32 3, %v3719
          %v3721 = vrot.slane %v3636, %v3720
          %v3722 = vlaneseq
          %v3723 = vshrl.u32 %v3722, 7
          %v3724 = vsub.s32 4, %v3723
          %v3725 = vrot.slane %v3636, %v3724
          %v3726 = vlaneseq
          %v3727 = vshrl.u32 %v3726, 7
          %v3728 = vsub.s32 5, %v3727
          %v3729 = vrot.slane %v3636, %v3728
          %v3730 = vlaneseq
          %v3731 = vshrl.u32 %v3730, 7
          %v3732 = vsub.s32 6, %v3731
          %v3733 = vrot.slane %v3636, %v3732
          %v3734 = vlaneseq
          %v3735 = vshrl.u32 %v3734, 7
          %v3736 = vsub.s32 7, %v3735
          %v3737 = vrot.slane %v3636, %v3736
          %v3738 = vlaneseq
          %v3739 = vshrl.u32 %v3738, 7
          %v3740 = vsub.s32 0, %v3739
          %v3741 = vrot.slane %v3637, %v3740
          %v3742 = vlaneseq
          %v3743 = vshrl.u32 %v3742, 7
          %v3744 = vsub.s32 1, %v3743
          %v3745 = vrot.slane %v3637, %v3744
          %v3746 = vlaneseq
          %v3747 = vshrl.u32 %v3746, 7
          %v3748 = vsub.s32 2, %v3747
          %v3749 = vrot.slane %v3637, %v3748
          %v3750 = vlaneseq
          %v3751 = vshrl.u32 %v3750, 7
          %v3752 = vsub.s32 3, %v3751
          %v3753 = vrot.slane %v3637, %v3752
          %v3754 = vlaneseq
          %v3755 = vshrl.u32 %v3754, 7
          %v3756 = vsub.s32 4, %v3755
          %v3757 = vrot.slane %v3637, %v3756
          %v3758 = vlaneseq
          %v3759 = vshrl.u32 %v3758, 7
          %v3760 = vsub.s32 5, %v3759
          %v3761 = vrot.slane %v3637, %v3760
          %v3762 = vlaneseq
          %v3763 = vshrl.u32 %v3762, 7
          %v3764 = vsub.s32 6, %v3763
          %v3765 = vrot.slane %v3637, %v3764
          %v3766 = vlaneseq
          %v3767 = vshrl.u32 %v3766, 7
          %v3768 = vsub.s32 7, %v3767
          %v3769 = vrot.slane %v3637, %v3768
          %3802 = vmatprep.subr.bf16.mxu0 %v3123
          %3803 = vmatpush1.bf16.msra.mxu0 %v3122
          %3804 = vmatprep.subr.bf16.mxu0 %v3155
          %3805 = vmatpush1.bf16.msra.mxu0 %v3154
          %3806 = vmatprep.subr.bf16.mxu0 %v3187
          %3807 = vmatpush1.bf16.msra.mxu0 %v3186
          %3808 = vmatprep.subr.bf16.mxu0 %v3219
          %3809 = vmatpush1.bf16.msra.mxu0 %v3218
          %3810 = vmatprep.subr.bf16.mxu0 %v3251
          %3811 = vmatpush1.bf16.msra.mxu0 %v3250
          %3812 = vmatprep.subr.bf16.mxu0 %v3283
          %3813 = vmatpush1.bf16.msra.mxu0 %v3282
          %3814 = vmatprep.subr.bf16.mxu0 %v3315
          %3815 = vmatpush1.bf16.msra.mxu0 %v3314
          %3816 = vmatprep.subr.bf16.mxu0 %v3347
          %3817 = vmatpush1.bf16.msra.mxu0 %v3346
          %3818 = vmatprep.subr.bf16.mxu0 %v3379
          %3819 = vmatpush1.bf16.msra.mxu0 %v3378
          %3820 = vmatprep.subr.bf16.mxu0 %v3411
          %3821 = vmatpush1.bf16.msra.mxu0 %v3410
          %3822 = vmatprep.subr.bf16.mxu0 %v3443
          %3823 = vmatpush1.bf16.msra.mxu0 %v3442
          %3824 = vmatprep.subr.bf16.mxu0 %v3475
          %3825 = vmatpush1.bf16.msra.mxu0 %v3474
          %3826 = vmatprep.subr.bf16.mxu0 %v3507
          %3827 = vmatpush1.bf16.msra.mxu0 %v3506
          %3828 = vmatprep.subr.bf16.mxu0 %v3539
          %3829 = vmatpush1.bf16.msra.mxu0 %v3538
          %3830 = vmatprep.subr.bf16.mxu0 %v3571
          %3831 = vmatpush1.bf16.msra.mxu0 %v3570
          %3832 = vmatprep.subr.bf16.mxu0 %v3603
          %3833 = vmatpush1.bf16.msra.mxu0 %v3602
          %3834 = vmatprep.mubr.bf16.mxu0 %v3121
          %3835 = vmatmul.mubr.bf16.gmra.mrb[0].mxu0 %v3120
          %v3836 = vpop.f32.mrb[0].mxu0
          %v3837 = vadd.f32 %v3645, %v3836
          %v3838 = vpop.f32.mrb[0].mxu0
          %v3839 = vadd.f32 %v3649, %v3838
          %v3840 = vpop.f32.mrb[0].mxu0
          %v3841 = vpop.f32.mrb[0].mxu0
          %3842 = vdwg.mxu0
          %3843 = vmatprep.subr.bf16.mxu0 %v3125
          %3844 = vmatpush1.bf16.msra.mxu0 %v3124
          %3845 = vmatprep.subr.bf16.mxu0 %v3157
          %3846 = vmatpush1.bf16.msra.mxu0 %v3156
          %3847 = vmatprep.subr.bf16.mxu0 %v3189
          %3848 = vmatpush1.bf16.msra.mxu0 %v3188
          %3849 = vmatprep.subr.bf16.mxu0 %v3221
          %3850 = vmatpush1.bf16.msra.mxu0 %v3220
          %3851 = vmatprep.subr.bf16.mxu0 %v3253
          %3852 = vmatpush1.bf16.msra.mxu0 %v3252
          %3853 = vmatprep.subr.bf16.mxu0 %v3285
          %3854 = vmatpush1.bf16.msra.mxu0 %v3284
          %3855 = vmatprep.subr.bf16.mxu0 %v3317
          %3856 = vmatpush1.bf16.msra.mxu0 %v3316
          %3857 = vmatprep.subr.bf16.mxu0 %v3349
          %3858 = vmatpush1.bf16.msra.mxu0 %v3348
          %3859 = vmatprep.subr.bf16.mxu0 %v3381
          %3860 = vmatpush1.bf16.msra.mxu0 %v3380
          %3861 = vmatprep.subr.bf16.mxu0 %v3413
          %3862 = vmatpush1.bf16.msra.mxu0 %v3412
          %3863 = vmatprep.subr.bf16.mxu0 %v3445
          %3864 = vmatpush1.bf16.msra.mxu0 %v3444
          %3865 = vmatprep.subr.bf16.mxu0 %v3477
          %3866 = vmatpush1.bf16.msra.mxu0 %v3476
          %3867 = vmatprep.subr.bf16.mxu0 %v3509
          %3868 = vmatpush1.bf16.msra.mxu0 %v3508
          %3869 = vmatprep.subr.bf16.mxu0 %v3541
          %3870 = vmatpush1.bf16.msra.mxu0 %v3540
          %3871 = vmatprep.subr.bf16.mxu0 %v3573
          %3872 = vmatpush1.bf16.msra.mxu0 %v3572
          %3873 = vmatprep.subr.bf16.mxu0 %v3605
          %3874 = vmatpush1.bf16.msra.mxu0 %v3604
          %3875 = vmatprep.mubr.bf16.mxu0 %v3121
          %3876 = vmatmul.mubr.bf16.gmra.mrb[0].mxu0 %v3120
          %v3877 = vpop.f32.mrb[0].mxu0
          %v3878 = vadd.f32 %v3653, %v3877
          %v3879 = vpop.f32.mrb[0].mxu0
          %v3880 = vadd.f32 %v3657, %v3879
          %v3881 = vpop.f32.mrb[0].mxu0
          %v3882 = vpop.f32.mrb[0].mxu0
          %3883 = vdwg.mxu0
          %3884 = vmatprep.subr.bf16.mxu0 %v3127
          %3885 = vmatpush1.bf16.msra.mxu0 %v3126
          %3886 = vmatprep.subr.bf16.mxu0 %v3159
          %3887 = vmatpush1.bf16.msra.mxu0 %v3158
          %3888 = vmatprep.subr.bf16.mxu0 %v3191
          %3889 = vmatpush1.bf16.msra.mxu0 %v3190
          %3890 = vmatprep.subr.bf16.mxu0 %v3223
          %3891 = vmatpush1.bf16.msra.mxu0 %v3222
          %3892 = vmatprep.subr.bf16.mxu0 %v3255
          %3893 = vmatpush1.bf16.msra.mxu0 %v3254
          %3894 = vmatprep.subr.bf16.mxu0 %v3287
          %3895 = vmatpush1.bf16.msra.mxu0 %v3286
          %3896 = vmatprep.subr.bf16.mxu0 %v3319
          %3897 = vmatpush1.bf16.msra.mxu0 %v3318
          %3898 = vmatprep.subr.bf16.mxu0 %v3351
          %3899 = vmatpush1.bf16.msra.mxu0 %v3350
          %3900 = vmatprep.subr.bf16.mxu0 %v3383
          %3901 = vmatpush1.bf16.msra.mxu0 %v3382
          %3902 = vmatprep.subr.bf16.mxu0 %v3415
          %3903 = vmatpush1.bf16.msra.mxu0 %v3414
          %3904 = vmatprep.subr.bf16.mxu0 %v3447
          %3905 = vmatpush1.bf16.msra.mxu0 %v3446
          %3906 = vmatprep.subr.bf16.mxu0 %v3479
          %3907 = vmatpush1.bf16.msra.mxu0 %v3478
          %3908 = vmatprep.subr.bf16.mxu0 %v3511
          %3909 = vmatpush1.bf16.msra.mxu0 %v3510
          %3910 = vmatprep.subr.bf16.mxu0 %v3543
          %3911 = vmatpush1.bf16.msra.mxu0 %v3542
          %3912 = vmatprep.subr.bf16.mxu0 %v3575
          %3913 = vmatpush1.bf16.msra.mxu0 %v3574
          %3914 = vmatprep.subr.bf16.mxu0 %v3607
          %3915 = vmatpush1.bf16.msra.mxu0 %v3606
          %3916 = vmatprep.mubr.bf16.mxu0 %v3121
          %3917 = vmatmul.mubr.bf16.gmra.mrb[0].mxu0 %v3120
          %v3918 = vpop.f32.mrb[0].mxu0
          %v3919 = vadd.f32 %v3661, %v3918
          %v3920 = vpop.f32.mrb[0].mxu0
          %v3921 = vadd.f32 %v3665, %v3920
          %v3922 = vpop.f32.mrb[0].mxu0
          %v3923 = vpop.f32.mrb[0].mxu0
          %3924 = vdwg.mxu0
          %3925 = vmatprep.subr.bf16.mxu0 %v3129
          %3926 = vmatpush1.bf16.msra.mxu0 %v3128
          %3927 = vmatprep.subr.bf16.mxu0 %v3161
          %3928 = vmatpush1.bf16.msra.mxu0 %v3160
          %3929 = vmatprep.subr.bf16.mxu0 %v3193
          %3930 = vmatpush1.bf16.msra.mxu0 %v3192
          %3931 = vmatprep.subr.bf16.mxu0 %v3225
          %3932 = vmatpush1.bf16.msra.mxu0 %v3224
          %3933 = vmatprep.subr.bf16.mxu0 %v3257
          %3934 = vmatpush1.bf16.msra.mxu0 %v3256
          %3935 = vmatprep.subr.bf16.mxu0 %v3289
          %3936 = vmatpush1.bf16.msra.mxu0 %v3288
          %3937 = vmatprep.subr.bf16.mxu0 %v3321
          %3938 = vmatpush1.bf16.msra.mxu0 %v3320
          %3939 = vmatprep.subr.bf16.mxu0 %v3353
          %3940 = vmatpush1.bf16.msra.mxu0 %v3352
          %3941 = vmatprep.subr.bf16.mxu0 %v3385
          %3942 = vmatpush1.bf16.msra.mxu0 %v3384
          %3943 = vmatprep.subr.bf16.mxu0 %v3417
          %3944 = vmatpush1.bf16.msra.mxu0 %v3416
          %3945 = vmatprep.subr.bf16.mxu0 %v3449
          %3946 = vmatpush1.bf16.msra.mxu0 %v3448
          %3947 = vmatprep.subr.bf16.mxu0 %v3481
          %3948 = vmatpush1.bf16.msra.mxu0 %v3480
          %3949 = vmatprep.subr.bf16.mxu0 %v3513
          %3950 = vmatpush1.bf16.msra.mxu0 %v3512
          %3951 = vmatprep.subr.bf16.mxu0 %v3545
          %3952 = vmatpush1.bf16.msra.mxu0 %v3544
          %3953 = vmatprep.subr.bf16.mxu0 %v3577
          %3954 = vmatpush1.bf16.msra.mxu0 %v3576
          %3955 = vmatprep.subr.bf16.mxu0 %v3609
          %3956 = vmatpush1.bf16.msra.mxu0 %v3608
          %3957 = vmatprep.mubr.bf16.mxu0 %v3121
          %3958 = vmatmul.mubr.bf16.gmra.mrb[0].mxu0 %v3120
          %v3959 = vpop.f32.mrb[0].mxu0
          %v3960 = vadd.f32 %v3669, %v3959
          %v3961 = vpop.f32.mrb[0].mxu0
          %v3962 = vadd.f32 %v3673, %v3961
          %v3963 = vpop.f32.mrb[0].mxu0
          %v3964 = vpop.f32.mrb[0].mxu0
          %3965 = vdwg.mxu0
          %3966 = vmatprep.subr.bf16.mxu0 %v3131
          %3967 = vmatpush1.bf16.msra.mxu0 %v3130
          %3968 = vmatprep.subr.bf16.mxu0 %v3163
          %3969 = vmatpush1.bf16.msra.mxu0 %v3162
          %3970 = vmatprep.subr.bf16.mxu0 %v3195
          %3971 = vmatpush1.bf16.msra.mxu0 %v3194
          %3972 = vmatprep.subr.bf16.mxu0 %v3227
          %3973 = vmatpush1.bf16.msra.mxu0 %v3226
          %3974 = vmatprep.subr.bf16.mxu0 %v3259
          %3975 = vmatpush1.bf16.msra.mxu0 %v3258
          %3976 = vmatprep.subr.bf16.mxu0 %v3291
          %3977 = vmatpush1.bf16.msra.mxu0 %v3290
          %3978 = vmatprep.subr.bf16.mxu0 %v3323
          %3979 = vmatpush1.bf16.msra.mxu0 %v3322
          %3980 = vmatprep.subr.bf16.mxu0 %v3355
          %3981 = vmatpush1.bf16.msra.mxu0 %v3354
          %3982 = vmatprep.subr.bf16.mxu0 %v3387
          %3983 = vmatpush1.bf16.msra.mxu0 %v3386
          %3984 = vmatprep.subr.bf16.mxu0 %v3419
          %3985 = vmatpush1.bf16.msra.mxu0 %v3418
          %3986 = vmatprep.subr.bf16.mxu0 %v3451
          %3987 = vmatpush1.bf16.msra.mxu0 %v3450
          %3988 = vmatprep.subr.bf16.mxu0 %v3483
          %3989 = vmatpush1.bf16.msra.mxu0 %v3482
          %3990 = vmatprep.subr.bf16.mxu0 %v3515
          %3991 = vmatpush1.bf16.msra.mxu0 %v3514
          %3992 = vmatprep.subr.bf16.mxu0 %v3547
          %3993 = vmatpush1.bf16.msra.mxu0 %v3546
          %3994 = vmatprep.subr.bf16.mxu0 %v3579
          %3995 = vmatpush1.bf16.msra.mxu0 %v3578
          %3996 = vmatprep.subr.bf16.mxu0 %v3611
          %3997 = vmatpush1.bf16.msra.mxu0 %v3610
          %3998 = vmatprep.mubr.bf16.mxu0 %v3121
          %3999 = vmatmul.mubr.bf16.gmra.mrb[0].mxu0 %v3120
          %v4000 = vpop.f32.mrb[0].mxu0
          %v4001 = vadd.f32 %v3677, %v4000
          %v4002 = vpop.f32.mrb[0].mxu0
          %v4003 = vadd.f32 %v3681, %v4002
          %v4004 = vpop.f32.mrb[0].mxu0
          %v4005 = vpop.f32.mrb[0].mxu0
          %4006 = vdwg.mxu0
          %4007 = vmatprep.subr.bf16.mxu0 %v3133
          %4008 = vmatpush1.bf16.msra.mxu0 %v3132
          %4009 = vmatprep.subr.bf16.mxu0 %v3165
          %4010 = vmatpush1.bf16.msra.mxu0 %v3164
          %4011 = vmatprep.subr.bf16.mxu0 %v3197
          %4012 = vmatpush1.bf16.msra.mxu0 %v3196
          %4013 = vmatprep.subr.bf16.mxu0 %v3229
          %4014 = vmatpush1.bf16.msra.mxu0 %v3228
          %4015 = vmatprep.subr.bf16.mxu0 %v3261
          %4016 = vmatpush1.bf16.msra.mxu0 %v3260
          %4017 = vmatprep.subr.bf16.mxu0 %v3293
          %4018 = vmatpush1.bf16.msra.mxu0 %v3292
          %4019 = vmatprep.subr.bf16.mxu0 %v3325
          %4020 = vmatpush1.bf16.msra.mxu0 %v3324
          %4021 = vmatprep.subr.bf16.mxu0 %v3357
          %4022 = vmatpush1.bf16.msra.mxu0 %v3356
          %4023 = vmatprep.subr.bf16.mxu0 %v3389
          %4024 = vmatpush1.bf16.msra.mxu0 %v3388
          %4025 = vmatprep.subr.bf16.mxu0 %v3421
          %4026 = vmatpush1.bf16.msra.mxu0 %v3420
          %4027 = vmatprep.subr.bf16.mxu0 %v3453
          %4028 = vmatpush1.bf16.msra.mxu0 %v3452
          %4029 = vmatprep.subr.bf16.mxu0 %v3485
          %4030 = vmatpush1.bf16.msra.mxu0 %v3484
          %4031 = vmatprep.subr.bf16.mxu0 %v3517
          %4032 = vmatpush1.bf16.msra.mxu0 %v3516
          %4033 = vmatprep.subr.bf16.mxu0 %v3549
          %4034 = vmatpush1.bf16.msra.mxu0 %v3548
          %4035 = vmatprep.subr.bf16.mxu0 %v3581
          %4036 = vmatpush1.bf16.msra.mxu0 %v3580
          %4037 = vmatprep.subr.bf16.mxu0 %v3613
          %4038 = vmatpush1.bf16.msra.mxu0 %v3612
          %4039 = vmatprep.mubr.bf16.mxu0 %v3121
          %4040 = vmatmul.mubr.bf16.gmra.mrb[0].mxu0 %v3120
          %v4041 = vpop.f32.mrb[0].mxu0
          %v4042 = vadd.f32 %v3685, %v4041
          %v4043 = vpop.f32.mrb[0].mxu0
          %v4044 = vadd.f32 %v3689, %v4043
          %v4045 = vpop.f32.mrb[0].mxu0
          %v4046 = vpop.f32.mrb[0].mxu0
          %4047 = vdwg.mxu0
          %4048 = vmatprep.subr.bf16.mxu0 %v3135
          %4049 = vmatpush1.bf16.msra.mxu0 %v3134
          %4050 = vmatprep.subr.bf16.mxu0 %v3167
          %4051 = vmatpush1.bf16.msra.mxu0 %v3166
          %4052 = vmatprep.subr.bf16.mxu0 %v3199
          %4053 = vmatpush1.bf16.msra.mxu0 %v3198
          %4054 = vmatprep.subr.bf16.mxu0 %v3231
          %4055 = vmatpush1.bf16.msra.mxu0 %v3230
          %4056 = vmatprep.subr.bf16.mxu0 %v3263
          %4057 = vmatpush1.bf16.msra.mxu0 %v3262
          %4058 = vmatprep.subr.bf16.mxu0 %v3295
          %4059 = vmatpush1.bf16.msra.mxu0 %v3294
          %4060 = vmatprep.subr.bf16.mxu0 %v3327
          %4061 = vmatpush1.bf16.msra.mxu0 %v3326
          %4062 = vmatprep.subr.bf16.mxu0 %v3359
          %4063 = vmatpush1.bf16.msra.mxu0 %v3358
          %4064 = vmatprep.subr.bf16.mxu0 %v3391
          %4065 = vmatpush1.bf16.msra.mxu0 %v3390
          %4066 = vmatprep.subr.bf16.mxu0 %v3423
          %4067 = vmatpush1.bf16.msra.mxu0 %v3422
          %4068 = vmatprep.subr.bf16.mxu0 %v3455
          %4069 = vmatpush1.bf16.msra.mxu0 %v3454
          %4070 = vmatprep.subr.bf16.mxu0 %v3487
          %4071 = vmatpush1.bf16.msra.mxu0 %v3486
          %4072 = vmatprep.subr.bf16.mxu0 %v3519
          %4073 = vmatpush1.bf16.msra.mxu0 %v3518
          %4074 = vmatprep.subr.bf16.mxu0 %v3551
          %4075 = vmatpush1.bf16.msra.mxu0 %v3550
          %4076 = vmatprep.subr.bf16.mxu0 %v3583
          %4077 = vmatpush1.bf16.msra.mxu0 %v3582
          %4078 = vmatprep.subr.bf16.mxu0 %v3615
          %4079 = vmatpush1.bf16.msra.mxu0 %v3614
          %4080 = vmatprep.mubr.bf16.mxu0 %v3121
          %4081 = vmatmul.mubr.bf16.gmra.mrb[0].mxu0 %v3120
          %v4082 = vpop.f32.mrb[0].mxu0
          %v4083 = vadd.f32 %v3693, %v4082
          %v4084 = vpop.f32.mrb[0].mxu0
          %v4085 = vadd.f32 %v3697, %v4084
          %v4086 = vpop.f32.mrb[0].mxu0
          %v4087 = vpop.f32.mrb[0].mxu0
          %4088 = vdwg.mxu0
          %4089 = vmatprep.subr.bf16.mxu0 %v3137
          %4090 = vmatpush1.bf16.msra.mxu0 %v3136
          %4091 = vmatprep.subr.bf16.mxu0 %v3169
          %4092 = vmatpush1.bf16.msra.mxu0 %v3168
          %4093 = vmatprep.subr.bf16.mxu0 %v3201
          %4094 = vmatpush1.bf16.msra.mxu0 %v3200
          %4095 = vmatprep.subr.bf16.mxu0 %v3233
          %4096 = vmatpush1.bf16.msra.mxu0 %v3232
          %4097 = vmatprep.subr.bf16.mxu0 %v3265
          %4098 = vmatpush1.bf16.msra.mxu0 %v3264
          %4099 = vmatprep.subr.bf16.mxu0 %v3297
          %4100 = vmatpush1.bf16.msra.mxu0 %v3296
          %4101 = vmatprep.subr.bf16.mxu0 %v3329
          %4102 = vmatpush1.bf16.msra.mxu0 %v3328
          %4103 = vmatprep.subr.bf16.mxu0 %v3361
          %4104 = vmatpush1.bf16.msra.mxu0 %v3360
          %4105 = vmatprep.subr.bf16.mxu0 %v3393
          %4106 = vmatpush1.bf16.msra.mxu0 %v3392
          %4107 = vmatprep.subr.bf16.mxu0 %v3425
          %4108 = vmatpush1.bf16.msra.mxu0 %v3424
          %4109 = vmatprep.subr.bf16.mxu0 %v3457
          %4110 = vmatpush1.bf16.msra.mxu0 %v3456
          %4111 = vmatprep.subr.bf16.mxu0 %v3489
          %4112 = vmatpush1.bf16.msra.mxu0 %v3488
          %4113 = vmatprep.subr.bf16.mxu0 %v3521
          %4114 = vmatpush1.bf16.msra.mxu0 %v3520
          %4115 = vmatprep.subr.bf16.mxu0 %v3553
          %4116 = vmatpush1.bf16.msra.mxu0 %v3552
          %4117 = vmatprep.subr.bf16.mxu0 %v3585
          %4118 = vmatpush1.bf16.msra.mxu0 %v3584
          %4119 = vmatprep.subr.bf16.mxu0 %v3617
          %4120 = vmatpush1.bf16.msra.mxu0 %v3616
          %4121 = vmatprep.mubr.bf16.mxu0 %v3121
          %4122 = vmatmul.mubr.bf16.gmra.mrb[0].mxu0 %v3120
          %v4123 = vpop.f32.mrb[0].mxu0
          %v4124 = vadd.f32 %v3701, %v4123
          %v4125 = vpop.f32.mrb[0].mxu0
          %v4126 = vadd.f32 %v3705, %v4125
          %v4127 = vpop.f32.mrb[0].mxu0
          %v4128 = vpop.f32.mrb[0].mxu0
          %4129 = vdwg.mxu0
          %4130 = vmatprep.subr.bf16.mxu0 %v3139
          %4131 = vmatpush1.bf16.msra.mxu0 %v3138
          %4132 = vmatprep.subr.bf16.mxu0 %v3171
          %4133 = vmatpush1.bf16.msra.mxu0 %v3170
          %4134 = vmatprep.subr.bf16.mxu0 %v3203
          %4135 = vmatpush1.bf16.msra.mxu0 %v3202
          %4136 = vmatprep.subr.bf16.mxu0 %v3235
          %4137 = vmatpush1.bf16.msra.mxu0 %v3234
          %4138 = vmatprep.subr.bf16.mxu0 %v3267
          %4139 = vmatpush1.bf16.msra.mxu0 %v3266
          %4140 = vmatprep.subr.bf16.mxu0 %v3299
          %4141 = vmatpush1.bf16.msra.mxu0 %v3298
          %4142 = vmatprep.subr.bf16.mxu0 %v3331
          %4143 = vmatpush1.bf16.msra.mxu0 %v3330
          %4144 = vmatprep.subr.bf16.mxu0 %v3363
          %4145 = vmatpush1.bf16.msra.mxu0 %v3362
          %4146 = vmatprep.subr.bf16.mxu0 %v3395
          %4147 = vmatpush1.bf16.msra.mxu0 %v3394
          %4148 = vmatprep.subr.bf16.mxu0 %v3427
          %4149 = vmatpush1.bf16.msra.mxu0 %v3426
          %4150 = vmatprep.subr.bf16.mxu0 %v3459
          %4151 = vmatpush1.bf16.msra.mxu0 %v3458
          %4152 = vmatprep.subr.bf16.mxu0 %v3491
          %4153 = vmatpush1.bf16.msra.mxu0 %v3490
          %4154 = vmatprep.subr.bf16.mxu0 %v3523
          %4155 = vmatpush1.bf16.msra.mxu0 %v3522
          %4156 = vmatprep.subr.bf16.mxu0 %v3555
          %4157 = vmatpush1.bf16.msra.mxu0 %v3554
          %4158 = vmatprep.subr.bf16.mxu0 %v3587
          %4159 = vmatpush1.bf16.msra.mxu0 %v3586
          %4160 = vmatprep.subr.bf16.mxu0 %v3619
          %4161 = vmatpush1.bf16.msra.mxu0 %v3618
          %4162 = vmatprep.mubr.bf16.mxu0 %v3121
          %4163 = vmatmul.mubr.bf16.gmra.mrb[0].mxu0 %v3120
          %v4164 = vpop.f32.mrb[0].mxu0
          %v4165 = vadd.f32 %v3709, %v4164
          %v4166 = vpop.f32.mrb[0].mxu0
          %v4167 = vadd.f32 %v3713, %v4166
          %v4168 = vpop.f32.mrb[0].mxu0
          %v4169 = vpop.f32.mrb[0].mxu0
          %4170 = vdwg.mxu0
          %4171 = vmatprep.subr.bf16.mxu0 %v3141
          %4172 = vmatpush1.bf16.msra.mxu0 %v3140
          %4173 = vmatprep.subr.bf16.mxu0 %v3173
          %4174 = vmatpush1.bf16.msra.mxu0 %v3172
          %4175 = vmatprep.subr.bf16.mxu0 %v3205
          %4176 = vmatpush1.bf16.msra.mxu0 %v3204
          %4177 = vmatprep.subr.bf16.mxu0 %v3237
          %4178 = vmatpush1.bf16.msra.mxu0 %v3236
          %4179 = vmatprep.subr.bf16.mxu0 %v3269
          %4180 = vmatpush1.bf16.msra.mxu0 %v3268
          %4181 = vmatprep.subr.bf16.mxu0 %v3301
          %4182 = vmatpush1.bf16.msra.mxu0 %v3300
          %4183 = vmatprep.subr.bf16.mxu0 %v3333
          %4184 = vmatpush1.bf16.msra.mxu0 %v3332
          %4185 = vmatprep.subr.bf16.mxu0 %v3365
          %4186 = vmatpush1.bf16.msra.mxu0 %v3364
          %4187 = vmatprep.subr.bf16.mxu0 %v3397
          %4188 = vmatpush1.bf16.msra.mxu0 %v3396
          %4189 = vmatprep.subr.bf16.mxu0 %v3429
          %4190 = vmatpush1.bf16.msra.mxu0 %v3428
          %4191 = vmatprep.subr.bf16.mxu0 %v3461
          %4192 = vmatpush1.bf16.msra.mxu0 %v3460
          %4193 = vmatprep.subr.bf16.mxu0 %v3493
          %4194 = vmatpush1.bf16.msra.mxu0 %v3492
          %4195 = vmatprep.subr.bf16.mxu0 %v3525
          %4196 = vmatpush1.bf16.msra.mxu0 %v3524
          %4197 = vmatprep.subr.bf16.mxu0 %v3557
          %4198 = vmatpush1.bf16.msra.mxu0 %v3556
          %4199 = vmatprep.subr.bf16.mxu0 %v3589
          %4200 = vmatpush1.bf16.msra.mxu0 %v3588
          %4201 = vmatprep.subr.bf16.mxu0 %v3621
          %4202 = vmatpush1.bf16.msra.mxu0 %v3620
          %4203 = vmatprep.mubr.bf16.mxu0 %v3121
          %4204 = vmatmul.mubr.bf16.gmra.mrb[0].mxu0 %v3120
          %v4205 = vpop.f32.mrb[0].mxu0
          %v4206 = vadd.f32 %v3717, %v4205
          %v4207 = vpop.f32.mrb[0].mxu0
          %v4208 = vadd.f32 %v3721, %v4207
          %v4209 = vpop.f32.mrb[0].mxu0
          %v4210 = vpop.f32.mrb[0].mxu0
          %4211 = vdwg.mxu0
          %4212 = vmatprep.subr.bf16.mxu0 %v3143
          %4213 = vmatpush1.bf16.msra.mxu0 %v3142
          %4214 = vmatprep.subr.bf16.mxu0 %v3175
          %4215 = vmatpush1.bf16.msra.mxu0 %v3174
          %4216 = vmatprep.subr.bf16.mxu0 %v3207
          %4217 = vmatpush1.bf16.msra.mxu0 %v3206
          %4218 = vmatprep.subr.bf16.mxu0 %v3239
          %4219 = vmatpush1.bf16.msra.mxu0 %v3238
          %4220 = vmatprep.subr.bf16.mxu0 %v3271
          %4221 = vmatpush1.bf16.msra.mxu0 %v3270
          %4222 = vmatprep.subr.bf16.mxu0 %v3303
          %4223 = vmatpush1.bf16.msra.mxu0 %v3302
          %4224 = vmatprep.subr.bf16.mxu0 %v3335
          %4225 = vmatpush1.bf16.msra.mxu0 %v3334
          %4226 = vmatprep.subr.bf16.mxu0 %v3367
          %4227 = vmatpush1.bf16.msra.mxu0 %v3366
          %4228 = vmatprep.subr.bf16.mxu0 %v3399
          %4229 = vmatpush1.bf16.msra.mxu0 %v3398
          %4230 = vmatprep.subr.bf16.mxu0 %v3431
          %4231 = vmatpush1.bf16.msra.mxu0 %v3430
          %4232 = vmatprep.subr.bf16.mxu0 %v3463
          %4233 = vmatpush1.bf16.msra.mxu0 %v3462
          %4234 = vmatprep.subr.bf16.mxu0 %v3495
          %4235 = vmatpush1.bf16.msra.mxu0 %v3494
          %4236 = vmatprep.subr.bf16.mxu0 %v3527
          %4237 = vmatpush1.bf16.msra.mxu0 %v3526
          %4238 = vmatprep.subr.bf16.mxu0 %v3559
          %4239 = vmatpush1.bf16.msra.mxu0 %v3558
          %4240 = vmatprep.subr.bf16.mxu0 %v3591
          %4241 = vmatpush1.bf16.msra.mxu0 %v3590
          %4242 = vmatprep.subr.bf16.mxu0 %v3623
          %4243 = vmatpush1.bf16.msra.mxu0 %v3622
          %4244 = vmatprep.mubr.bf16.mxu0 %v3121
          %4245 = vmatmul.mubr.bf16.gmra.mrb[0].mxu0 %v3120
          %v4246 = vpop.f32.mrb[0].mxu0
          %v4247 = vadd.f32 %v3725, %v4246
          %v4248 = vpop.f32.mrb[0].mxu0
          %v4249 = vadd.f32 %v3729, %v4248
          %v4250 = vpop.f32.mrb[0].mxu0
          %v4251 = vpop.f32.mrb[0].mxu0
          %4252 = vdwg.mxu0
          %4253 = vmatprep.subr.bf16.mxu0 %v3145
          %4254 = vmatpush1.bf16.msra.mxu0 %v3144
          %4255 = vmatprep.subr.bf16.mxu0 %v3177
          %4256 = vmatpush1.bf16.msra.mxu0 %v3176
          %4257 = vmatprep.subr.bf16.mxu0 %v3209
          %4258 = vmatpush1.bf16.msra.mxu0 %v3208
          %4259 = vmatprep.subr.bf16.mxu0 %v3241
          %4260 = vmatpush1.bf16.msra.mxu0 %v3240
          %4261 = vmatprep.subr.bf16.mxu0 %v3273
          %4262 = vmatpush1.bf16.msra.mxu0 %v3272
          %4263 = vmatprep.subr.bf16.mxu0 %v3305
          %4264 = vmatpush1.bf16.msra.mxu0 %v3304
          %4265 = vmatprep.subr.bf16.mxu0 %v3337
          %4266 = vmatpush1.bf16.msra.mxu0 %v3336
          %4267 = vmatprep.subr.bf16.mxu0 %v3369
          %4268 = vmatpush1.bf16.msra.mxu0 %v3368
          %4269 = vmatprep.subr.bf16.mxu0 %v3401
          %4270 = vmatpush1.bf16.msra.mxu0 %v3400
          %4271 = vmatprep.subr.bf16.mxu0 %v3433
          %4272 = vmatpush1.bf16.msra.mxu0 %v3432
          %4273 = vmatprep.subr.bf16.mxu0 %v3465
          %4274 = vmatpush1.bf16.msra.mxu0 %v3464
          %4275 = vmatprep.subr.bf16.mxu0 %v3497
          %4276 = vmatpush1.bf16.msra.mxu0 %v3496
          %4277 = vmatprep.subr.bf16.mxu0 %v3529
          %4278 = vmatpush1.bf16.msra.mxu0 %v3528
          %4279 = vmatprep.subr.bf16.mxu0 %v3561
          %4280 = vmatpush1.bf16.msra.mxu0 %v3560
          %4281 = vmatprep.subr.bf16.mxu0 %v3593
          %4282 = vmatpush1.bf16.msra.mxu0 %v3592
          %4283 = vmatprep.subr.bf16.mxu0 %v3625
          %4284 = vmatpush1.bf16.msra.mxu0 %v3624
          %4285 = vmatprep.mubr.bf16.mxu0 %v3121
          %4286 = vmatmul.mubr.bf16.gmra.mrb[0].mxu0 %v3120
          %v4287 = vpop.f32.mrb[0].mxu0
          %v4288 = vadd.f32 %v3733, %v4287
          %v4289 = vpop.f32.mrb[0].mxu0
          %v4290 = vadd.f32 %v3737, %v4289
          %v4291 = vpop.f32.mrb[0].mxu0
          %v4292 = vpop.f32.mrb[0].mxu0
          %4293 = vdwg.mxu0
          %4294 = vmatprep.subr.bf16.mxu0 %v3147
          %4295 = vmatpush1.bf16.msra.mxu0 %v3146
          %4296 = vmatprep.subr.bf16.mxu0 %v3179
          %4297 = vmatpush1.bf16.msra.mxu0 %v3178
          %4298 = vmatprep.subr.bf16.mxu0 %v3211
          %4299 = vmatpush1.bf16.msra.mxu0 %v3210
          %4300 = vmatprep.subr.bf16.mxu0 %v3243
          %4301 = vmatpush1.bf16.msra.mxu0 %v3242
          %4302 = vmatprep.subr.bf16.mxu0 %v3275
          %4303 = vmatpush1.bf16.msra.mxu0 %v3274
          %4304 = vmatprep.subr.bf16.mxu0 %v3307
          %4305 = vmatpush1.bf16.msra.mxu0 %v3306
          %4306 = vmatprep.subr.bf16.mxu0 %v3339
          %4307 = vmatpush1.bf16.msra.mxu0 %v3338
          %4308 = vmatprep.subr.bf16.mxu0 %v3371
          %4309 = vmatpush1.bf16.msra.mxu0 %v3370
          %4310 = vmatprep.subr.bf16.mxu0 %v3403
          %4311 = vmatpush1.bf16.msra.mxu0 %v3402
          %4312 = vmatprep.subr.bf16.mxu0 %v3435
          %4313 = vmatpush1.bf16.msra.mxu0 %v3434
          %4314 = vmatprep.subr.bf16.mxu0 %v3467
          %4315 = vmatpush1.bf16.msra.mxu0 %v3466
          %4316 = vmatprep.subr.bf16.mxu0 %v3499
          %4317 = vmatpush1.bf16.msra.mxu0 %v3498
          %4318 = vmatprep.subr.bf16.mxu0 %v3531
          %4319 = vmatpush1.bf16.msra.mxu0 %v3530
          %4320 = vmatprep.subr.bf16.mxu0 %v3563
          %4321 = vmatpush1.bf16.msra.mxu0 %v3562
          %4322 = vmatprep.subr.bf16.mxu0 %v3595
          %4323 = vmatpush1.bf16.msra.mxu0 %v3594
          %4324 = vmatprep.subr.bf16.mxu0 %v3627
          %4325 = vmatpush1.bf16.msra.mxu0 %v3626
          %4326 = vmatprep.mubr.bf16.mxu0 %v3121
          %4327 = vmatmul.mubr.bf16.gmra.mrb[0].mxu0 %v3120
          %v4328 = vpop.f32.mrb[0].mxu0
          %v4329 = vadd.f32 %v3741, %v4328
          %v4330 = vpop.f32.mrb[0].mxu0
          %v4331 = vadd.f32 %v3745, %v4330
          %v4332 = vpop.f32.mrb[0].mxu0
          %v4333 = vpop.f32.mrb[0].mxu0
          %4334 = vdwg.mxu0
          %4335 = vmatprep.subr.bf16.mxu0 %v3149
          %4336 = vmatpush1.bf16.msra.mxu0 %v3148
          %4337 = vmatprep.subr.bf16.mxu0 %v3181
          %4338 = vmatpush1.bf16.msra.mxu0 %v3180
          %4339 = vmatprep.subr.bf16.mxu0 %v3213
          %4340 = vmatpush1.bf16.msra.mxu0 %v3212
          %4341 = vmatprep.subr.bf16.mxu0 %v3245
          %4342 = vmatpush1.bf16.msra.mxu0 %v3244
          %4343 = vmatprep.subr.bf16.mxu0 %v3277
          %4344 = vmatpush1.bf16.msra.mxu0 %v3276
          %4345 = vmatprep.subr.bf16.mxu0 %v3309
          %4346 = vmatpush1.bf16.msra.mxu0 %v3308
          %4347 = vmatprep.subr.bf16.mxu0 %v3341
          %4348 = vmatpush1.bf16.msra.mxu0 %v3340
          %4349 = vmatprep.subr.bf16.mxu0 %v3373
          %4350 = vmatpush1.bf16.msra.mxu0 %v3372
          %4351 = vmatprep.subr.bf16.mxu0 %v3405
          %4352 = vmatpush1.bf16.msra.mxu0 %v3404
          %4353 = vmatprep.subr.bf16.mxu0 %v3437
          %4354 = vmatpush1.bf16.msra.mxu0 %v3436
          %4355 = vmatprep.subr.bf16.mxu0 %v3469
          %4356 = vmatpush1.bf16.msra.mxu0 %v3468
          %4357 = vmatprep.subr.bf16.mxu0 %v3501
          %4358 = vmatpush1.bf16.msra.mxu0 %v3500
          %4359 = vmatprep.subr.bf16.mxu0 %v3533
          %4360 = vmatpush1.bf16.msra.mxu0 %v3532
          %4361 = vmatprep.subr.bf16.mxu0 %v3565
          %4362 = vmatpush1.bf16.msra.mxu0 %v3564
          %4363 = vmatprep.subr.bf16.mxu0 %v3597
          %4364 = vmatpush1.bf16.msra.mxu0 %v3596
          %4365 = vmatprep.subr.bf16.mxu0 %v3629
          %4366 = vmatpush1.bf16.msra.mxu0 %v3628
          %4367 = vmatprep.mubr.bf16.mxu0 %v3121
          %4368 = vmatmul.mubr.bf16.gmra.mrb[0].mxu0 %v3120
          %v4369 = vpop.f32.mrb[0].mxu0
          %v4370 = vadd.f32 %v3749, %v4369
          %v4371 = vpop.f32.mrb[0].mxu0
          %v4372 = vadd.f32 %v3753, %v4371
          %v4373 = vpop.f32.mrb[0].mxu0
          %v4374 = vpop.f32.mrb[0].mxu0
          %4375 = vdwg.mxu0
          %4376 = vmatprep.subr.bf16.mxu0 %v3151
          %4377 = vmatpush1.bf16.msra.mxu0 %v3150
          %4378 = vmatprep.subr.bf16.mxu0 %v3183
          %4379 = vmatpush1.bf16.msra.mxu0 %v3182
          %4380 = vmatprep.subr.bf16.mxu0 %v3215
          %4381 = vmatpush1.bf16.msra.mxu0 %v3214
          %4382 = vmatprep.subr.bf16.mxu0 %v3247
          %4383 = vmatpush1.bf16.msra.mxu0 %v3246
          %4384 = vmatprep.subr.bf16.mxu0 %v3279
          %4385 = vmatpush1.bf16.msra.mxu0 %v3278
          %4386 = vmatprep.subr.bf16.mxu0 %v3311
          %4387 = vmatpush1.bf16.msra.mxu0 %v3310
          %4388 = vmatprep.subr.bf16.mxu0 %v3343
          %4389 = vmatpush1.bf16.msra.mxu0 %v3342
          %4390 = vmatprep.subr.bf16.mxu0 %v3375
          %4391 = vmatpush1.bf16.msra.mxu0 %v3374
          %4392 = vmatprep.subr.bf16.mxu0 %v3407
          %4393 = vmatpush1.bf16.msra.mxu0 %v3406
          %4394 = vmatprep.subr.bf16.mxu0 %v3439
          %4395 = vmatpush1.bf16.msra.mxu0 %v3438
          %4396 = vmatprep.subr.bf16.mxu0 %v3471
          %4397 = vmatpush1.bf16.msra.mxu0 %v3470
          %4398 = vmatprep.subr.bf16.mxu0 %v3503
          %4399 = vmatpush1.bf16.msra.mxu0 %v3502
          %4400 = vmatprep.subr.bf16.mxu0 %v3535
          %4401 = vmatpush1.bf16.msra.mxu0 %v3534
          %4402 = vmatprep.subr.bf16.mxu0 %v3567
          %4403 = vmatpush1.bf16.msra.mxu0 %v3566
          %4404 = vmatprep.subr.bf16.mxu0 %v3599
          %4405 = vmatpush1.bf16.msra.mxu0 %v3598
          %4406 = vmatprep.subr.bf16.mxu0 %v3631
          %4407 = vmatpush1.bf16.msra.mxu0 %v3630
          %4408 = vmatprep.mubr.bf16.mxu0 %v3121
          %4409 = vmatmul.mubr.bf16.gmra.mrb[0].mxu0 %v3120
          %v4410 = vpop.f32.mrb[0].mxu0
          %v4411 = vadd.f32 %v3757, %v4410
          %v4412 = vpop.f32.mrb[0].mxu0
          %v4413 = vadd.f32 %v3761, %v4412
          %v4414 = vpop.f32.mrb[0].mxu0
          %v4415 = vpop.f32.mrb[0].mxu0
          %4416 = vdwg.mxu0
          %4417 = vmatprep.subr.bf16.mxu0 %v3153
          %4418 = vmatpush1.bf16.msra.mxu0 %v3152
          %4419 = vmatprep.subr.bf16.mxu0 %v3185
          %4420 = vmatpush1.bf16.msra.mxu0 %v3184
          %4421 = vmatprep.subr.bf16.mxu0 %v3217
          %4422 = vmatpush1.bf16.msra.mxu0 %v3216
          %4423 = vmatprep.subr.bf16.mxu0 %v3249
          %4424 = vmatpush1.bf16.msra.mxu0 %v3248
          %4425 = vmatprep.subr.bf16.mxu0 %v3281
          %4426 = vmatpush1.bf16.msra.mxu0 %v3280
          %4427 = vmatprep.subr.bf16.mxu0 %v3313
          %4428 = vmatpush1.bf16.msra.mxu0 %v3312
          %4429 = vmatprep.subr.bf16.mxu0 %v3345
          %4430 = vmatpush1.bf16.msra.mxu0 %v3344
          %4431 = vmatprep.subr.bf16.mxu0 %v3377
          %4432 = vmatpush1.bf16.msra.mxu0 %v3376
          %4433 = vmatprep.subr.bf16.mxu0 %v3409
          %4434 = vmatpush1.bf16.msra.mxu0 %v3408
          %4435 = vmatprep.subr.bf16.mxu0 %v3441
          %4436 = vmatpush1.bf16.msra.mxu0 %v3440
          %4437 = vmatprep.subr.bf16.mxu0 %v3473
          %4438 = vmatpush1.bf16.msra.mxu0 %v3472
          %4439 = vmatprep.subr.bf16.mxu0 %v3505
          %4440 = vmatpush1.bf16.msra.mxu0 %v3504
          %4441 = vmatprep.subr.bf16.mxu0 %v3537
          %4442 = vmatpush1.bf16.msra.mxu0 %v3536
          %4443 = vmatprep.subr.bf16.mxu0 %v3569
          %4444 = vmatpush1.bf16.msra.mxu0 %v3568
          %4445 = vmatprep.subr.bf16.mxu0 %v3601
          %4446 = vmatpush1.bf16.msra.mxu0 %v3600
          %4447 = vmatprep.subr.bf16.mxu0 %v3633
          %4448 = vmatpush1.bf16.msra.mxu0 %v3632
          %4449 = vmatprep.mubr.bf16.mxu0 %v3121
          %4450 = vmatmul.mubr.bf16.gmra.mrb[0].mxu0 %v3120
          %v4451 = vpop.f32.mrb[0].mxu0
          %v4452 = vadd.f32 %v3765, %v4451
          %v4453 = vpop.f32.mrb[0].mxu0
          %v4454 = vadd.f32 %v3769, %v4453
          %v4455 = vpop.f32.mrb[0].mxu0
          %v4456 = vpop.f32.mrb[0].mxu0
          %4457 = vdwg.mxu0
          %v4490 = vcombine.low %v3837, %v3839
          %v4491 = vcombine.low %v3878, %v3880
          %v4492 = vcombine.low %v3919, %v3921
          %v4493 = vcombine.low %v3960, %v3962
          %v4495 = vunpack.c.l.s4 1966171168
          %v4496 = vunpack.c.0.s8 %v4495
          %v4497 = vlaneseq
          %v4498 = vshrl.u32 %v4497, 7
          %v4499 = vsub.s32 %v4496, %v4498
          %v4500 = vrot.slane %v4490, %v4499
          %v4502 = vunpack.c.l.s4 1966171168
          %v4503 = vunpack.c.0.s8 %v4502
          %v4504 = vlaneseq
          %v4505 = vshrl.u32 %v4504, 7
          %v4506 = vsub.s32 %v4503, %v4505
          %v4507 = vrot.slane %v4491, %v4506
          %v4509 = vunpack.c.l.s4 1966171168
          %v4510 = vunpack.c.0.s8 %v4509
          %v4511 = vlaneseq
          %v4512 = vshrl.u32 %v4511, 7
          %v4513 = vsub.s32 %v4510, %v4512
          %v4514 = vrot.slane %v4492, %v4513
          %v4516 = vunpack.c.l.s4 1966171168
          %v4517 = vunpack.c.0.s8 %v4516
          %v4518 = vlaneseq
          %v4519 = vshrl.u32 %v4518, 7
          %v4520 = vsub.s32 %v4517, %v4519
          %v4521 = vrot.slane %v4493, %v4520
          %v4522 = vcombine.low %v4500, %v4507
          %v4523 = vcombine.low %v4514, %v4521
          %v4525 = vunpack.c.l.s4 1966171168
          %v4526 = vunpack.c.0.s8 %v4525
          %v4527 = vlaneseq
          %v4528 = vshrl.u32 %v4527, 7
          %v4529 = vsub.s32 %v4526, %v4528
          %v4530 = vrot.slane %v4522, %v4529
          %v4532 = vunpack.c.l.s4 1966171168
          %v4533 = vunpack.c.0.s8 %v4532
          %v4534 = vlaneseq
          %v4535 = vshrl.u32 %v4534, 7
          %v4536 = vsub.s32 %v4533, %v4535
          %v4537 = vrot.slane %v4523, %v4536
          %v4538 = vcombine.low %v4530, %v4537
          %v4539 = vcombine.low %v4001, %v4003
          %v4540 = vcombine.low %v4042, %v4044
          %v4541 = vcombine.low %v4083, %v4085
          %v4542 = vcombine.low %v4124, %v4126
          %v4544 = vunpack.c.l.s4 1966171168
          %v4545 = vunpack.c.0.s8 %v4544
          %v4546 = vlaneseq
          %v4547 = vshrl.u32 %v4546, 7
          %v4548 = vsub.s32 %v4545, %v4547
          %v4549 = vrot.slane %v4539, %v4548
          %v4551 = vunpack.c.l.s4 1966171168
          %v4552 = vunpack.c.0.s8 %v4551
          %v4553 = vlaneseq
          %v4554 = vshrl.u32 %v4553, 7
          %v4555 = vsub.s32 %v4552, %v4554
          %v4556 = vrot.slane %v4540, %v4555
          %v4558 = vunpack.c.l.s4 1966171168
          %v4559 = vunpack.c.0.s8 %v4558
          %v4560 = vlaneseq
          %v4561 = vshrl.u32 %v4560, 7
          %v4562 = vsub.s32 %v4559, %v4561
          %v4563 = vrot.slane %v4541, %v4562
          %v4565 = vunpack.c.l.s4 1966171168
          %v4566 = vunpack.c.0.s8 %v4565
          %v4567 = vlaneseq
          %v4568 = vshrl.u32 %v4567, 7
          %v4569 = vsub.s32 %v4566, %v4568
          %v4570 = vrot.slane %v4542, %v4569
          %v4571 = vcombine.low %v4549, %v4556
          %v4572 = vcombine.low %v4563, %v4570
          %v4574 = vunpack.c.l.s4 1966171168
          %v4575 = vunpack.c.0.s8 %v4574
          %v4576 = vlaneseq
          %v4577 = vshrl.u32 %v4576, 7
          %v4578 = vsub.s32 %v4575, %v4577
          %v4579 = vrot.slane %v4571, %v4578
          %v4581 = vunpack.c.l.s4 1966171168
          %v4582 = vunpack.c.0.s8 %v4581
          %v4583 = vlaneseq
          %v4584 = vshrl.u32 %v4583, 7
          %v4585 = vsub.s32 %v4582, %v4584
          %v4586 = vrot.slane %v4572, %v4585
          %v4587 = vcombine.low %v4579, %v4586
          %v4588 = vcombine.low %v4165, %v4167
          %v4589 = vcombine.low %v4206, %v4208
          %v4590 = vcombine.low %v4247, %v4249
          %v4591 = vcombine.low %v4288, %v4290
          %v4593 = vunpack.c.l.s4 1966171168
          %v4594 = vunpack.c.0.s8 %v4593
          %v4595 = vlaneseq
          %v4596 = vshrl.u32 %v4595, 7
          %v4597 = vsub.s32 %v4594, %v4596
          %v4598 = vrot.slane %v4588, %v4597
          %v4600 = vunpack.c.l.s4 1966171168
          %v4601 = vunpack.c.0.s8 %v4600
          %v4602 = vlaneseq
          %v4603 = vshrl.u32 %v4602, 7
          %v4604 = vsub.s32 %v4601, %v4603
          %v4605 = vrot.slane %v4589, %v4604
          %v4607 = vunpack.c.l.s4 1966171168
          %v4608 = vunpack.c.0.s8 %v4607
          %v4609 = vlaneseq
          %v4610 = vshrl.u32 %v4609, 7
          %v4611 = vsub.s32 %v4608, %v4610
          %v4612 = vrot.slane %v4590, %v4611
          %v4614 = vunpack.c.l.s4 1966171168
          %v4615 = vunpack.c.0.s8 %v4614
          %v4616 = vlaneseq
          %v4617 = vshrl.u32 %v4616, 7
          %v4618 = vsub.s32 %v4615, %v4617
          %v4619 = vrot.slane %v4591, %v4618
          %v4620 = vcombine.low %v4598, %v4605
          %v4621 = vcombine.low %v4612, %v4619
          %v4623 = vunpack.c.l.s4 1966171168
          %v4624 = vunpack.c.0.s8 %v4623
          %v4625 = vlaneseq
          %v4626 = vshrl.u32 %v4625, 7
          %v4627 = vsub.s32 %v4624, %v4626
          %v4628 = vrot.slane %v4620, %v4627
          %v4630 = vunpack.c.l.s4 1966171168
          %v4631 = vunpack.c.0.s8 %v4630
          %v4632 = vlaneseq
          %v4633 = vshrl.u32 %v4632, 7
          %v4634 = vsub.s32 %v4631, %v4633
          %v4635 = vrot.slane %v4621, %v4634
          %v4636 = vcombine.low %v4628, %v4635
          %v4637 = vcombine.low %v4329, %v4331
          %v4638 = vcombine.low %v4370, %v4372
          %v4639 = vcombine.low %v4411, %v4413
          %v4640 = vcombine.low %v4452, %v4454
          %v4642 = vunpack.c.l.s4 1966171168
          %v4643 = vunpack.c.0.s8 %v4642
          %v4644 = vlaneseq
          %v4645 = vshrl.u32 %v4644, 7
          %v4646 = vsub.s32 %v4643, %v4645
          %v4647 = vrot.slane %v4637, %v4646
          %v4649 = vunpack.c.l.s4 1966171168
          %v4650 = vunpack.c.0.s8 %v4649
          %v4651 = vlaneseq
          %v4652 = vshrl.u32 %v4651, 7
          %v4653 = vsub.s32 %v4650, %v4652
          %v4654 = vrot.slane %v4638, %v4653
          %v4656 = vunpack.c.l.s4 1966171168
          %v4657 = vunpack.c.0.s8 %v4656
          %v4658 = vlaneseq
          %v4659 = vshrl.u32 %v4658, 7
          %v4660 = vsub.s32 %v4657, %v4659
          %v4661 = vrot.slane %v4639, %v4660
          %v4663 = vunpack.c.l.s4 1966171168
          %v4664 = vunpack.c.0.s8 %v4663
          %v4665 = vlaneseq
          %v4666 = vshrl.u32 %v4665, 7
          %v4667 = vsub.s32 %v4664, %v4666
          %v4668 = vrot.slane %v4640, %v4667
          %v4669 = vcombine.low %v4647, %v4654
          %v4670 = vcombine.low %v4661, %v4668
          %v4672 = vunpack.c.l.s4 1966171168
          %v4673 = vunpack.c.0.s8 %v4672
          %v4674 = vlaneseq
          %v4675 = vshrl.u32 %v4674, 7
          %v4676 = vsub.s32 %v4673, %v4675
          %v4677 = vrot.slane %v4669, %v4676
          %v4679 = vunpack.c.l.s4 1966171168
          %v4680 = vunpack.c.0.s8 %v4679
          %v4681 = vlaneseq
          %v4682 = vshrl.u32 %v4681, 7
          %v4683 = vsub.s32 %v4680, %v4682
          %v4684 = vrot.slane %v4670, %v4683
          %v4685 = vcombine.low %v4677, %v4684
          %4690 = vst [vmem:[%s514] sm:$0xff] %v4538
          %4691 = vst [vmem:[%s514 + $0x8] sm:$0xff] %v4587
          %4692 = vst [vmem:[%s514 + $0x10] sm:$0xff] %v4636
          %4693 = vst [vmem:[%s514 + $0x18] sm:$0xff] %v4685
        $region108: #{tpu_custom_call.1} parent=59 // pred_fallthru
          _
        %s4694 = sand.u32 %s272, 1
        %s4695 = scalar_lea.sflag [#allocation9], %s4694
        %s4696 = sand.u32 %s272, 1
        %s4697 = smul.addr %s4696, 32
        %s4698 = scalar_lea.vmem [#allocation24], %s4697
        // Predicated region
        $region109: #{tpu_custom_call.1} parent=59 // pred_check
          %p4699 = pneg %p282
        $region110: #{tpu_custom_call.1} parent=59 // pred_check_branch
          %4701 = sbr.rel (%p4699) target = $region112
        $region111: #{tpu_custom_call.1} parent=59 // pred_region
          %s4703 = ssub.s32 512, 512
          %4704 = vsyncadd %s4695, %s4703
          %s4705 = smul.addr %s39, 32
          %s4706 = smul.addr %s4705, 16
          %s4707 = scalar_lea.hbm %s13, %s4706
          %s4709 = sshll.u32 %s4698, 4
          %s4710 = int_to_ptr.vmem [resolvable:$true] %s4709
          %4712 = dma.vmem_to_hbm [thread:$0]  %s4710, 512, %s4707, %s4695
        $region112: #{tpu_custom_call.1} parent=59 // pred_fallthru
          _
      $region60: #{tpu_custom_call.1} parent=5 // pred_fallthru
        _
      %p4713 = scmp.le.s32.totalorder 2, %s30
      // Predicated region
      $region113: #{tpu_custom_call.1} parent=5 // pred_check
        %p4714 = pneg %p4713
      $region114: #{tpu_custom_call.1} parent=5 // pred_check_branch
        %4716 = sbr.rel (%p4714) target = $region116
      $region115: #{tpu_custom_call.1} parent=5 // pred_region
        %s4717 = ssub.s32 %s30, 2
        // Predicated region
        $region117: #{tpu_custom_call.1} parent=115 // pred_check
          %p4718 = pneg %p288
        $region118: #{tpu_custom_call.1} parent=115 // pred_check_branch
          %4720 = sbr.rel (%p4718) target = $region120
        $region119: #{tpu_custom_call.1} parent=115 // pred_region
          %s4721 = sand.u32 %s273, 1
          %s4722 = scalar_lea.sflag [#allocation9], %s4721
          %s4723 = sand.u32 %s273, 1
          %s4724 = smul.addr %s4723, 32
          %s4725 = scalar_lea.vmem [#allocation24], %s4724
          %4726 = dma.done %s4722, 512
        $region120: #{tpu_custom_call.1} parent=115 // pred_fallthru
          _
      $region116: #{tpu_custom_call.1} parent=5 // pred_fallthru
        _
    $region6: #{tpu_custom_call.1} parent=1 // loop_footer
      %s34 = sadd.s32 1, %s30
    $region7: #{tpu_custom_call.1} parent=1 // loop_footer_branch
      %29 = sbr.rel target = $region3
    $region8: #{tpu_custom_call.1} parent=1 // loop_exit
      _
    %4727 = vsyncpa [#allocation8], 1
    %s4728 = scalar_lea.sflag [#allocation8], 1
    %4729 = vsyncpa %s4728, 1
    %4730 = vsyncpa [#allocation11], 1
    %4731 = vsyncpa [#allocation14], 1
    %4732 = vsyncpa [#allocation17], 1
    %4733 = vsyncpa [#allocation20], 1
    %4734 = vsyncpa [#allocation23], 1
    %4735 = vsyncpa [#allocation9], 1
    %s4736 = scalar_lea.sflag [#allocation9], 1
    %4737 = vsyncpa %s4736, 1
  %4738 = vsyncmov [#allocation6]
  %s4739 = vpop.sfrf %4738
  %p4740 = scmp.eq.s32.totalorder %s4739, 0
  %p4741 = pneg %p4740
  %4743 = shalt.err (%p4741)
  %s4744 = scalar_lea.sflag [#allocation6], 1
  %4745 = vsyncmov %s4744
  %s4746 = vpop.sfrf %4745
  %p4747 = scmp.eq.s32.totalorder %s4746, 0
  %p4748 = pneg %p4747
  %4750 = shalt.err (%p4748)
  %s4751 = scalar_lea.sflag [#allocation6], 2
  %4752 = vsyncmov %s4751
  %s4753 = vpop.sfrf %4752
  %p4754 = scmp.eq.s32.totalorder %s4753, 0
  %p4755 = pneg %p4754
  %4757 = shalt.err (%p4755)

</llo_original>
